<compile_context>
chip_gen: v6e
topology: v6e:2x2x1
jax: 0.10.0
libtpu: 0.0.40
codegen_flags: <defaults>
</compile_context>

<pallas_src>
import functools

import jax
import jax.numpy as jnp
import numpy as np
from jax.experimental import pallas as pl
from jax.experimental.pallas import tpu as pltpu

EPS = 1e-5
LANE = 128


# ----------------------------------------------------------------------------
# Small helpers
# ----------------------------------------------------------------------------
def _rup(x, m):
    return (x + m - 1) // m * m


def _pad_to(a, shape):
    pads = [(0, t - s) for s, t in zip(a.shape, shape)]
    if all(p == (0, 0) for p in pads):
        return a
    return jnp.pad(a, pads)


@functools.lru_cache(maxsize=None)
def _vmem_limit_bytes():
    """Generation-aware scoped-VMEM ceiling (~3/4 of physical VMEM):
    v5e/v6e (128 MiB) -> 96 MiB, v7x (64 MiB) -> 48 MiB; fallback 48 MiB."""
    cap = None
    try:
        cap = getattr(pltpu.get_tpu_info(), "vmem_capacity_bytes", None)
    except Exception:
        cap = None
    if not cap:
        cap = 64 * 1024 * 1024
    return int(min(cap * 3 // 4, 100 * 1024 * 1024))


def _compiler_params(*sem):
    return pltpu.CompilerParams(dimension_semantics=tuple(sem),
                                vmem_limit_bytes=_vmem_limit_bytes())


def _row_plan(m, pref_mm, pref_ew):
    """Row tiling plan: tm (matmul tile) divides the padded M; te (element-wise
    tile) is a multiple of tm (so both divide padded M), up to pref_ew."""
    m8 = _rup(m, 8)
    tm = min(pref_mm, m8)
    for cand in range(tm, 7, -8):
        if m8 % cand == 0:
            tm = cand
            break
    mp = _rup(m8, tm)
    nblk = mp // tm
    k = 1
    for cand in range(nblk, 0, -1):
        if nblk % cand == 0 and tm * cand <= pref_ew:
            k = cand
            break
    return tm, tm * k, mp


def _choose_tho(ho, wo, c2, budget=2 * 1024 * 1024):
    """Largest divisor of ho whose f32 row-block accumulator fits the budget."""
    best = 1
    for t in range(1, ho + 1):
        if ho % t == 0 and t * wo * c2 * 4 <= budget:
            best = t
    return best


# ----------------------------------------------------------------------------
# Pallas kernels
# ----------------------------------------------------------------------------
def _pack_stats(y):
    """(rows, C) f32 -> (8, C): row 0 = per-channel sum, row 1 = sum of squares."""
    c = y.shape[1]
    s = jnp.sum(y, axis=0, keepdims=True)
    sq = jnp.sum(y * y, axis=0, keepdims=True)
    rows = jax.lax.broadcasted_iota(jnp.int32, (8, c), 0)
    return jnp.where(rows == 0, jnp.broadcast_to(s, (8, c)),
                     jnp.where(rows == 1, jnp.broadcast_to(sq, (8, c)), 0.0))


def _matmul_stats_kernel(x_ref, w_ref, y_ref, st_ref):
    # 1x1 conv as matmul: bf16 inputs, f32 MXU accumulation.  Emits per-tile BN
    # partial sums (f32); the conv output is written back as bf16.
    y = jnp.dot(x_ref[...], w_ref[...], preferred_element_type=jnp.float32)
    y_ref[...] = y.astype(y_ref.dtype)
    st_ref[0] = _pack_stats(y)


def _affine_relu_matmul_stats_kernel(y_ref, s_ref, b_ref, w_ref, o_ref, st_ref,
                                     *, m_real, tm):
    # Fused: z = relu(bn2(conv2_out)) applied on the fly, then 1x1 conv3 matmul.
    # Rows >= m_real (row padding of the flattened conv2 output) are zeroed so
    # they never pollute the conv3 output or its BN statistics.
    z = jnp.maximum(y_ref[...].astype(jnp.float32) * s_ref[...] + b_ref[...], 0.0)
    rows = (jax.lax.broadcasted_iota(jnp.int32, z.shape, 0)
            + pl.program_id(0) * tm)
    z = jnp.where(rows < m_real, z, 0.0)
    y = jnp.dot(z.astype(jnp.bfloat16), w_ref[...],
                preferred_element_type=jnp.float32)
    o_ref[...] = y.astype(o_ref.dtype)
    st_ref[0] = _pack_stats(y)


def _conv3x3_stats_kernel(xp_ref, w_ref, y_ref, st_ref, *, stride, tho, wo):
    # 3x3 conv, one (image, output-row-block) per grid step: 9-tap accumulation
    # in VMEM (no im2col in HBM).  xp_ref holds the whole space-to-depth'd,
    # zero-padded image (constant index map over the row-block axis -> fetched
    # once per image); the accumulator / output cover only `tho` output rows.
    r = pl.program_id(1)
    c2 = w_ref.shape[2]
    acc = jnp.zeros((tho * wo, c2), jnp.float32)
    row0 = r * tho
    for kh in range(3):
        for kw in range(3):
            p, di = kh % stride, kh // stride
            q, dj = kw % stride, kw // stride
            xt = xp_ref[0, p * stride + q, pl.ds(row0 + di, tho), dj:dj + wo, :]
            # TODO(synk): the (tho, wo, C) window is sliced from a wider Wh
            # buffer; the flatten below may cost a VMEM relayout copy.
            acc = acc + jnp.dot(xt.reshape(tho * wo, xt.shape[-1]),
                                w_ref[kh * 3 + kw],
                                preferred_element_type=jnp.float32)
    y_ref[0] = acc.reshape(tho, wo, c2).astype(y_ref.dtype)
    st_ref[0, 0] = _pack_stats(acc)


def _affine_relu_kernel(y_ref, s_ref, b_ref, o_ref, *, m_real, tm):
    # z = relu(y * scale + shift); padded rows forced to zero.
    z = jnp.maximum(y_ref[...].astype(jnp.float32) * s_ref[...] + b_ref[...], 0.0)
    rows = (jax.lax.broadcasted_iota(jnp.int32, z.shape, 0)
            + pl.program_id(0) * tm)
    o_ref[...] = jnp.where(rows < m_real, z, 0.0).astype(o_ref.dtype)


def _bn_add_relu_kernel(y_ref, s3_ref, b3_ref, r_ref, ss_ref, bs_ref, o_ref):
    # Fused: out = relu(bn3(conv3) + bn_s(shortcut)).
    a = y_ref[...].astype(jnp.float32) * s3_ref[...] + b3_ref[...]
    b = r_ref[...].astype(jnp.float32) * ss_ref[...] + bs_ref[...]
    o_ref[...] = jnp.maximum(a + b, 0.0).astype(o_ref.dtype)


# ----------------------------------------------------------------------------
# pallas_call wrappers
# ----------------------------------------------------------------------------
def matmul_stats(x, w, tm):
    mp, k = x.shape
    c = w.shape[1]
    nmt = mp // tm
    return pl.pallas_call(
        _matmul_stats_kernel,
        grid=(nmt,),
        in_specs=[pl.BlockSpec((tm, k), lambda i: (i, 0)),
                  pl.BlockSpec((k, c), lambda i: (0, 0))],
        out_specs=[pl.BlockSpec((tm, c), lambda i: (i, 0)),
                   pl.BlockSpec((1, 8, c), lambda i: (i, 0, 0))],
        out_shape=[jax.ShapeDtypeStruct((mp, c), jnp.bfloat16),
                   jax.ShapeDtypeStruct((nmt, 8, c), jnp.float32)],
        compiler_params=_compiler_params("parallel"),
    )(x, w)


def affine_relu_matmul_stats(y_in, scale, shift, w, tm, m_real):
    mp, k = y_in.shape
    c = w.shape[1]
    nmt = mp // tm
    kernel = functools.partial(_affine_relu_matmul_stats_kernel,
                               m_real=m_real, tm=tm)
    return pl.pallas_call(
        kernel,
        grid=(nmt,),
        in_specs=[pl.BlockSpec((tm, k), lambda i: (i, 0)),
                  pl.BlockSpec((1, k), lambda i: (0, 0)),
                  pl.BlockSpec((1, k), lambda i: (0, 0)),
                  pl.BlockSpec((k, c), lambda i: (0, 0))],
        out_specs=[pl.BlockSpec((tm, c), lambda i: (i, 0)),
                   pl.BlockSpec((1, 8, c), lambda i: (i, 0, 0))],
        out_shape=[jax.ShapeDtypeStruct((mp, c), jnp.bfloat16),
                   jax.ShapeDtypeStruct((nmt, 8, c), jnp.float32)],
        compiler_params=_compiler_params("parallel"),
    )(y_in, scale, shift, w)


def conv3x3_stats(zs, w2, stride, ho, wo, tho):
    n, ss, hh, wh, c = zs.shape
    c2 = w2.shape[2]
    nr = ho // tho
    kernel = functools.partial(_conv3x3_stats_kernel, stride=stride, tho=tho, wo=wo)
    return pl.pallas_call(
        kernel,
        grid=(n, nr),
        in_specs=[pl.BlockSpec((1, ss, hh, wh, c), lambda i, r: (i, 0, 0, 0, 0)),
                  pl.BlockSpec((9, c, c2), lambda i, r: (0, 0, 0))],
        out_specs=[pl.BlockSpec((1, tho, wo, c2), lambda i, r: (i, r, 0, 0)),
                   pl.BlockSpec((1, 1, 8, c2), lambda i, r: (i, r, 0, 0))],
        out_shape=[jax.ShapeDtypeStruct((n, ho, wo, c2), jnp.bfloat16),
                   jax.ShapeDtypeStruct((n, nr, 8, c2), jnp.float32)],
        compiler_params=_compiler_params("parallel", "arbitrary"),
    )(zs, w2)


def affine_relu(y, scale, shift, m_real, tm, out_dtype):
    mp, c = y.shape
    kernel = functools.partial(_affine_relu_kernel, m_real=m_real, tm=tm)
    return pl.pallas_call(
        kernel,
        grid=(mp // tm,),
        in_specs=[pl.BlockSpec((tm, c), lambda i: (i, 0)),
                  pl.BlockSpec((1, c), lambda i: (0, 0)),
                  pl.BlockSpec((1, c), lambda i: (0, 0))],
        out_specs=pl.BlockSpec((tm, c), lambda i: (i, 0)),
        out_shape=jax.ShapeDtypeStruct((mp, c), out_dtype),
        compiler_params=_compiler_params("parallel"),
    )(y, scale, shift)


def bn_add_relu(y3, s3, b3, r, ss, bs, tm):
    mp, c = y3.shape
    return pl.pallas_call(
        _bn_add_relu_kernel,
        grid=(mp // tm,),
        in_specs=[pl.BlockSpec((tm, c), lambda i: (i, 0)),
                  pl.BlockSpec((1, c), lambda i: (0, 0)),
                  pl.BlockSpec((1, c), lambda i: (0, 0)),
                  pl.BlockSpec((tm, c), lambda i: (i, 0)),
                  pl.BlockSpec((1, c), lambda i: (0, 0)),
                  pl.BlockSpec((1, c), lambda i: (0, 0))],
        out_specs=pl.BlockSpec((tm, c), lambda i: (i, 0)),
        out_shape=jax.ShapeDtypeStruct((mp, c), jnp.float32),
        compiler_params=_compiler_params("parallel"),
    )(y3, s3, b3, r, ss, bs)


# ----------------------------------------------------------------------------
# Tiny JAX glue (per-channel vectors + layout plumbing only)
# ----------------------------------------------------------------------------
def _stats_to_affine(stats, gamma, beta, m_real):
    """Reduce per-tile sum / sumsq -> fused BN (scale, shift), biased variance.
    NOTE: E[x^2]-E[x]^2 (clamped at 0) can cancel for large-mean activations;
    adequate here (f32 partials, modest M).  # TODO(synk): Welford-style combine."""
    stats = stats.reshape(-1, 8, stats.shape[-1])
    s = jnp.sum(stats[:, 0, :], axis=0)
    sq = jnp.sum(stats[:, 1, :], axis=0)
    mean = s / m_real
    var = jnp.maximum(sq / m_real - mean * mean, 0.0)
    scale = gamma * jax.lax.rsqrt(var + EPS)
    shift = beta - mean * scale
    c = scale.shape[0]
    return scale.reshape(1, c), shift.reshape(1, c)


def _space_to_depth(zp, stride, ho, wo):
    """(N,Hp,Wp,C) zero-padded -> (N, s*s, Hh, Wh, C): every 3x3 tap at the
    given stride becomes a contiguous slice in the conv kernel.  stride==1 is a
    pure (free) reshape."""
    assert stride in (1, 2)
    n, _, _, c = zp.shape
    hh = ho + 2 // stride
    wh = wo + 2 // stride
    if stride == 1:
        return zp.reshape(n, 1, hh, wh, c)
    zp = _pad_to(zp, (n, stride * hh, stride * wh, c))
    z = zp.reshape(n, hh, stride, wh, stride, c).transpose(0, 2, 4, 1, 3, 5)
    return z.reshape(n, stride * stride, hh, wh, c)


# ----------------------------------------------------------------------------
# Parameters (PyTorch OIHW shapes; weights kept bf16-representable)
# ----------------------------------------------------------------------------
def init_params(key, in_channel, out_channel, stride, expansion=4):
    cmid = out_channel
    cout = out_channel * expansion
    k1, k2, k3, k4 = jax.random.split(key, 4)

    def w(k, shape):
        v = 0.1 * jax.random.normal(k, shape, jnp.float32)
        return v.astype(jnp.bfloat16).astype(jnp.float32)

    p = {
        "w1": w(k1, (cmid, in_channel, 1, 1)),
        "g1": jnp.ones((cmid,), jnp.float32), "b1": jnp.zeros((cmid,), jnp.float32),
        "w2": w(k2, (cmid, cmid, 3, 3)),
        "g2": jnp.ones((cmid,), jnp.float32), "b2": jnp.zeros((cmid,), jnp.float32),
        "w3": w(k3, (cout, cmid, 1, 1)),
        "g3": jnp.ones((cout,), jnp.float32), "b3": jnp.zeros((cout,), jnp.float32),
    }
    if stride != 1 or in_channel != cout:
        p["ws"] = w(k4, (cout, in_channel, 1, 1))
        p["gs"] = jnp.ones((cout,), jnp.float32)
        p["bs"] = jnp.zeros((cout,), jnp.float32)
    return p


# ----------------------------------------------------------------------------
# BottleNeck forward using the Pallas kernels
# ----------------------------------------------------------------------------
def bottleneck_forward(x_nchw, params, stride):
    assert stride in (1, 2), "3x3 tap decomposition derived for stride in {1,2}"
    # TODO(synk): fold the NCHW->NHWC relayout + bf16 cast into the conv1 kernel.
    x = jnp.transpose(x_nchw, (0, 2, 3, 1)).astype(jnp.float32)       # NHWC
    n, h, w_, cin = x.shape
    cmid = params["w1"].shape[0]
    cout = params["w3"].shape[0]
    cin_p, cm_p, co_p = _rup(cin, LANE), _rup(cmid, LANE), _rup(cout, LANE)

    ho = (h + 2 - 3) // stride + 1
    wo = (w_ + 2 - 3) // stride + 1
    m1, m2 = n * h * w_, n * ho * wo
    tm1, te1, m1p = _row_plan(m1, 512, 1024)   # matmul tile / element-wise tile
    tm2, te2, m2p = _row_plan(m2, 512, 512)

    # ---- conv1 (1x1) + BN1 stats; BN1+ReLU applied by a bf16 element-wise pass
    x2d = _pad_to(x.reshape(m1, cin), (m1p, cin_p)).astype(jnp.bfloat16)
    w1 = _pad_to(params["w1"][:, :, 0, 0].T, (cin_p, cm_p)).astype(jnp.bfloat16)
    g1, b1 = _pad_to(params["g1"], (cm_p,)), _pad_to(params["b1"], (cm_p,))
    y1, st1 = matmul_stats(x2d, w1, tm1)                       # y1: bf16
    sc1, sh1 = _stats_to_affine(st1, g1, b1, m1)
    z1 = affine_relu(y1, sc1, sh1, m1, te1, jnp.bfloat16)
    z1 = z1[:m1].reshape(n, h, w_, cm_p)
    # TODO(synk): fuse the BN1 apply into the conv2 taps (needs halo masking).

    # ---- conv2 (3x3, stride, pad=1) + BN2 stats ------------------------------
    z1p = jnp.pad(z1, ((0, 0), (1, 1), (1, 1), (0, 0)))
    zs = _space_to_depth(z1p, stride, ho, wo)
    w2 = jnp.transpose(params["w2"], (2, 3, 1, 0)).reshape(9, cmid, cmid)
    w2 = _pad_to(w2, (9, cm_p, cm_p)).astype(jnp.bfloat16)
    g2, b2 = _pad_to(params["g2"], (cm_p,)), _pad_to(params["b2"], (cm_p,))
    tho = _choose_tho(ho, wo, cm_p)
    y2, st2 = conv3x3_stats(zs, w2, stride, ho, wo, tho)       # y2: bf16
    sc2, sh2 = _stats_to_affine(st2, g2, b2, m2)
    # reshape is a free (contiguous) collapse; pad is a no-op when m2 % tm2 == 0
    y2 = _pad_to(y2.reshape(m2, cm_p), (m2p, cm_p))

    # ---- conv3 (1x1) fused with BN2-apply + ReLU on its input ----------------
    w3 = _pad_to(params["w3"][:, :, 0, 0].T, (cm_p, co_p)).astype(jnp.bfloat16)
    g3, b3 = _pad_to(params["g3"], (co_p,)), _pad_to(params["b3"], (co_p,))
    y3, st3 = affine_relu_matmul_stats(y2, sc2, sh2, w3, tm2, m2)
    sc3, sh3 = _stats_to_affine(st3, g3, b3, m2)

    # ---- shortcut -------------------------------------------------------------
    if "ws" in params:
        xs = x[:, ::stride, ::stride, :].reshape(m2, cin)
        xs = _pad_to(xs, (m2p, cin_p)).astype(jnp.bfloat16)
        ws = _pad_to(params["ws"][:, :, 0, 0].T, (cin_p, co_p)).astype(jnp.bfloat16)
        gs, bs = _pad_to(params["gs"], (co_p,)), _pad_to(params["bs"], (co_p,))
        yr, st_s = matmul_stats(xs, ws, tm2)
        scs, shs = _stats_to_affine(st_s, gs, bs, m2)
    else:
        # identity shortcut (stride == 1, cin == cout): reuse the already
        # lane-padded bf16 input (m1p == m2p, cin_p == co_p in this branch).
        yr = x2d
        scs = jnp.ones((1, co_p), jnp.float32)
        shs = jnp.zeros((1, co_p), jnp.float32)

    # ---- fused BN3 + shortcut-BN + residual add + ReLU -----------------------
    out = bn_add_relu(y3, sc3, sh3, yr, scs, shs, te2)
    out = out[:m2, :cout].reshape(n, ho, wo, cout)
    return jnp.transpose(out, (0, 3, 1, 2))                            # NCHW


# ----------------------------------------------------------------------------
# Pure-JAX reference (independent path via lax.conv) for correctness check
# ----------------------------------------------------------------------------
def ref_forward(x, params, stride):
    def conv(xi, w, s, pad):
        return jax.lax.conv_general_dilated(
            xi, w, (s, s), [(pad, pad), (pad, pad)],
            dimension_numbers=("NCHW", "OIHW", "NCHW"))

    def bn(y, g, b):
        mean = y.mean(axis=(0, 2, 3), keepdims=True)
        var = ((y - mean) ** 2).mean(axis=(0, 2, 3), keepdims=True)
        return ((y - mean) * jax.lax.rsqrt(var + EPS) * g.reshape(1, -1, 1, 1)
                + b.reshape(1, -1, 1, 1))

    y = jax.nn.relu(bn(conv(x, params["w1"], 1, 0), params["g1"], params["b1"]))
    y = jax.nn.relu(bn(conv(y, params["w2"], stride, 1), params["g2"], params["b2"]))
    y = bn(conv(y, params["w3"], 1, 0), params["g3"], params["b3"])
    if "ws" in params:
        s = bn(conv(x, params["ws"], stride, 0), params["gs"], params["bs"])
    else:
        s = x
    return jax.nn.relu(y + s)


# ----------------------------------------------------------------------------
if __name__ == "__main__":
    key = jax.random.PRNGKey(0)
    kx, kp = jax.random.split(key)

    in_channel, out_channel, stride = 4, 4, 2
    x = jax.random.normal(kx, (2, in_channel, 16, 16), jnp.float32)   # NCHW
    x = x.astype(jnp.bfloat16).astype(jnp.float32)    # bf16-representable input
    params = init_params(kp, in_channel, out_channel, stride)

    fwd = jax.jit(bottleneck_forward, static_argnums=2)
    out = jax.block_until_ready(fwd(x, params, stride))

    ref = jax.block_until_ready(ref_forward(x, params, stride))
    # bf16 matmul inputs AND bf16 HBM intermediates (stats in f32) vs the f32
    # lax.conv reference -> slightly looser tolerance than a pure-f32 pipeline.
    np.testing.assert_allclose(np.asarray(out), np.asarray(ref), rtol=2e-2, atol=3e-2)
    assert out.shape == (2, out_channel * 4, 8, 8)

    print("KERNEL_OK")
</pallas_src>

<mosaic_0001>
module attributes {stable_mosaic.version = 11 : i64} {
  func.func @_matmul_stats_kernel(%arg0: i32, %arg1: memref<512x128xbf16, #tpu.memory_space<vmem>>, %arg2: memref<128x128xbf16, #tpu.memory_space<vmem>>, %arg3: memref<512x128xbf16, #tpu.memory_space<vmem>>, %arg4: memref<1x8x128xf32, #tpu.memory_space<vmem>>) attributes {dimension_semantics = [#tpu.dimension_semantics<parallel>], iteration_bounds = array<i64: 1>, scalar_prefetch = 0 : i64, scratch_operands = 0 : i64, tpu.core_type = #tpu.core_type<tc>, window_params = [{transform_indices = @transform_0, window_bounds = array<i64: 512, 128>}, {pipeline_mode = #tpu.pipeline_mode<synchronous>, transform_indices = @transform_1, window_bounds = array<i64: 128, 128>}, {transform_indices = @transform_2, window_bounds = array<i64: 512, 128>}, {transform_indices = @transform_3, window_bounds = array<i64: 1, 8, 128>}]} {
    %c0 = arith.constant 0 : index
    %c0_0 = arith.constant 0 : index
    %0 = vector.load %arg1[%c0, %c0_0] : memref<512x128xbf16, #tpu.memory_space<vmem>>, vector<512x128xbf16>
    %c0_1 = arith.constant 0 : index
    %c0_2 = arith.constant 0 : index
    %1 = vector.load %arg2[%c0_1, %c0_2] : memref<128x128xbf16, #tpu.memory_space<vmem>>, vector<128x128xbf16>
    %cst = arith.constant dense<0.000000e+00> : vector<512x128xf32>
    %2 = tpu.matmul %0, %1, %cst {dimension_numbers = #tpu.dot_dimension_numbers<[1], [0], [0], [1], [0, 0, 1, 1], [], []>} : vector<512x128xbf16>, vector<128x128xbf16>, vector<512x128xf32> -> vector<512x128xf32>
    %3 = arith.truncf %2 : vector<512x128xf32> to vector<512x128xbf16>
    %c0_3 = arith.constant 0 : index
    %c0_4 = arith.constant 0 : index
    %4 = vector.load %arg3[%c0_3, %c0_4] : memref<512x128xbf16, #tpu.memory_space<vmem>>, vector<512x128xbf16>
    tpu.vector_store %arg3[%c0_3, %c0_4], %3 {strides = array<i32>} : memref<512x128xbf16, #tpu.memory_space<vmem>>, vector<512x128xbf16>,
    %cst_5 = arith.constant dense<0.000000e+00> : vector<128xf32>
    %5 = vector.multi_reduction <add>, %2, %cst_5 [0] : vector<512x128xf32> to vector<128xf32>
    %6 = vector.shape_cast %5 : vector<128xf32> to vector<1x128xf32>
    %7 = arith.mulf %2, %2 : vector<512x128xf32>
    %cst_6 = arith.constant dense<0.000000e+00> : vector<128xf32>
    %8 = vector.multi_reduction <add>, %7, %cst_6 [0] : vector<512x128xf32> to vector<128xf32>
    %9 = vector.shape_cast %8 : vector<128xf32> to vector<1x128xf32>
    %10 = tpu.iota {dimensions = array<i32: 0>} : vector<8x128xi32>
    %c0_i32 = arith.constant 0 : i32
    %11 = vector.broadcast %c0_i32 : i32 to vector<8x128xi32>
    %12 = arith.cmpi eq, %10, %11 : vector<8x128xi32>
    %13 = vector.shape_cast %6 : vector<1x128xf32> to vector<1x128xf32>
    %14 = vector.broadcast %13 : vector<1x128xf32> to vector<8x128xf32>
    %c1_i32 = arith.constant 1 : i32
    %15 = vector.broadcast %c1_i32 : i32 to vector<8x128xi32>
    %16 = arith.cmpi eq, %10, %15 : vector<8x128xi32>
    %17 = vector.shape_cast %9 : vector<1x128xf32> to vector<1x128xf32>
    %18 = vector.broadcast %17 : vector<1x128xf32> to vector<8x128xf32>
    %cst_7 = arith.constant 0.000000e+00 : f32
    %19 = vector.broadcast %cst_7 : f32 to vector<8x128xf32>
    %20 = arith.select %16, %18, %19 : vector<8x128xi1>, vector<8x128xf32>
    %21 = arith.select %12, %14, %20 : vector<8x128xi1>, vector<8x128xf32>
    %c0_8 = arith.constant 0 : index
    %c0_9 = arith.constant 0 : index
    %c0_10 = arith.constant 0 : index
    %22 = vector.load %arg4[%c0_8, %c0_9, %c0_10] : memref<1x8x128xf32, #tpu.memory_space<vmem>>, vector<1x8x128xf32>
    %23 = vector.shape_cast %22 : vector<1x8x128xf32> to vector<8x128xf32>
    %24 = vector.shape_cast %21 : vector<8x128xf32> to vector<1x8x128xf32>
    tpu.vector_store %arg4[%c0_8, %c0_9, %c0_10], %24 {strides = array<i32>} : memref<1x8x128xf32, #tpu.memory_space<vmem>>, vector<1x8x128xf32>,
    return
  }
  func.func @transform_0(%arg0: i32) -> (i32, i32) {
    %c0_i32 = arith.constant 0 : i32
    %c0_i32_0 = arith.constant 0 : i32
    return %arg0, %c0_i32 : i32, i32
  }
  func.func @transform_1(%arg0: i32) -> (i32, i32) {
    %c0_i32 = arith.constant 0 : i32
    %c0_i32_0 = arith.constant 0 : i32
    %c0_i32_1 = arith.constant 0 : i32
    return %c0_i32, %c0_i32_0 : i32, i32
  }
  func.func @transform_2(%arg0: i32) -> (i32, i32) {
    %c0_i32 = arith.constant 0 : i32
    %c0_i32_0 = arith.constant 0 : i32
    return %arg0, %c0_i32 : i32, i32
  }
  func.func @transform_3(%arg0: i32) -> (i32, i32, i32) {
    %c0_i32 = arith.constant 0 : i32
    %c0_i32_0 = arith.constant 0 : i32
    %c0_i32_1 = arith.constant 0 : i32
    return %arg0, %c0_i32, %c0_i32_0 : i32, i32, i32
  }
}

module attributes {stable_mosaic.version = 11 : i64} {
  func.func @_affine_relu_kernel(%arg0: i32, %arg1: memref<512x128xbf16, #tpu.memory_space<vmem>>, %arg2: memref<1x128xf32, #tpu.memory_space<vmem>>, %arg3: memref<1x128xf32, #tpu.memory_space<vmem>>, %arg4: memref<512x128xbf16, #tpu.memory_space<vmem>>) attributes {dimension_semantics = [#tpu.dimension_semantics<parallel>], iteration_bounds = array<i64: 1>, scalar_prefetch = 0 : i64, scratch_operands = 0 : i64, tpu.core_type = #tpu.core_type<tc>, window_params = [{transform_indices = @transform_0, window_bounds = array<i64: 512, 128>}, {pipeline_mode = #tpu.pipeline_mode<synchronous>, transform_indices = @transform_1, window_bounds = array<i64: 1, 128>}, {pipeline_mode = #tpu.pipeline_mode<synchronous>, transform_indices = @transform_2, window_bounds = array<i64: 1, 128>}, {transform_indices = @transform_3, window_bounds = array<i64: 512, 128>}]} {
    %c0 = arith.constant 0 : index
    %c0_0 = arith.constant 0 : index
    %0 = vector.load %arg1[%c0, %c0_0] : memref<512x128xbf16, #tpu.memory_space<vmem>>, vector<512x128xbf16>
    %1 = arith.extf %0 : vector<512x128xbf16> to vector<512x128xf32>
    %c0_1 = arith.constant 0 : index
    %c0_2 = arith.constant 0 : index
    %2 = vector.load %arg2[%c0_1, %c0_2] : memref<1x128xf32, #tpu.memory_space<vmem>>, vector<1x128xf32>
    %3 = vector.broadcast %2 : vector<1x128xf32> to vector<512x128xf32>
    %4 = arith.mulf %1, %3 : vector<512x128xf32>
    %c0_3 = arith.constant 0 : index
    %c0_4 = arith.constant 0 : index
    %5 = vector.load %arg3[%c0_3, %c0_4] : memref<1x128xf32, #tpu.memory_space<vmem>>, vector<1x128xf32>
    %6 = vector.broadcast %5 : vector<1x128xf32> to vector<512x128xf32>
    %7 = arith.addf %4, %6 : vector<512x128xf32>
    %cst = arith.constant 0.000000e+00 : f32
    %8 = vector.broadcast %cst : f32 to vector<512x128xf32>
    %9 = arith.maximumf %7, %8 : vector<512x128xf32>
    %10 = tpu.iota {dimensions = array<i32: 0>} : vector<512x128xi32>
    %c512_i32 = arith.constant 512 : i32
    %11 = arith.muli %arg0, %c512_i32 : i32
    %12 = vector.broadcast %11 : i32 to vector<512x128xi32>
    %13 = arith.addi %10, %12 : vector<512x128xi32>
    %c512_i32_5 = arith.constant 512 : i32
    %14 = vector.broadcast %c512_i32_5 : i32 to vector<512x128xi32>
    %15 = arith.cmpi slt, %13, %14 : vector<512x128xi32>
    %cst_6 = arith.constant 0.000000e+00 : f32
    %16 = vector.broadcast %cst_6 : f32 to vector<512x128xf32>
    %17 = arith.select %15, %9, %16 : vector<512x128xi1>, vector<512x128xf32>
    %18 = arith.truncf %17 : vector<512x128xf32> to vector<512x128xbf16>
    %c0_7 = arith.constant 0 : index
    %c0_8 = arith.constant 0 : index
    %19 = vector.load %arg4[%c0_7, %c0_8] : memref<512x128xbf16, #tpu.memory_space<vmem>>, vector<512x128xbf16>
    tpu.vector_store %arg4[%c0_7, %c0_8], %18 {strides = array<i32>} : memref<512x128xbf16, #tpu.memory_space<vmem>>, vector<512x128xbf16>,
    return
  }
  func.func @transform_0(%arg0: i32) -> (i32, i32) {
    %c0_i32 = arith.constant 0 : i32
    %c0_i32_0 = arith.constant 0 : i32
    return %arg0, %c0_i32 : i32, i32
  }
  func.func @transform_1(%arg0: i32) -> (i32, i32) {
    %c0_i32 = arith.constant 0 : i32
    %c0_i32_0 = arith.constant 0 : i32
    %c0_i32_1 = arith.constant 0 : i32
    return %c0_i32, %c0_i32_0 : i32, i32
  }
  func.func @transform_2(%arg0: i32) -> (i32, i32) {
    %c0_i32 = arith.constant 0 : i32
    %c0_i32_0 = arith.constant 0 : i32
    %c0_i32_1 = arith.constant 0 : i32
    return %c0_i32, %c0_i32_0 : i32, i32
  }
  func.func @transform_3(%arg0: i32) -> (i32, i32) {
    %c0_i32 = arith.constant 0 : i32
    %c0_i32_0 = arith.constant 0 : i32
    return %arg0, %c0_i32 : i32, i32
  }
}

module attributes {stable_mosaic.version = 11 : i64} {
  func.func @_conv3x3_stats_kernel(%arg0: i32, %arg1: i32, %arg2: memref<1x4x9x9x128xbf16, #tpu.memory_space<vmem>>, %arg3: memref<9x128x128xbf16, #tpu.memory_space<vmem>>, %arg4: memref<1x8x8x128xbf16, #tpu.memory_space<vmem>>, %arg5: memref<1x1x8x128xf32, #tpu.memory_space<vmem>>) attributes {dimension_semantics = [#tpu.dimension_semantics<parallel>, #tpu.dimension_semantics<arbitrary>], iteration_bounds = array<i64: 2, 1>, scalar_prefetch = 0 : i64, scratch_operands = 0 : i64, tpu.core_type = #tpu.core_type<tc>, window_params = [{transform_indices = @transform_0, window_bounds = array<i64: 1, 4, 9, 9, 128>}, {pipeline_mode = #tpu.pipeline_mode<synchronous>, transform_indices = @transform_1, window_bounds = array<i64: 9, 128, 128>}, {transform_indices = @transform_2, window_bounds = array<i64: 1, 8, 8, 128>}, {transform_indices = @transform_3, window_bounds = array<i64: 1, 1, 8, 128>}]} {
    %cst = arith.constant 0.000000e+00 : f32
    %0 = vector.broadcast %cst : f32 to vector<64x128xf32>
    %c8_i32 = arith.constant 8 : i32
    %1 = arith.muli %arg1, %c8_i32 : i32
    %c0_i32 = arith.constant 0 : i32
    %2 = arith.addi %1, %c0_i32 : i32
    %c0 = arith.constant 0 : index
    %c0_0 = arith.constant 0 : index
    %3 = arith.index_cast %2 : i32 to index
    %c0_1 = arith.constant 0 : index
    %c0_2 = arith.constant 0 : index
    %4 = vector.load %arg2[%c0, %c0_0, %3, %c0_1, %c0_2] : memref<1x4x9x9x128xbf16, #tpu.memory_space<vmem>>, vector<1x1x8x8x128xbf16>
    %5 = vector.shape_cast %4 : vector<1x1x8x8x128xbf16> to vector<8x8x128xbf16>
    %6 = vector.shape_cast %5 : vector<8x8x128xbf16> to vector<64x128xbf16>
    %c0_3 = arith.constant 0 : index
    %c0_4 = arith.constant 0 : index
    %c0_5 = arith.constant 0 : index
    %7 = vector.load %arg3[%c0_3, %c0_4, %c0_5] : memref<9x128x128xbf16, #tpu.memory_space<vmem>>, vector<1x128x128xbf16>
    %8 = vector.shape_cast %7 : vector<1x128x128xbf16> to vector<128x128xbf16>
    %cst_6 = arith.constant dense<0.000000e+00> : vector<64x128xf32>
    %9 = tpu.matmul %6, %8, %cst_6 {dimension_numbers = #tpu.dot_dimension_numbers<[1], [0], [0], [1], [0, 0, 1, 1], [], []>} : vector<64x128xbf16>, vector<128x128xbf16>, vector<64x128xf32> -> vector<64x128xf32>
    %10 = arith.addf %0, %9 : vector<64x128xf32>
    %c0_i32_7 = arith.constant 0 : i32
    %11 = arith.addi %1, %c0_i32_7 : i32
    %c0_8 = arith.constant 0 : index
    %c1 = arith.constant 1 : index
    %12 = arith.index_cast %11 : i32 to index
    %c0_9 = arith.constant 0 : index
    %c0_10 = arith.constant 0 : index
    %13 = vector.load %arg2[%c0_8, %c1, %12, %c0_9, %c0_10] : memref<1x4x9x9x128xbf16, #tpu.memory_space<vmem>>, vector<1x1x8x8x128xbf16>
    %14 = vector.shape_cast %13 : vector<1x1x8x8x128xbf16> to vector<8x8x128xbf16>
    %15 = vector.shape_cast %14 : vector<8x8x128xbf16> to vector<64x128xbf16>
    %c1_11 = arith.constant 1 : index
    %c0_12 = arith.constant 0 : index
    %c0_13 = arith.constant 0 : index
    %16 = vector.load %arg3[%c1_11, %c0_12, %c0_13] : memref<9x128x128xbf16, #tpu.memory_space<vmem>>, vector<1x128x128xbf16>
    %17 = vector.shape_cast %16 : vector<1x128x128xbf16> to vector<128x128xbf16>
    %cst_14 = arith.constant dense<0.000000e+00> : vector<64x128xf32>
    %18 = tpu.matmul %15, %17, %cst_14 {dimension_numbers = #tpu.dot_dimension_numbers<[1], [0], [0], [1], [0, 0, 1, 1], [], []>} : vector<64x128xbf16>, vector<128x128xbf16>, vector<64x128xf32> -> vector<64x128xf32>
    %19 = arith.addf %10, %18 : vector<64x128xf32>
    %c0_i32_15 = arith.constant 0 : i32
    %20 = arith.addi %1, %c0_i32_15 : i32
    %c0_16 = arith.constant 0 : index
    %c0_17 = arith.constant 0 : index
    %21 = arith.index_cast %20 : i32 to index
    %c1_18 = arith.constant 1 : index
    %c0_19 = arith.constant 0 : index
    %22 = vector.load %arg2[%c0_16, %c0_17, %21, %c1_18, %c0_19] : memref<1x4x9x9x128xbf16, #tpu.memory_space<vmem>>, vector<1x1x8x8x128xbf16>
    %23 = vector.shape_cast %22 : vector<1x1x8x8x128xbf16> to vector<8x8x128xbf16>
    %24 = vector.shape_cast %23 : vector<8x8x128xbf16> to vector<64x128xbf16>
    %c2 = arith.constant 2 : index
    %c0_20 = arith.constant 0 : index
    %c0_21 = arith.constant 0 : index
    %25 = vector.load %arg3[%c2, %c0_20, %c0_21] : memref<9x128x128xbf16, #tpu.memory_space<vmem>>, vector<1x128x128xbf16>
    %26 = vector.shape_cast %25 : vector<1x128x128xbf16> to vector<128x128xbf16>
    %cst_22 = arith.constant dense<0.000000e+00> : vector<64x128xf32>
    %27 = tpu.matmul %24, %26, %cst_22 {dimension_numbers = #tpu.dot_dimension_numbers<[1], [0], [0], [1], [0, 0, 1, 1], [], []>} : vector<64x128xbf16>, vector<128x128xbf16>, vector<64x128xf32> -> vector<64x128xf32>
    %28 = arith.addf %19, %27 : vector<64x128xf32>
    %c0_i32_23 = arith.constant 0 : i32
    %29 = arith.addi %1, %c0_i32_23 : i32
    %c0_24 = arith.constant 0 : index
    %c2_25 = arith.constant 2 : index
    %30 = arith.index_cast %29 : i32 to index
    %c0_26 = arith.constant 0 : index
    %c0_27 = arith.constant 0 : index
    %31 = vector.load %arg2[%c0_24, %c2_25, %30, %c0_26, %c0_27] : memref<1x4x9x9x128xbf16, #tpu.memory_space<vmem>>, vector<1x1x8x8x128xbf16>
    %32 = vector.shape_cast %31 : vector<1x1x8x8x128xbf16> to vector<8x8x128xbf16>
    %33 = vector.shape_cast %32 : vector<8x8x128xbf16> to vector<64x128xbf16>
    %c3 = arith.constant 3 : index
    %c0_28 = arith.constant 0 : index
    %c0_29 = arith.constant 0 : index
    %34 = vector.load %arg3[%c3, %c0_28, %c0_29] : memref<9x128x128xbf16, #tpu.memory_space<vmem>>, vector<1x128x128xbf16>
    %35 = vector.shape_cast %34 : vector<1x128x128xbf16> to vector<128x128xbf16>
    %cst_30 = arith.constant dense<0.000000e+00> : vector<64x128xf32>
    %36 = tpu.matmul %33, %35, %cst_30 {dimension_numbers = #tpu.dot_dimension_numbers<[1], [0], [0], [1], [0, 0, 1, 1], [], []>} : vector<64x128xbf16>, vector<128x128xbf16>, vector<64x128xf32> -> vector<64x128xf32>
    %37 = arith.addf %28, %36 : vector<64x128xf32>
    %c0_i32_31 = arith.constant 0 : i32
    %38 = arith.addi %1, %c0_i32_31 : i32
    %c0_32 = arith.constant 0 : index
    %c3_33 = arith.constant 3 : index
    %39 = arith.index_cast %38 : i32 to index
    %c0_34 = arith.constant 0 : index
    %c0_35 = arith.constant 0 : index
    %40 = vector.load %arg2[%c0_32, %c3_33, %39, %c0_34, %c0_35] : memref<1x4x9x9x128xbf16, #tpu.memory_space<vmem>>, vector<1x1x8x8x128xbf16>
    %41 = vector.shape_cast %40 : vector<1x1x8x8x128xbf16> to vector<8x8x128xbf16>
    %42 = vector.shape_cast %41 : vector<8x8x128xbf16> to vector<64x128xbf16>
    %c4 = arith.constant 4 : index
    %c0_36 = arith.constant 0 : index
    %c0_37 = arith.constant 0 : index
    %43 = vector.load %arg3[%c4, %c0_36, %c0_37] : memref<9x128x128xbf16, #tpu.memory_space<vmem>>, vector<1x128x128xbf16>
    %44 = vector.shape_cast %43 : vector<1x128x128xbf16> to vector<128x128xbf16>
    %cst_38 = arith.constant dense<0.000000e+00> : vector<64x128xf32>
    %45 = tpu.matmul %42, %44, %cst_38 {dimension_numbers = #tpu.dot_dimension_numbers<[1], [0], [0], [1], [0, 0, 1, 1], [], []>} : vector<64x128xbf16>, vector<128x128xbf16>, vector<64x128xf32> -> vector<64x128xf32>
    %46 = arith.addf %37, %45 : vector<64x128xf32>
    %c0_i32_39 = arith.constant 0 : i32
    %47 = arith.addi %1, %c0_i32_39 : i32
    %c0_40 = arith.constant 0 : index
    %c2_41 = arith.constant 2 : index
    %48 = arith.index_cast %47 : i32 to index
    %c1_42 = arith.constant 1 : index
    %c0_43 = arith.constant 0 : index
    %49 = vector.load %arg2[%c0_40, %c2_41, %48, %c1_42, %c0_43] : memref<1x4x9x9x128xbf16, #tpu.memory_space<vmem>>, vector<1x1x8x8x128xbf16>
    %50 = vector.shape_cast %49 : vector<1x1x8x8x128xbf16> to vector<8x8x128xbf16>
    %51 = vector.shape_cast %50 : vector<8x8x128xbf16> to vector<64x128xbf16>
    %c5 = arith.constant 5 : index
    %c0_44 = arith.constant 0 : index
    %c0_45 = arith.constant 0 : index
    %52 = vector.load %arg3[%c5, %c0_44, %c0_45] : memref<9x128x128xbf16, #tpu.memory_space<vmem>>, vector<1x128x128xbf16>
    %53 = vector.shape_cast %52 : vector<1x128x128xbf16> to vector<128x128xbf16>
    %cst_46 = arith.constant dense<0.000000e+00> : vector<64x128xf32>
    %54 = tpu.matmul %51, %53, %cst_46 {dimension_numbers = #tpu.dot_dimension_numbers<[1], [0], [0], [1], [0, 0, 1, 1], [], []>} : vector<64x128xbf16>, vector<128x128xbf16>, vector<64x128xf32> -> vector<64x128xf32>
    %55 = arith.addf %46, %54 : vector<64x128xf32>
    %c1_i32 = arith.constant 1 : i32
    %56 = arith.addi %1, %c1_i32 : i32
    %c0_47 = arith.constant 0 : index
    %c0_48 = arith.constant 0 : index
    %57 = arith.index_cast %56 : i32 to index
    %c0_49 = arith.constant 0 : index
    %c0_50 = arith.constant 0 : index
    %58 = vector.load %arg2[%c0_47, %c0_48, %57, %c0_49, %c0_50] : memref<1x4x9x9x128xbf16, #tpu.memory_space<vmem>>, vector<1x1x8x8x128xbf16>
    %59 = vector.shape_cast %58 : vector<1x1x8x8x128xbf16> to vector<8x8x128xbf16>
    %60 = vector.shape_cast %59 : vector<8x8x128xbf16> to vector<64x128xbf16>
    %c6 = arith.constant 6 : index
    %c0_51 = arith.constant 0 : index
    %c0_52 = arith.constant 0 : index
    %61 = vector.load %arg3[%c6, %c0_51, %c0_52] : memref<9x128x128xbf16, #tpu.memory_space<vmem>>, vector<1x128x128xbf16>
    %62 = vector.shape_cast %61 : vector<1x128x128xbf16> to vector<128x128xbf16>
    %cst_53 = arith.constant dense<0.000000e+00> : vector<64x128xf32>
    %63 = tpu.matmul %60, %62, %cst_53 {dimension_numbers = #tpu.dot_dimension_numbers<[1], [0], [0], [1], [0, 0, 1, 1], [], []>} : vector<64x128xbf16>, vector<128x128xbf16>, vector<64x128xf32> -> vector<64x128xf32>
    %64 = arith.addf %55, %63 : vector<64x128xf32>
    %c1_i32_54 = arith.constant 1 : i32
    %65 = arith.addi %1, %c1_i32_54 : i32
    %c0_55 = arith.constant 0 : index
    %c1_56 = arith.constant 1 : index
    %66 = arith.index_cast %65 : i32 to index
    %c0_57 = arith.constant 0 : index
    %c0_58 = arith.constant 0 : index
    %67 = vector.load %arg2[%c0_55, %c1_56, %66, %c0_57, %c0_58] : memref<1x4x9x9x128xbf16, #tpu.memory_space<vmem>>, vector<1x1x8x8x128xbf16>
    %68 = vector.shape_cast %67 : vector<1x1x8x8x128xbf16> to vector<8x8x128xbf16>
    %69 = vector.shape_cast %68 : vector<8x8x128xbf16> to vector<64x128xbf16>
    %c7 = arith.constant 7 : index
    %c0_59 = arith.constant 0 : index
    %c0_60 = arith.constant 0 : index
    %70 = vector.load %arg3[%c7, %c0_59, %c0_60] : memref<9x128x128xbf16, #tpu.memory_space<vmem>>, vector<1x128x128xbf16>
    %71 = vector.shape_cast %70 : vector<1x128x128xbf16> to vector<128x128xbf16>
    %cst_61 = arith.constant dense<0.000000e+00> : vector<64x128xf32>
    %72 = tpu.matmul %69, %71, %cst_61 {dimension_numbers = #tpu.dot_dimension_numbers<[1], [0], [0], [1], [0, 0, 1, 1], [], []>} : vector<64x128xbf16>, vector<128x128xbf16>, vector<64x128xf32> -> vector<64x128xf32>
    %73 = arith.addf %64, %72 : vector<64x128xf32>
    %c1_i32_62 = arith.constant 1 : i32
    %74 = arith.addi %1, %c1_i32_62 : i32
    %c0_63 = arith.constant 0 : index
    %c0_64 = arith.constant 0 : index
    %75 = arith.index_cast %74 : i32 to index
    %c1_65 = arith.constant 1 : index
    %c0_66 = arith.constant 0 : index
    %76 = vector.load %arg2[%c0_63, %c0_64, %75, %c1_65, %c0_66] : memref<1x4x9x9x128xbf16, #tpu.memory_space<vmem>>, vector<1x1x8x8x128xbf16>
    %77 = vector.shape_cast %76 : vector<1x1x8x8x128xbf16> to vector<8x8x128xbf16>
    %78 = vector.shape_cast %77 : vector<8x8x128xbf16> to vector<64x128xbf16>
    %c8 = arith.constant 8 : index
    %c0_67 = arith.constant 0 : index
    %c0_68 = arith.constant 0 : index
    %79 = vector.load %arg3[%c8, %c0_67, %c0_68] : memref<9x128x128xbf16, #tpu.memory_space<vmem>>, vector<1x128x128xbf16>
    %80 = vector.shape_cast %79 : vector<1x128x128xbf16> to vector<128x128xbf16>
    %cst_69 = arith.constant dense<0.000000e+00> : vector<64x128xf32>
    %81 = tpu.matmul %78, %80, %cst_69 {dimension_numbers = #tpu.dot_dimension_numbers<[1], [0], [0], [1], [0, 0, 1, 1], [], []>} : vector<64x128xbf16>, vector<128x128xbf16>, vector<64x128xf32> -> vector<64x128xf32>
    %82 = arith.addf %73, %81 : vector<64x128xf32>
    %83 = vector.shape_cast %82 : vector<64x128xf32> to vector<8x8x128xf32>
    %84 = arith.truncf %83 : vector<8x8x128xf32> to vector<8x8x128xbf16>
    %c0_70 = arith.constant 0 : index
    %c0_71 = arith.constant 0 : index
    %c0_72 = arith.constant 0 : index
    %c0_73 = arith.constant 0 : index
    %85 = vector.load %arg4[%c0_70, %c0_71, %c0_72, %c0_73] : memref<1x8x8x128xbf16, #tpu.memory_space<vmem>>, vector<1x8x8x128xbf16>
    %86 = vector.shape_cast %85 : vector<1x8x8x128xbf16> to vector<8x8x128xbf16>
    %87 = vector.shape_cast %84 : vector<8x8x128xbf16> to vector<1x8x8x128xbf16>
    tpu.vector_store %arg4[%c0_70, %c0_71, %c0_72, %c0_73], %87 {strides = array<i32>} : memref<1x8x8x128xbf16, #tpu.memory_space<vmem>>, vector<1x8x8x128xbf16>,
    %cst_74 = arith.constant dense<0.000000e+00> : vector<128xf32>
    %88 = vector.multi_reduction <add>, %82, %cst_74 [0] : vector<64x128xf32> to vector<128xf32>
    %89 = vector.shape_cast %88 : vector<128xf32> to vector<1x128xf32>
    %90 = arith.mulf %82, %82 : vector<64x128xf32>
    %cst_75 = arith.constant dense<0.000000e+00> : vector<128xf32>
    %91 = vector.multi_reduction <add>, %90, %cst_75 [0] : vector<64x128xf32> to vector<128xf32>
    %92 = vector.shape_cast %91 : vector<128xf32> to vector<1x128xf32>
    %93 = tpu.iota {dimensions = array<i32: 0>} : vector<8x128xi32>
    %c0_i32_76 = arith.constant 0 : i32
    %94 = vector.broadcast %c0_i32_76 : i32 to vector<8x128xi32>
    %95 = arith.cmpi eq, %93, %94 : vector<8x128xi32>
    %96 = vector.shape_cast %89 : vector<1x128xf32> to vector<1x128xf32>
    %97 = vector.broadcast %96 : vector<1x128xf32> to vector<8x128xf32>
    %c1_i32_77 = arith.constant 1 : i32
    %98 = vector.broadcast %c1_i32_77 : i32 to vector<8x128xi32>
    %99 = arith.cmpi eq, %93, %98 : vector<8x128xi32>
    %100 = vector.shape_cast %92 : vector<1x128xf32> to vector<1x128xf32>
    %101 = vector.broadcast %100 : vector<1x128xf32> to vector<8x128xf32>
    %cst_78 = arith.constant 0.000000e+00 : f32
    %102 = vector.broadcast %cst_78 : f32 to vector<8x128xf32>
    %103 = arith.select %99, %101, %102 : vector<8x128xi1>, vector<8x128xf32>
    %104 = arith.select %95, %97, %103 : vector<8x128xi1>, vector<8x128xf32>
    %c0_79 = arith.constant 0 : index
    %c0_80 = arith.constant 0 : index
    %c0_81 = arith.constant 0 : index
    %c0_82 = arith.constant 0 : index
    %105 = vector.load %arg5[%c0_79, %c0_80, %c0_81, %c0_82] : memref<1x1x8x128xf32, #tpu.memory_space<vmem>>, vector<1x1x8x128xf32>
    %106 = vector.shape_cast %105 : vector<1x1x8x128xf32> to vector<8x128xf32>
    %107 = vector.shape_cast %104 : vector<8x128xf32> to vector<1x1x8x128xf32>
    tpu.vector_store %arg5[%c0_79, %c0_80, %c0_81, %c0_82], %107 {strides = array<i32>} : memref<1x1x8x128xf32, #tpu.memory_space<vmem>>, vector<1x1x8x128xf32>,
    return
  }
  func.func @transform_0(%arg0: i32, %arg1: i32) -> (i32, i32, i32, i32, i32) {
    %c0_i32 = arith.constant 0 : i32
    %c0_i32_0 = arith.constant 0 : i32
    %c0_i32_1 = arith.constant 0 : i32
    %c0_i32_2 = arith.constant 0 : i32
    %c0_i32_3 = arith.constant 0 : i32
    return %arg0, %c0_i32, %c0_i32_0, %c0_i32_1, %c0_i32_2 : i32, i32, i32, i32, i32
  }
  func.func @transform_1(%arg0: i32, %arg1: i32) -> (i32, i32, i32) {
    %c0_i32 = arith.constant 0 : i32
    %c0_i32_0 = arith.constant 0 : i32
    %c0_i32_1 = arith.constant 0 : i32
    %c0_i32_2 = arith.constant 0 : i32
    return %c0_i32, %c0_i32_0, %c0_i32_1 : i32, i32, i32
  }
  func.func @transform_2(%arg0: i32, %arg1: i32) -> (i32, i32, i32, i32) {
    %c0_i32 = arith.constant 0 : i32
    %c0_i32_0 = arith.constant 0 : i32
    %c0_i32_1 = arith.constant 0 : i32
    return %arg0, %arg1, %c0_i32, %c0_i32_0 : i32, i32, i32, i32
  }
  func.func @transform_3(%arg0: i32, %arg1: i32) -> (i32, i32, i32, i32) {
    %c0_i32 = arith.constant 0 : i32
    %c0_i32_0 = arith.constant 0 : i32
    %c0_i32_1 = arith.constant 0 : i32
    return %arg0, %arg1, %c0_i32, %c0_i32_0 : i32, i32, i32, i32
  }
}

module attributes {stable_mosaic.version = 11 : i64} {
  func.func @_affine_relu_matmul_stats_kernel(%arg0: i32, %arg1: memref<128x128xbf16, #tpu.memory_space<vmem>>, %arg2: memref<1x128xf32, #tpu.memory_space<vmem>>, %arg3: memref<1x128xf32, #tpu.memory_space<vmem>>, %arg4: memref<128x128xbf16, #tpu.memory_space<vmem>>, %arg5: memref<128x128xbf16, #tpu.memory_space<vmem>>, %arg6: memref<1x8x128xf32, #tpu.memory_space<vmem>>) attributes {dimension_semantics = [#tpu.dimension_semantics<parallel>], iteration_bounds = array<i64: 1>, scalar_prefetch = 0 : i64, scratch_operands = 0 : i64, tpu.core_type = #tpu.core_type<tc>, window_params = [{transform_indices = @transform_0, window_bounds = array<i64: 128, 128>}, {pipeline_mode = #tpu.pipeline_mode<synchronous>, transform_indices = @transform_1, window_bounds = array<i64: 1, 128>}, {pipeline_mode = #tpu.pipeline_mode<synchronous>, transform_indices = @transform_2, window_bounds = array<i64: 1, 128>}, {pipeline_mode = #tpu.pipeline_mode<synchronous>, transform_indices = @transform_3, window_bounds = array<i64: 128, 128>}, {transform_indices = @transform_4, window_bounds = array<i64: 128, 128>}, {transform_indices = @transform_5, window_bounds = array<i64: 1, 8, 128>}]} {
    %c0 = arith.constant 0 : index
    %c0_0 = arith.constant 0 : index
    %0 = vector.load %arg1[%c0, %c0_0] : memref<128x128xbf16, #tpu.memory_space<vmem>>, vector<128x128xbf16>
    %1 = arith.extf %0 : vector<128x128xbf16> to vector<128x128xf32>
    %c0_1 = arith.constant 0 : index
    %c0_2 = arith.constant 0 : index
    %2 = vector.load %arg2[%c0_1, %c0_2] : memref<1x128xf32, #tpu.memory_space<vmem>>, vector<1x128xf32>
    %3 = vector.broadcast %2 : vector<1x128xf32> to vector<128x128xf32>
    %4 = arith.mulf %1, %3 : vector<128x128xf32>
    %c0_3 = arith.constant 0 : index
    %c0_4 = arith.constant 0 : index
    %5 = vector.load %arg3[%c0_3, %c0_4] : memref<1x128xf32, #tpu.memory_space<vmem>>, vector<1x128xf32>
    %6 = vector.broadcast %5 : vector<1x128xf32> to vector<128x128xf32>
    %7 = arith.addf %4, %6 : vector<128x128xf32>
    %cst = arith.constant 0.000000e+00 : f32
    %8 = vector.broadcast %cst : f32 to vector<128x128xf32>
    %9 = arith.maximumf %7, %8 : vector<128x128xf32>
    %10 = tpu.iota {dimensions = array<i32: 0>} : vector<128x128xi32>
    %c128_i32 = arith.constant 128 : i32
    %11 = arith.muli %arg0, %c128_i32 : i32
    %12 = vector.broadcast %11 : i32 to vector<128x128xi32>
    %13 = arith.addi %10, %12 : vector<128x128xi32>
    %c128_i32_5 = arith.constant 128 : i32
    %14 = vector.broadcast %c128_i32_5 : i32 to vector<128x128xi32>
    %15 = arith.cmpi slt, %13, %14 : vector<128x128xi32>
    %cst_6 = arith.constant 0.000000e+00 : f32
    %16 = vector.broadcast %cst_6 : f32 to vector<128x128xf32>
    %17 = arith.select %15, %9, %16 : vector<128x128xi1>, vector<128x128xf32>
    %18 = arith.truncf %17 : vector<128x128xf32> to vector<128x128xbf16>
    %c0_7 = arith.constant 0 : index
    %c0_8 = arith.constant 0 : index
    %19 = vector.load %arg4[%c0_7, %c0_8] : memref<128x128xbf16, #tpu.memory_space<vmem>>, vector<128x128xbf16>
    %cst_9 = arith.constant dense<0.000000e+00> : vector<128x128xf32>
    %20 = tpu.matmul %18, %19, %cst_9 {dimension_numbers = #tpu.dot_dimension_numbers<[1], [0], [0], [1], [0, 0, 1, 1], [], []>} : vector<128x128xbf16>, vector<128x128xbf16>, vector<128x128xf32> -> vector<128x128xf32>
    %21 = arith.truncf %20 : vector<128x128xf32> to vector<128x128xbf16>
    %c0_10 = arith.constant 0 : index
    %c0_11 = arith.constant 0 : index
    %22 = vector.load %arg5[%c0_10, %c0_11] : memref<128x128xbf16, #tpu.memory_space<vmem>>, vector<128x128xbf16>
    tpu.vector_store %arg5[%c0_10, %c0_11], %21 {strides = array<i32>} : memref<128x128xbf16, #tpu.memory_space<vmem>>, vector<128x128xbf16>,
    %cst_12 = arith.constant dense<0.000000e+00> : vector<128xf32>
    %23 = vector.multi_reduction <add>, %20, %cst_12 [0] : vector<128x128xf32> to vector<128xf32>
    %24 = vector.shape_cast %23 : vector<128xf32> to vector<1x128xf32>
    %25 = arith.mulf %20, %20 : vector<128x128xf32>
    %cst_13 = arith.constant dense<0.000000e+00> : vector<128xf32>
    %26 = vector.multi_reduction <add>, %25, %cst_13 [0] : vector<128x128xf32> to vector<128xf32>
    %27 = vector.shape_cast %26 : vector<128xf32> to vector<1x128xf32>
    %28 = tpu.iota {dimensions = array<i32: 0>} : vector<8x128xi32>
    %c0_i32 = arith.constant 0 : i32
    %29 = vector.broadcast %c0_i32 : i32 to vector<8x128xi32>
    %30 = arith.cmpi eq, %28, %29 : vector<8x128xi32>
    %31 = vector.shape_cast %24 : vector<1x128xf32> to vector<1x128xf32>
    %32 = vector.broadcast %31 : vector<1x128xf32> to vector<8x128xf32>
    %c1_i32 = arith.constant 1 : i32
    %33 = vector.broadcast %c1_i32 : i32 to vector<8x128xi32>
    %34 = arith.cmpi eq, %28, %33 : vector<8x128xi32>
    %35 = vector.shape_cast %27 : vector<1x128xf32> to vector<1x128xf32>
    %36 = vector.broadcast %35 : vector<1x128xf32> to vector<8x128xf32>
    %cst_14 = arith.constant 0.000000e+00 : f32
    %37 = vector.broadcast %cst_14 : f32 to vector<8x128xf32>
    %38 = arith.select %34, %36, %37 : vector<8x128xi1>, vector<8x128xf32>
    %39 = arith.select %30, %32, %38 : vector<8x128xi1>, vector<8x128xf32>
    %c0_15 = arith.constant 0 : index
    %c0_16 = arith.constant 0 : index
    %c0_17 = arith.constant 0 : index
    %40 = vector.load %arg6[%c0_15, %c0_16, %c0_17] : memref<1x8x128xf32, #tpu.memory_space<vmem>>, vector<1x8x128xf32>
    %41 = vector.shape_cast %40 : vector<1x8x128xf32> to vector<8x128xf32>
    %42 = vector.shape_cast %39 : vector<8x128xf32> to vector<1x8x128xf32>
    tpu.vector_store %arg6[%c0_15, %c0_16, %c0_17], %42 {strides = array<i32>} : memref<1x8x128xf32, #tpu.memory_space<vmem>>, vector<1x8x128xf32>,
    return
  }
  func.func @transform_0(%arg0: i32) -> (i32, i32) {
    %c0_i32 = arith.constant 0 : i32
    %c0_i32_0 = arith.constant 0 : i32
    return %arg0, %c0_i32 : i32, i32
  }
  func.func @transform_1(%arg0: i32) -> (i32, i32) {
    %c0_i32 = arith.constant 0 : i32
    %c0_i32_0 = arith.constant 0 : i32
    %c0_i32_1 = arith.constant 0 : i32
    return %c0_i32, %c0_i32_0 : i32, i32
  }
  func.func @transform_2(%arg0: i32) -> (i32, i32) {
    %c0_i32 = arith.constant 0 : i32
    %c0_i32_0 = arith.constant 0 : i32
    %c0_i32_1 = arith.constant 0 : i32
    return %c0_i32, %c0_i32_0 : i32, i32
  }
  func.func @transform_3(%arg0: i32) -> (i32, i32) {
    %c0_i32 = arith.constant 0 : i32
    %c0_i32_0 = arith.constant 0 : i32
    %c0_i32_1 = arith.constant 0 : i32
    return %c0_i32, %c0_i32_0 : i32, i32
  }
  func.func @transform_4(%arg0: i32) -> (i32, i32) {
    %c0_i32 = arith.constant 0 : i32
    %c0_i32_0 = arith.constant 0 : i32
    return %arg0, %c0_i32 : i32, i32
  }
  func.func @transform_5(%arg0: i32) -> (i32, i32, i32) {
    %c0_i32 = arith.constant 0 : i32
    %c0_i32_0 = arith.constant 0 : i32
    %c0_i32_1 = arith.constant 0 : i32
    return %arg0, %c0_i32, %c0_i32_0 : i32, i32, i32
  }
}

module attributes {stable_mosaic.version = 11 : i64} {
  func.func @_matmul_stats_kernel(%arg0: i32, %arg1: memref<128x128xbf16, #tpu.memory_space<vmem>>, %arg2: memref<128x128xbf16, #tpu.memory_space<vmem>>, %arg3: memref<128x128xbf16, #tpu.memory_space<vmem>>, %arg4: memref<1x8x128xf32, #tpu.memory_space<vmem>>) attributes {dimension_semantics = [#tpu.dimension_semantics<parallel>], iteration_bounds = array<i64: 1>, scalar_prefetch = 0 : i64, scratch_operands = 0 : i64, tpu.core_type = #tpu.core_type<tc>, window_params = [{transform_indices = @transform_0, window_bounds = array<i64: 128, 128>}, {pipeline_mode = #tpu.pipeline_mode<synchronous>, transform_indices = @transform_1, window_bounds = array<i64: 128, 128>}, {transform_indices = @transform_2, window_bounds = array<i64: 128, 128>}, {transform_indices = @transform_3, window_bounds = array<i64: 1, 8, 128>}]} {
    %c0 = arith.constant 0 : index
    %c0_0 = arith.constant 0 : index
    %0 = vector.load %arg1[%c0, %c0_0] : memref<128x128xbf16, #tpu.memory_space<vmem>>, vector<128x128xbf16>
    %c0_1 = arith.constant 0 : index
    %c0_2 = arith.constant 0 : index
    %1 = vector.load %arg2[%c0_1, %c0_2] : memref<128x128xbf16, #tpu.memory_space<vmem>>, vector<128x128xbf16>
    %cst = arith.constant dense<0.000000e+00> : vector<128x128xf32>
    %2 = tpu.matmul %0, %1, %cst {dimension_numbers = #tpu.dot_dimension_numbers<[1], [0], [0], [1], [0, 0, 1, 1], [], []>} : vector<128x128xbf16>, vector<128x128xbf16>, vector<128x128xf32> -> vector<128x128xf32>
    %3 = arith.truncf %2 : vector<128x128xf32> to vector<128x128xbf16>
    %c0_3 = arith.constant 0 : index
    %c0_4 = arith.constant 0 : index
    %4 = vector.load %arg3[%c0_3, %c0_4] : memref<128x128xbf16, #tpu.memory_space<vmem>>, vector<128x128xbf16>
    tpu.vector_store %arg3[%c0_3, %c0_4], %3 {strides = array<i32>} : memref<128x128xbf16, #tpu.memory_space<vmem>>, vector<128x128xbf16>,
    %cst_5 = arith.constant dense<0.000000e+00> : vector<128xf32>
    %5 = vector.multi_reduction <add>, %2, %cst_5 [0] : vector<128x128xf32> to vector<128xf32>
    %6 = vector.shape_cast %5 : vector<128xf32> to vector<1x128xf32>
    %7 = arith.mulf %2, %2 : vector<128x128xf32>
    %cst_6 = arith.constant dense<0.000000e+00> : vector<128xf32>
    %8 = vector.multi_reduction <add>, %7, %cst_6 [0] : vector<128x128xf32> to vector<128xf32>
    %9 = vector.shape_cast %8 : vector<128xf32> to vector<1x128xf32>
    %10 = tpu.iota {dimensions = array<i32: 0>} : vector<8x128xi32>
    %c0_i32 = arith.constant 0 : i32
    %11 = vector.broadcast %c0_i32 : i32 to vector<8x128xi32>
    %12 = arith.cmpi eq, %10, %11 : vector<8x128xi32>
    %13 = vector.shape_cast %6 : vector<1x128xf32> to vector<1x128xf32>
    %14 = vector.broadcast %13 : vector<1x128xf32> to vector<8x128xf32>
    %c1_i32 = arith.constant 1 : i32
    %15 = vector.broadcast %c1_i32 : i32 to vector<8x128xi32>
    %16 = arith.cmpi eq, %10, %15 : vector<8x128xi32>
    %17 = vector.shape_cast %9 : vector<1x128xf32> to vector<1x128xf32>
    %18 = vector.broadcast %17 : vector<1x128xf32> to vector<8x128xf32>
    %cst_7 = arith.constant 0.000000e+00 : f32
    %19 = vector.broadcast %cst_7 : f32 to vector<8x128xf32>
    %20 = arith.select %16, %18, %19 : vector<8x128xi1>, vector<8x128xf32>
    %21 = arith.select %12, %14, %20 : vector<8x128xi1>, vector<8x128xf32>
    %c0_8 = arith.constant 0 : index
    %c0_9 = arith.constant 0 : index
    %c0_10 = arith.constant 0 : index
    %22 = vector.load %arg4[%c0_8, %c0_9, %c0_10] : memref<1x8x128xf32, #tpu.memory_space<vmem>>, vector<1x8x128xf32>
    %23 = vector.shape_cast %22 : vector<1x8x128xf32> to vector<8x128xf32>
    %24 = vector.shape_cast %21 : vector<8x128xf32> to vector<1x8x128xf32>
    tpu.vector_store %arg4[%c0_8, %c0_9, %c0_10], %24 {strides = array<i32>} : memref<1x8x128xf32, #tpu.memory_space<vmem>>, vector<1x8x128xf32>,
    return
  }
  func.func @transform_0(%arg0: i32) -> (i32, i32) {
    %c0_i32 = arith.constant 0 : i32
    %c0_i32_0 = arith.constant 0 : i32
    return %arg0, %c0_i32 : i32, i32
  }
  func.func @transform_1(%arg0: i32) -> (i32, i32) {
    %c0_i32 = arith.constant 0 : i32
    %c0_i32_0 = arith.constant 0 : i32
    %c0_i32_1 = arith.constant 0 : i32
    return %c0_i32, %c0_i32_0 : i32, i32
  }
  func.func @transform_2(%arg0: i32) -> (i32, i32) {
    %c0_i32 = arith.constant 0 : i32
    %c0_i32_0 = arith.constant 0 : i32
    return %arg0, %c0_i32 : i32, i32
  }
  func.func @transform_3(%arg0: i32) -> (i32, i32, i32) {
    %c0_i32 = arith.constant 0 : i32
    %c0_i32_0 = arith.constant 0 : i32
    %c0_i32_1 = arith.constant 0 : i32
    return %arg0, %c0_i32, %c0_i32_0 : i32, i32, i32
  }
}

module attributes {stable_mosaic.version = 11 : i64} {
  func.func @_bn_add_relu_kernel(%arg0: i32, %arg1: memref<128x128xbf16, #tpu.memory_space<vmem>>, %arg2: memref<1x128xf32, #tpu.memory_space<vmem>>, %arg3: memref<1x128xf32, #tpu.memory_space<vmem>>, %arg4: memref<128x128xbf16, #tpu.memory_space<vmem>>, %arg5: memref<1x128xf32, #tpu.memory_space<vmem>>, %arg6: memref<1x128xf32, #tpu.memory_space<vmem>>, %arg7: memref<128x128xf32, #tpu.memory_space<vmem>>) attributes {dimension_semantics = [#tpu.dimension_semantics<parallel>], iteration_bounds = array<i64: 1>, scalar_prefetch = 0 : i64, scratch_operands = 0 : i64, tpu.core_type = #tpu.core_type<tc>, window_params = [{transform_indices = @transform_0, window_bounds = array<i64: 128, 128>}, {pipeline_mode = #tpu.pipeline_mode<synchronous>, transform_indices = @transform_1, window_bounds = array<i64: 1, 128>}, {pipeline_mode = #tpu.pipeline_mode<synchronous>, transform_indices = @transform_2, window_bounds = array<i64: 1, 128>}, {transform_indices = @transform_3, window_bounds = array<i64: 128, 128>}, {pipeline_mode = #tpu.pipeline_mode<synchronous>, transform_indices = @transform_4, window_bounds = array<i64: 1, 128>}, {pipeline_mode = #tpu.pipeline_mode<synchronous>, transform_indices = @transform_5, window_bounds = array<i64: 1, 128>}, {transform_indices = @transform_6, window_bounds = array<i64: 128, 128>}]} {
    %c0 = arith.constant 0 : index
    %c0_0 = arith.constant 0 : index
    %0 = vector.load %arg1[%c0, %c0_0] : memref<128x128xbf16, #tpu.memory_space<vmem>>, vector<128x128xbf16>
    %1 = arith.extf %0 : vector<128x128xbf16> to vector<128x128xf32>
    %c0_1 = arith.constant 0 : index
    %c0_2 = arith.constant 0 : index
    %2 = vector.load %arg2[%c0_1, %c0_2] : memref<1x128xf32, #tpu.memory_space<vmem>>, vector<1x128xf32>
    %3 = vector.broadcast %2 : vector<1x128xf32> to vector<128x128xf32>
    %4 = arith.mulf %1, %3 : vector<128x128xf32>
    %c0_3 = arith.constant 0 : index
    %c0_4 = arith.constant 0 : index
    %5 = vector.load %arg3[%c0_3, %c0_4] : memref<1x128xf32, #tpu.memory_space<vmem>>, vector<1x128xf32>
    %6 = vector.broadcast %5 : vector<1x128xf32> to vector<128x128xf32>
    %7 = arith.addf %4, %6 : vector<128x128xf32>
    %c0_5 = arith.constant 0 : index
    %c0_6 = arith.constant 0 : index
    %8 = vector.load %arg4[%c0_5, %c0_6] : memref<128x128xbf16, #tpu.memory_space<vmem>>, vector<128x128xbf16>
    %9 = arith.extf %8 : vector<128x128xbf16> to vector<128x128xf32>
    %c0_7 = arith.constant 0 : index
    %c0_8 = arith.constant 0 : index
    %10 = vector.load %arg5[%c0_7, %c0_8] : memref<1x128xf32, #tpu.memory_space<vmem>>, vector<1x128xf32>
    %11 = vector.broadcast %10 : vector<1x128xf32> to vector<128x128xf32>
    %12 = arith.mulf %9, %11 : vector<128x128xf32>
    %c0_9 = arith.constant 0 : index
    %c0_10 = arith.constant 0 : index
    %13 = vector.load %arg6[%c0_9, %c0_10] : memref<1x128xf32, #tpu.memory_space<vmem>>, vector<1x128xf32>
    %14 = vector.broadcast %13 : vector<1x128xf32> to vector<128x128xf32>
    %15 = arith.addf %12, %14 : vector<128x128xf32>
    %16 = arith.addf %7, %15 : vector<128x128xf32>
    %cst = arith.constant 0.000000e+00 : f32
    %17 = vector.broadcast %cst : f32 to vector<128x128xf32>
    %18 = arith.maximumf %16, %17 : vector<128x128xf32>
    %c0_11 = arith.constant 0 : index
    %c0_12 = arith.constant 0 : index
    %19 = vector.load %arg7[%c0_11, %c0_12] : memref<128x128xf32, #tpu.memory_space<vmem>>, vector<128x128xf32>
    tpu.vector_store %arg7[%c0_11, %c0_12], %18 {strides = array<i32>} : memref<128x128xf32, #tpu.memory_space<vmem>>, vector<128x128xf32>,
    return
  }
  func.func @transform_0(%arg0: i32) -> (i32, i32) {
    %c0_i32 = arith.constant 0 : i32
    %c0_i32_0 = arith.constant 0 : i32
    return %arg0, %c0_i32 : i32, i32
  }
  func.func @transform_1(%arg0: i32) -> (i32, i32) {
    %c0_i32 = arith.constant 0 : i32
    %c0_i32_0 = arith.constant 0 : i32
    %c0_i32_1 = arith.constant 0 : i32
    return %c0_i32, %c0_i32_0 : i32, i32
  }
  func.func @transform_2(%arg0: i32) -> (i32, i32) {
    %c0_i32 = arith.constant 0 : i32
    %c0_i32_0 = arith.constant 0 : i32
    %c0_i32_1 = arith.constant 0 : i32
    return %c0_i32, %c0_i32_0 : i32, i32
  }
  func.func @transform_3(%arg0: i32) -> (i32, i32) {
    %c0_i32 = arith.constant 0 : i32
    %c0_i32_0 = arith.constant 0 : i32
    return %arg0, %c0_i32 : i32, i32
  }
  func.func @transform_4(%arg0: i32) -> (i32, i32) {
    %c0_i32 = arith.constant 0 : i32
    %c0_i32_0 = arith.constant 0 : i32
    %c0_i32_1 = arith.constant 0 : i32
    return %c0_i32, %c0_i32_0 : i32, i32
  }
  func.func @transform_5(%arg0: i32) -> (i32, i32) {
    %c0_i32 = arith.constant 0 : i32
    %c0_i32_0 = arith.constant 0 : i32
    %c0_i32_1 = arith.constant 0 : i32
    return %c0_i32, %c0_i32_0 : i32, i32
  }
  func.func @transform_6(%arg0: i32) -> (i32, i32) {
    %c0_i32 = arith.constant 0 : i32
    %c0_i32_0 = arith.constant 0 : i32
    return %arg0, %c0_i32 : i32, i32
  }
}

</mosaic_0001>

<llo_original>
// kernel: bottleneck_forward.7
$region0: #{bottleneck_forward.7}
  #allocation0 [shape = 'u32[]', space=smem, size = 0x4, offset = 0x4, fixed_abs, tag = 'smem constant byte address 0x4 - core index']
  #allocation1 [shape = 'u32[144,128]{1,0:T(1,128)}', space=vmem, size = 0x12000, scoped, tag = 'internal scratch']
  %s0 = inlined_call_operand.vmem [shape: bf16[512,128], index: 0, kind: input, shape index: {}]
  %s1 = inlined_call_operand.vmem [shape: f32[1,128], index: 1, kind: input, shape index: {}]
  %s2 = inlined_call_operand.vmem [shape: f32[1,128], index: 2, kind: input, shape index: {}]
  %s3 = inlined_call_operand.vmem [shape: bf16[512,128], index: 3, kind: output, shape index: {}]
  %s4 = sld [smem:[#allocation0]]
  $region22: #{bottleneck_forward.7} parent=0
    _
  %s6 = ssub.s32 1, %s4
  %s7 = scalar_select 0, %s6, %s4
  // Predicated region
  $region2: #{bottleneck_forward.7} parent=0 // pred_check
    _
  $region3: #{bottleneck_forward.7} parent=0 // pred_check_branch
    %9 = sbr.rel (0) target = $region5
  $region4: #{bottleneck_forward.7} parent=0 // pred_region
    _
  $region5: #{bottleneck_forward.7} parent=0 // pred_fallthru
    _
  // Predicated region
  $region6: #{bottleneck_forward.7} parent=0 // pred_check
    _
  $region7: #{bottleneck_forward.7} parent=0 // pred_check_branch
    %11 = sbr.rel (0) target = $region9
  $region8: #{bottleneck_forward.7} parent=0 // pred_region
    _
  $region9: #{bottleneck_forward.7} parent=0 // pred_fallthru
    _
  // Predicated region
  $region10: #{bottleneck_forward.7} parent=0 // pred_check
    _
  $region11: #{bottleneck_forward.7} parent=0 // pred_check_branch
    %13 = sbr.rel (0) target = $region13
  $region12: #{bottleneck_forward.7} parent=0 // pred_region
    _
  $region13: #{bottleneck_forward.7} parent=0 // pred_fallthru
    _
  %v14 = vld [vmem:[%s0] sm:$0xf]
  %v15 = vld [vmem:[%s0 + $0x4] sm:$0xf]
  %v16 = vld [vmem:[%s0 + $0x8] sm:$0xf]
  %v17 = vld [vmem:[%s0 + $0xc] sm:$0xf]
  %v18 = vld [vmem:[%s0 + $0x10] sm:$0xf]
  %v19 = vld [vmem:[%s0 + $0x14] sm:$0xf]
  %v20 = vld [vmem:[%s0 + $0x18] sm:$0xf]
  %v21 = vld [vmem:[%s0 + $0x1c] sm:$0xf]
  %v22 = vld [vmem:[%s0 + $0x20] sm:$0xf]
  %v23 = vld [vmem:[%s0 + $0x24] sm:$0xf]
  %v24 = vld [vmem:[%s0 + $0x28] sm:$0xf]
  %v25 = vld [vmem:[%s0 + $0x2c] sm:$0xf]
  %v26 = vld [vmem:[%s0 + $0x30] sm:$0xf]
  %v27 = vld [vmem:[%s0 + $0x34] sm:$0xf]
  %v28 = vld [vmem:[%s0 + $0x38] sm:$0xf]
  %v29 = vld [vmem:[%s0 + $0x3c] sm:$0xf]
  %v30 = vld [vmem:[%s0 + $0x40] sm:$0xf]
  %v31 = vld [vmem:[%s0 + $0x44] sm:$0xf]
  %v32 = vld [vmem:[%s0 + $0x48] sm:$0xf]
  %v33 = vld [vmem:[%s0 + $0x4c] sm:$0xf]
  %v34 = vld [vmem:[%s0 + $0x50] sm:$0xf]
  %v35 = vld [vmem:[%s0 + $0x54] sm:$0xf]
  %v36 = vld [vmem:[%s0 + $0x58] sm:$0xf]
  %v37 = vld [vmem:[%s0 + $0x5c] sm:$0xf]
  %v38 = vld [vmem:[%s0 + $0x60] sm:$0xf]
  %v39 = vld [vmem:[%s0 + $0x64] sm:$0xf]
  %v40 = vld [vmem:[%s0 + $0x68] sm:$0xf]
  %v41 = vld [vmem:[%s0 + $0x6c] sm:$0xf]
  %v42 = vld [vmem:[%s0 + $0x70] sm:$0xf]
  %v43 = vld [vmem:[%s0 + $0x74] sm:$0xf]
  %v44 = vld [vmem:[%s0 + $0x78] sm:$0xf]
  %v45 = vld [vmem:[%s0 + $0x7c] sm:$0xf]
  %v46 = vld [vmem:[%s0 + $0x80] sm:$0xf]
  %v47 = vld [vmem:[%s0 + $0x84] sm:$0xf]
  %v48 = vld [vmem:[%s0 + $0x88] sm:$0xf]
  %v49 = vld [vmem:[%s0 + $0x8c] sm:$0xf]
  %v50 = vld [vmem:[%s0 + $0x90] sm:$0xf]
  %v51 = vld [vmem:[%s0 + $0x94] sm:$0xf]
  %v52 = vld [vmem:[%s0 + $0x98] sm:$0xf]
  %v53 = vld [vmem:[%s0 + $0x9c] sm:$0xf]
  %v54 = vld [vmem:[%s0 + $0xa0] sm:$0xf]
  %v55 = vld [vmem:[%s0 + $0xa4] sm:$0xf]
  %v56 = vld [vmem:[%s0 + $0xa8] sm:$0xf]
  %v57 = vld [vmem:[%s0 + $0xac] sm:$0xf]
  %v58 = vld [vmem:[%s0 + $0xb0] sm:$0xf]
  %v59 = vld [vmem:[%s0 + $0xb4] sm:$0xf]
  %v60 = vld [vmem:[%s0 + $0xb8] sm:$0xf]
  %v61 = vld [vmem:[%s0 + $0xbc] sm:$0xf]
  %v62 = vld [vmem:[%s0 + $0xc0] sm:$0xf]
  %v63 = vld [vmem:[%s0 + $0xc4] sm:$0xf]
  %v64 = vld [vmem:[%s0 + $0xc8] sm:$0xf]
  %v65 = vld [vmem:[%s0 + $0xcc] sm:$0xf]
  %v66 = vld [vmem:[%s0 + $0xd0] sm:$0xf]
  %v67 = vld [vmem:[%s0 + $0xd4] sm:$0xf]
  %v68 = vld [vmem:[%s0 + $0xd8] sm:$0xf]
  %v69 = vld [vmem:[%s0 + $0xdc] sm:$0xf]
  %v70 = vld [vmem:[%s0 + $0xe0] sm:$0xf]
  %v71 = vld [vmem:[%s0 + $0xe4] sm:$0xf]
  %v72 = vld [vmem:[%s0 + $0xe8] sm:$0xf]
  %v73 = vld [vmem:[%s0 + $0xec] sm:$0xf]
  %v74 = vld [vmem:[%s0 + $0xf0] sm:$0xf]
  %v75 = vld [vmem:[%s0 + $0xf4] sm:$0xf]
  %v76 = vld [vmem:[%s0 + $0xf8] sm:$0xf]
  %v77 = vld [vmem:[%s0 + $0xfc] sm:$0xf]
  %v78 = vunpack.c.l.bf16 %v14
  %v79 = vunpack.c.l.bf16 %v15
  %v80 = vunpack.c.l.bf16 %v16
  %v81 = vunpack.c.l.bf16 %v17
  %v82 = vunpack.c.l.bf16 %v18
  %v83 = vunpack.c.l.bf16 %v19
  %v84 = vunpack.c.l.bf16 %v20
  %v85 = vunpack.c.l.bf16 %v21
  %v86 = vunpack.c.l.bf16 %v22
  %v87 = vunpack.c.l.bf16 %v23
  %v88 = vunpack.c.l.bf16 %v24
  %v89 = vunpack.c.l.bf16 %v25
  %v90 = vunpack.c.l.bf16 %v26
  %v91 = vunpack.c.l.bf16 %v27
  %v92 = vunpack.c.l.bf16 %v28
  %v93 = vunpack.c.l.bf16 %v29
  %v94 = vunpack.c.l.bf16 %v30
  %v95 = vunpack.c.l.bf16 %v31
  %v96 = vunpack.c.l.bf16 %v32
  %v97 = vunpack.c.l.bf16 %v33
  %v98 = vunpack.c.l.bf16 %v34
  %v99 = vunpack.c.l.bf16 %v35
  %v100 = vunpack.c.l.bf16 %v36
  %v101 = vunpack.c.l.bf16 %v37
  %v102 = vunpack.c.l.bf16 %v38
  %v103 = vunpack.c.l.bf16 %v39
  %v104 = vunpack.c.l.bf16 %v40
  %v105 = vunpack.c.l.bf16 %v41
  %v106 = vunpack.c.l.bf16 %v42
  %v107 = vunpack.c.l.bf16 %v43
  %v108 = vunpack.c.l.bf16 %v44
  %v109 = vunpack.c.l.bf16 %v45
  %v110 = vunpack.c.l.bf16 %v46
  %v111 = vunpack.c.l.bf16 %v47
  %v112 = vunpack.c.l.bf16 %v48
  %v113 = vunpack.c.l.bf16 %v49
  %v114 = vunpack.c.l.bf16 %v50
  %v115 = vunpack.c.l.bf16 %v51
  %v116 = vunpack.c.l.bf16 %v52
  %v117 = vunpack.c.l.bf16 %v53
  %v118 = vunpack.c.l.bf16 %v54
  %v119 = vunpack.c.l.bf16 %v55
  %v120 = vunpack.c.l.bf16 %v56
  %v121 = vunpack.c.l.bf16 %v57
  %v122 = vunpack.c.l.bf16 %v58
  %v123 = vunpack.c.l.bf16 %v59
  %v124 = vunpack.c.l.bf16 %v60
  %v125 = vunpack.c.l.bf16 %v61
  %v126 = vunpack.c.l.bf16 %v62
  %v127 = vunpack.c.l.bf16 %v63
  %v128 = vunpack.c.l.bf16 %v64
  %v129 = vunpack.c.l.bf16 %v65
  %v130 = vunpack.c.l.bf16 %v66
  %v131 = vunpack.c.l.bf16 %v67
  %v132 = vunpack.c.l.bf16 %v68
  %v133 = vunpack.c.l.bf16 %v69
  %v134 = vunpack.c.l.bf16 %v70
  %v135 = vunpack.c.l.bf16 %v71
  %v136 = vunpack.c.l.bf16 %v72
  %v137 = vunpack.c.l.bf16 %v73
  %v138 = vunpack.c.l.bf16 %v74
  %v139 = vunpack.c.l.bf16 %v75
  %v140 = vunpack.c.l.bf16 %v76
  %v141 = vunpack.c.l.bf16 %v77
  %v142 = vld [vmem:[%s1] sm:$0x1]
  %v144 = vlaneseq
  %v145 = vshrl.u32 %v144, 7
  %v146 = vsub.s32 0, %v145
  %v147 = vrot.slane %v142, %v146
  %v149 = vmul.f32 %v78, %v147
  %v150 = vmul.f32 %v79, %v147
  %v151 = vmul.f32 %v80, %v147
  %v152 = vmul.f32 %v81, %v147
  %v153 = vmul.f32 %v82, %v147
  %v154 = vmul.f32 %v83, %v147
  %v155 = vmul.f32 %v84, %v147
  %v156 = vmul.f32 %v85, %v147
  %v157 = vmul.f32 %v86, %v147
  %v158 = vmul.f32 %v87, %v147
  %v159 = vmul.f32 %v88, %v147
  %v160 = vmul.f32 %v89, %v147
  %v161 = vmul.f32 %v90, %v147
  %v162 = vmul.f32 %v91, %v147
  %v163 = vmul.f32 %v92, %v147
  %v164 = vmul.f32 %v93, %v147
  %v165 = vmul.f32 %v94, %v147
  %v166 = vmul.f32 %v95, %v147
  %v167 = vmul.f32 %v96, %v147
  %v168 = vmul.f32 %v97, %v147
  %v169 = vmul.f32 %v98, %v147
  %v170 = vmul.f32 %v99, %v147
  %v171 = vmul.f32 %v100, %v147
  %v172 = vmul.f32 %v101, %v147
  %v173 = vmul.f32 %v102, %v147
  %v174 = vmul.f32 %v103, %v147
  %v175 = vmul.f32 %v104, %v147
  %v176 = vmul.f32 %v105, %v147
  %v177 = vmul.f32 %v106, %v147
  %v178 = vmul.f32 %v107, %v147
  %v179 = vmul.f32 %v108, %v147
  %v180 = vmul.f32 %v109, %v147
  %v181 = vmul.f32 %v110, %v147
  %v182 = vmul.f32 %v111, %v147
  %v183 = vmul.f32 %v112, %v147
  %v184 = vmul.f32 %v113, %v147
  %v185 = vmul.f32 %v114, %v147
  %v186 = vmul.f32 %v115, %v147
  %v187 = vmul.f32 %v116, %v147
  %v188 = vmul.f32 %v117, %v147
  %v189 = vmul.f32 %v118, %v147
  %v190 = vmul.f32 %v119, %v147
  %v191 = vmul.f32 %v120, %v147
  %v192 = vmul.f32 %v121, %v147
  %v193 = vmul.f32 %v122, %v147
  %v194 = vmul.f32 %v123, %v147
  %v195 = vmul.f32 %v124, %v147
  %v196 = vmul.f32 %v125, %v147
  %v197 = vmul.f32 %v126, %v147
  %v198 = vmul.f32 %v127, %v147
  %v199 = vmul.f32 %v128, %v147
  %v200 = vmul.f32 %v129, %v147
  %v201 = vmul.f32 %v130, %v147
  %v202 = vmul.f32 %v131, %v147
  %v203 = vmul.f32 %v132, %v147
  %v204 = vmul.f32 %v133, %v147
  %v205 = vmul.f32 %v134, %v147
  %v206 = vmul.f32 %v135, %v147
  %v207 = vmul.f32 %v136, %v147
  %v208 = vmul.f32 %v137, %v147
  %v209 = vmul.f32 %v138, %v147
  %v210 = vmul.f32 %v139, %v147
  %v211 = vmul.f32 %v140, %v147
  %v212 = vmul.f32 %v141, %v147
  %v213 = vld [vmem:[%s2] sm:$0x1]
  %v215 = vlaneseq
  %v216 = vshrl.u32 %v215, 7
  %v217 = vsub.s32 0, %v216
  %v218 = vrot.slane %v213, %v217
  %v220 = vadd.f32 %v149, %v218
  %v221 = vadd.f32 %v150, %v218
  %v222 = vadd.f32 %v151, %v218
  %v223 = vadd.f32 %v152, %v218
  %v224 = vadd.f32 %v153, %v218
  %v225 = vadd.f32 %v154, %v218
  %v226 = vadd.f32 %v155, %v218
  %v227 = vadd.f32 %v156, %v218
  %v228 = vadd.f32 %v157, %v218
  %v229 = vadd.f32 %v158, %v218
  %v230 = vadd.f32 %v159, %v218
  %v231 = vadd.f32 %v160, %v218
  %v232 = vadd.f32 %v161, %v218
  %v233 = vadd.f32 %v162, %v218
  %v234 = vadd.f32 %v163, %v218
  %v235 = vadd.f32 %v164, %v218
  %v236 = vadd.f32 %v165, %v218
  %v237 = vadd.f32 %v166, %v218
  %v238 = vadd.f32 %v167, %v218
  %v239 = vadd.f32 %v168, %v218
  %v240 = vadd.f32 %v169, %v218
  %v241 = vadd.f32 %v170, %v218
  %v242 = vadd.f32 %v171, %v218
  %v243 = vadd.f32 %v172, %v218
  %v244 = vadd.f32 %v173, %v218
  %v245 = vadd.f32 %v174, %v218
  %v246 = vadd.f32 %v175, %v218
  %v247 = vadd.f32 %v176, %v218
  %v248 = vadd.f32 %v177, %v218
  %v249 = vadd.f32 %v178, %v218
  %v250 = vadd.f32 %v179, %v218
  %v251 = vadd.f32 %v180, %v218
  %v252 = vadd.f32 %v181, %v218
  %v253 = vadd.f32 %v182, %v218
  %v254 = vadd.f32 %v183, %v218
  %v255 = vadd.f32 %v184, %v218
  %v256 = vadd.f32 %v185, %v218
  %v257 = vadd.f32 %v186, %v218
  %v258 = vadd.f32 %v187, %v218
  %v259 = vadd.f32 %v188, %v218
  %v260 = vadd.f32 %v189, %v218
  %v261 = vadd.f32 %v190, %v218
  %v262 = vadd.f32 %v191, %v218
  %v263 = vadd.f32 %v192, %v218
  %v264 = vadd.f32 %v193, %v218
  %v265 = vadd.f32 %v194, %v218
  %v266 = vadd.f32 %v195, %v218
  %v267 = vadd.f32 %v196, %v218
  %v268 = vadd.f32 %v197, %v218
  %v269 = vadd.f32 %v198, %v218
  %v270 = vadd.f32 %v199, %v218
  %v271 = vadd.f32 %v200, %v218
  %v272 = vadd.f32 %v201, %v218
  %v273 = vadd.f32 %v202, %v218
  %v274 = vadd.f32 %v203, %v218
  %v275 = vadd.f32 %v204, %v218
  %v276 = vadd.f32 %v205, %v218
  %v277 = vadd.f32 %v206, %v218
  %v278 = vadd.f32 %v207, %v218
  %v279 = vadd.f32 %v208, %v218
  %v280 = vadd.f32 %v209, %v218
  %v281 = vadd.f32 %v210, %v218
  %v282 = vadd.f32 %v211, %v218
  %v283 = vadd.f32 %v212, %v218
  %v284 = vmax.f32 %v220, 0.0
  %v285 = vmax.f32 %v221, 0.0
  %v286 = vmax.f32 %v222, 0.0
  %v287 = vmax.f32 %v223, 0.0
  %v288 = vmax.f32 %v224, 0.0
  %v289 = vmax.f32 %v225, 0.0
  %v290 = vmax.f32 %v226, 0.0
  %v291 = vmax.f32 %v227, 0.0
  %v292 = vmax.f32 %v228, 0.0
  %v293 = vmax.f32 %v229, 0.0
  %v294 = vmax.f32 %v230, 0.0
  %v295 = vmax.f32 %v231, 0.0
  %v296 = vmax.f32 %v232, 0.0
  %v297 = vmax.f32 %v233, 0.0
  %v298 = vmax.f32 %v234, 0.0
  %v299 = vmax.f32 %v235, 0.0
  %v300 = vmax.f32 %v236, 0.0
  %v301 = vmax.f32 %v237, 0.0
  %v302 = vmax.f32 %v238, 0.0
  %v303 = vmax.f32 %v239, 0.0
  %v304 = vmax.f32 %v240, 0.0
  %v305 = vmax.f32 %v241, 0.0
  %v306 = vmax.f32 %v242, 0.0
  %v307 = vmax.f32 %v243, 0.0
  %v308 = vmax.f32 %v244, 0.0
  %v309 = vmax.f32 %v245, 0.0
  %v310 = vmax.f32 %v246, 0.0
  %v311 = vmax.f32 %v247, 0.0
  %v312 = vmax.f32 %v248, 0.0
  %v313 = vmax.f32 %v249, 0.0
  %v314 = vmax.f32 %v250, 0.0
  %v315 = vmax.f32 %v251, 0.0
  %v316 = vmax.f32 %v252, 0.0
  %v317 = vmax.f32 %v253, 0.0
  %v318 = vmax.f32 %v254, 0.0
  %v319 = vmax.f32 %v255, 0.0
  %v320 = vmax.f32 %v256, 0.0
  %v321 = vmax.f32 %v257, 0.0
  %v322 = vmax.f32 %v258, 0.0
  %v323 = vmax.f32 %v259, 0.0
  %v324 = vmax.f32 %v260, 0.0
  %v325 = vmax.f32 %v261, 0.0
  %v326 = vmax.f32 %v262, 0.0
  %v327 = vmax.f32 %v263, 0.0
  %v328 = vmax.f32 %v264, 0.0
  %v329 = vmax.f32 %v265, 0.0
  %v330 = vmax.f32 %v266, 0.0
  %v331 = vmax.f32 %v267, 0.0
  %v332 = vmax.f32 %v268, 0.0
  %v333 = vmax.f32 %v269, 0.0
  %v334 = vmax.f32 %v270, 0.0
  %v335 = vmax.f32 %v271, 0.0
  %v336 = vmax.f32 %v272, 0.0
  %v337 = vmax.f32 %v273, 0.0
  %v338 = vmax.f32 %v274, 0.0
  %v339 = vmax.f32 %v275, 0.0
  %v340 = vmax.f32 %v276, 0.0
  %v341 = vmax.f32 %v277, 0.0
  %v342 = vmax.f32 %v278, 0.0
  %v343 = vmax.f32 %v279, 0.0
  %v344 = vmax.f32 %v280, 0.0
  %v345 = vmax.f32 %v281, 0.0
  %v346 = vmax.f32 %v282, 0.0
  %v347 = vmax.f32 %v283, 0.0
  %v348 = vlaneseq
  %v349 = vshrl.u32 %v348, 7
  %v350 = vadd.s32 %v349, 8
  %v351 = vadd.s32 %v349, 16
  %v352 = vadd.s32 %v349, 24
  %v353 = vadd.s32 %v349, 32
  %v354 = vadd.s32 %v349, 40
  %v355 = vadd.s32 %v349, 48
  %v356 = vadd.s32 %v349, 56
  %v357 = vadd.s32 %v349, 64
  %v358 = vadd.s32 %v349, 72
  %v359 = vadd.s32 %v349, 80
  %v360 = vadd.s32 %v349, 88
  %v361 = vadd.s32 %v349, 96
  %v362 = vadd.s32 %v349, 104
  %v363 = vadd.s32 %v349, 112
  %v364 = vadd.s32 %v349, 120
  %v365 = vadd.s32 %v349, 128
  %v366 = vadd.s32 %v349, 136
  %v367 = vadd.s32 %v349, 144
  %v368 = vadd.s32 %v349, 152
  %v369 = vadd.s32 %v349, 160
  %v370 = vadd.s32 %v349, 168
  %v371 = vadd.s32 %v349, 176
  %v372 = vadd.s32 %v349, 184
  %v373 = vadd.s32 %v349, 192
  %v374 = vadd.s32 %v349, 200
  %v375 = vadd.s32 %v349, 208
  %v376 = vadd.s32 %v349, 216
  %v377 = vadd.s32 %v349, 224
  %v378 = vadd.s32 %v349, 232
  %v379 = vadd.s32 %v349, 240
  %v380 = vadd.s32 %v349, 248
  %v381 = vadd.s32 %v349, 256
  %v382 = vadd.s32 %v349, 264
  %v383 = vadd.s32 %v349, 272
  %v384 = vadd.s32 %v349, 280
  %v385 = vadd.s32 %v349, 288
  %v386 = vadd.s32 %v349, 296
  %v387 = vadd.s32 %v349, 304
  %v388 = vadd.s32 %v349, 312
  %v389 = vadd.s32 %v349, 320
  %v390 = vadd.s32 %v349, 328
  %v391 = vadd.s32 %v349, 336
  %v392 = vadd.s32 %v349, 344
  %v393 = vadd.s32 %v349, 352
  %v394 = vadd.s32 %v349, 360
  %v395 = vadd.s32 %v349, 368
  %v396 = vadd.s32 %v349, 376
  %v397 = vadd.s32 %v349, 384
  %v398 = vadd.s32 %v349, 392
  %v399 = vadd.s32 %v349, 400
  %v400 = vadd.s32 %v349, 408
  %v401 = vadd.s32 %v349, 416
  %v402 = vadd.s32 %v349, 424
  %v403 = vadd.s32 %v349, 432
  %v404 = vadd.s32 %v349, 440
  %v405 = vadd.s32 %v349, 448
  %v406 = vadd.s32 %v349, 456
  %v407 = vadd.s32 %v349, 464
  %v408 = vadd.s32 %v349, 472
  %v409 = vadd.s32 %v349, 480
  %v410 = vadd.s32 %v349, 488
  %v411 = vadd.s32 %v349, 496
  %v412 = vadd.s32 %v349, 504
  %s413 = smul.u32 0, 512
  %v414 = vstv %s413
  %v415 = vadd.s32 %v349, %v414
  %v416 = vadd.s32 %v350, %v414
  %v417 = vadd.s32 %v351, %v414
  %v418 = vadd.s32 %v352, %v414
  %v419 = vadd.s32 %v353, %v414
  %v420 = vadd.s32 %v354, %v414
  %v421 = vadd.s32 %v355, %v414
  %v422 = vadd.s32 %v356, %v414
  %v423 = vadd.s32 %v357, %v414
  %v424 = vadd.s32 %v358, %v414
  %v425 = vadd.s32 %v359, %v414
  %v426 = vadd.s32 %v360, %v414
  %v427 = vadd.s32 %v361, %v414
  %v428 = vadd.s32 %v362, %v414
  %v429 = vadd.s32 %v363, %v414
  %v430 = vadd.s32 %v364, %v414
  %v431 = vadd.s32 %v365, %v414
  %v432 = vadd.s32 %v366, %v414
  %v433 = vadd.s32 %v367, %v414
  %v434 = vadd.s32 %v368, %v414
  %v435 = vadd.s32 %v369, %v414
  %v436 = vadd.s32 %v370, %v414
  %v437 = vadd.s32 %v371, %v414
  %v438 = vadd.s32 %v372, %v414
  %v439 = vadd.s32 %v373, %v414
  %v440 = vadd.s32 %v374, %v414
  %v441 = vadd.s32 %v375, %v414
  %v442 = vadd.s32 %v376, %v414
  %v443 = vadd.s32 %v377, %v414
  %v444 = vadd.s32 %v378, %v414
  %v445 = vadd.s32 %v379, %v414
  %v446 = vadd.s32 %v380, %v414
  %v447 = vadd.s32 %v381, %v414
  %v448 = vadd.s32 %v382, %v414
  %v449 = vadd.s32 %v383, %v414
  %v450 = vadd.s32 %v384, %v414
  %v451 = vadd.s32 %v385, %v414
  %v452 = vadd.s32 %v386, %v414
  %v453 = vadd.s32 %v387, %v414
  %v454 = vadd.s32 %v388, %v414
  %v455 = vadd.s32 %v389, %v414
  %v456 = vadd.s32 %v390, %v414
  %v457 = vadd.s32 %v391, %v414
  %v458 = vadd.s32 %v392, %v414
  %v459 = vadd.s32 %v393, %v414
  %v460 = vadd.s32 %v394, %v414
  %v461 = vadd.s32 %v395, %v414
  %v462 = vadd.s32 %v396, %v414
  %v463 = vadd.s32 %v397, %v414
  %v464 = vadd.s32 %v398, %v414
  %v465 = vadd.s32 %v399, %v414
  %v466 = vadd.s32 %v400, %v414
  %v467 = vadd.s32 %v401, %v414
  %v468 = vadd.s32 %v402, %v414
  %v469 = vadd.s32 %v403, %v414
  %v470 = vadd.s32 %v404, %v414
  %v471 = vadd.s32 %v405, %v414
  %v472 = vadd.s32 %v406, %v414
  %v473 = vadd.s32 %v407, %v414
  %v474 = vadd.s32 %v408, %v414
  %v475 = vadd.s32 %v409, %v414
  %v476 = vadd.s32 %v410, %v414
  %v477 = vadd.s32 %v411, %v414
  %v478 = vadd.s32 %v412, %v414
  %vm479 = vcmp.lt.s32.totalorder %v415, 512
  %vm480 = vcmp.lt.s32.totalorder %v416, 512
  %vm481 = vcmp.lt.s32.totalorder %v417, 512
  %vm482 = vcmp.lt.s32.totalorder %v418, 512
  %vm483 = vcmp.lt.s32.totalorder %v419, 512
  %vm484 = vcmp.lt.s32.totalorder %v420, 512
  %vm485 = vcmp.lt.s32.totalorder %v421, 512
  %vm486 = vcmp.lt.s32.totalorder %v422, 512
  %vm487 = vcmp.lt.s32.totalorder %v423, 512
  %vm488 = vcmp.lt.s32.totalorder %v424, 512
  %vm489 = vcmp.lt.s32.totalorder %v425, 512
  %vm490 = vcmp.lt.s32.totalorder %v426, 512
  %vm491 = vcmp.lt.s32.totalorder %v427, 512
  %vm492 = vcmp.lt.s32.totalorder %v428, 512
  %vm493 = vcmp.lt.s32.totalorder %v429, 512
  %vm494 = vcmp.lt.s32.totalorder %v430, 512
  %vm495 = vcmp.lt.s32.totalorder %v431, 512
  %vm496 = vcmp.lt.s32.totalorder %v432, 512
  %vm497 = vcmp.lt.s32.totalorder %v433, 512
  %vm498 = vcmp.lt.s32.totalorder %v434, 512
  %vm499 = vcmp.lt.s32.totalorder %v435, 512
  %vm500 = vcmp.lt.s32.totalorder %v436, 512
  %vm501 = vcmp.lt.s32.totalorder %v437, 512
  %vm502 = vcmp.lt.s32.totalorder %v438, 512
  %vm503 = vcmp.lt.s32.totalorder %v439, 512
  %vm504 = vcmp.lt.s32.totalorder %v440, 512
  %vm505 = vcmp.lt.s32.totalorder %v441, 512
  %vm506 = vcmp.lt.s32.totalorder %v442, 512
  %vm507 = vcmp.lt.s32.totalorder %v443, 512
  %vm508 = vcmp.lt.s32.totalorder %v444, 512
  %vm509 = vcmp.lt.s32.totalorder %v445, 512
  %vm510 = vcmp.lt.s32.totalorder %v446, 512
  %vm511 = vcmp.lt.s32.totalorder %v447, 512
  %vm512 = vcmp.lt.s32.totalorder %v448, 512
  %vm513 = vcmp.lt.s32.totalorder %v449, 512
  %vm514 = vcmp.lt.s32.totalorder %v450, 512
  %vm515 = vcmp.lt.s32.totalorder %v451, 512
  %vm516 = vcmp.lt.s32.totalorder %v452, 512
  %vm517 = vcmp.lt.s32.totalorder %v453, 512
  %vm518 = vcmp.lt.s32.totalorder %v454, 512
  %vm519 = vcmp.lt.s32.totalorder %v455, 512
  %vm520 = vcmp.lt.s32.totalorder %v456, 512
  %vm521 = vcmp.lt.s32.totalorder %v457, 512
  %vm522 = vcmp.lt.s32.totalorder %v458, 512
  %vm523 = vcmp.lt.s32.totalorder %v459, 512
  %vm524 = vcmp.lt.s32.totalorder %v460, 512
  %vm525 = vcmp.lt.s32.totalorder %v461, 512
  %vm526 = vcmp.lt.s32.totalorder %v462, 512
  %vm527 = vcmp.lt.s32.totalorder %v463, 512
  %vm528 = vcmp.lt.s32.totalorder %v464, 512
  %vm529 = vcmp.lt.s32.totalorder %v465, 512
  %vm530 = vcmp.lt.s32.totalorder %v466, 512
  %vm531 = vcmp.lt.s32.totalorder %v467, 512
  %vm532 = vcmp.lt.s32.totalorder %v468, 512
  %vm533 = vcmp.lt.s32.totalorder %v469, 512
  %vm534 = vcmp.lt.s32.totalorder %v470, 512
  %vm535 = vcmp.lt.s32.totalorder %v471, 512
  %vm536 = vcmp.lt.s32.totalorder %v472, 512
  %vm537 = vcmp.lt.s32.totalorder %v473, 512
  %vm538 = vcmp.lt.s32.totalorder %v474, 512
  %vm539 = vcmp.lt.s32.totalorder %v475, 512
  %vm540 = vcmp.lt.s32.totalorder %v476, 512
  %vm541 = vcmp.lt.s32.totalorder %v477, 512
  %vm542 = vcmp.lt.s32.totalorder %v478, 512
  %v543 = vsel %vm479, %v284, 0.0
  %v544 = vsel %vm480, %v285, 0.0
  %v545 = vsel %vm481, %v286, 0.0
  %v546 = vsel %vm482, %v287, 0.0
  %v547 = vsel %vm483, %v288, 0.0
  %v548 = vsel %vm484, %v289, 0.0
  %v549 = vsel %vm485, %v290, 0.0
  %v550 = vsel %vm486, %v291, 0.0
  %v551 = vsel %vm487, %v292, 0.0
  %v552 = vsel %vm488, %v293, 0.0
  %v553 = vsel %vm489, %v294, 0.0
  %v554 = vsel %vm490, %v295, 0.0
  %v555 = vsel %vm491, %v296, 0.0
  %v556 = vsel %vm492, %v297, 0.0
  %v557 = vsel %vm493, %v298, 0.0
  %v558 = vsel %vm494, %v299, 0.0
  %v559 = vsel %vm495, %v300, 0.0
  %v560 = vsel %vm496, %v301, 0.0
  %v561 = vsel %vm497, %v302, 0.0
  %v562 = vsel %vm498, %v303, 0.0
  %v563 = vsel %vm499, %v304, 0.0
  %v564 = vsel %vm500, %v305, 0.0
  %v565 = vsel %vm501, %v306, 0.0
  %v566 = vsel %vm502, %v307, 0.0
  %v567 = vsel %vm503, %v308, 0.0
  %v568 = vsel %vm504, %v309, 0.0
  %v569 = vsel %vm505, %v310, 0.0
  %v570 = vsel %vm506, %v311, 0.0
  %v571 = vsel %vm507, %v312, 0.0
  %v572 = vsel %vm508, %v313, 0.0
  %v573 = vsel %vm509, %v314, 0.0
  %v574 = vsel %vm510, %v315, 0.0
  %v575 = vsel %vm511, %v316, 0.0
  %v576 = vsel %vm512, %v317, 0.0
  %v577 = vsel %vm513, %v318, 0.0
  %v578 = vsel %vm514, %v319, 0.0
  %v579 = vsel %vm515, %v320, 0.0
  %v580 = vsel %vm516, %v321, 0.0
  %v581 = vsel %vm517, %v322, 0.0
  %v582 = vsel %vm518, %v323, 0.0
  %v583 = vsel %vm519, %v324, 0.0
  %v584 = vsel %vm520, %v325, 0.0
  %v585 = vsel %vm521, %v326, 0.0
  %v586 = vsel %vm522, %v327, 0.0
  %v587 = vsel %vm523, %v328, 0.0
  %v588 = vsel %vm524, %v329, 0.0
  %v589 = vsel %vm525, %v330, 0.0
  %v590 = vsel %vm526, %v331, 0.0
  %v591 = vsel %vm527, %v332, 0.0
  %v592 = vsel %vm528, %v333, 0.0
  %v593 = vsel %vm529, %v334, 0.0
  %v594 = vsel %vm530, %v335, 0.0
  %v595 = vsel %vm531, %v336, 0.0
  %v596 = vsel %vm532, %v337, 0.0
  %v597 = vsel %vm533, %v338, 0.0
  %v598 = vsel %vm534, %v339, 0.0
  %v599 = vsel %vm535, %v340, 0.0
  %v600 = vsel %vm536, %v341, 0.0
  %v601 = vsel %vm537, %v342, 0.0
  %v602 = vsel %vm538, %v343, 0.0
  %v603 = vsel %vm539, %v344, 0.0
  %v604 = vsel %vm540, %v345, 0.0
  %v605 = vsel %vm541, %v346, 0.0
  %v606 = vsel %vm542, %v347, 0.0
  %v607 = vpack.c.bf16 %v544, %v543
  %v608 = vpack.c.bf16 %v546, %v545
  %v609 = vpack.c.bf16 %v548, %v547
  %v610 = vpack.c.bf16 %v550, %v549
  %v611 = vpack.c.bf16 %v552, %v551
  %v612 = vpack.c.bf16 %v554, %v553
  %v613 = vpack.c.bf16 %v556, %v555
  %v614 = vpack.c.bf16 %v558, %v557
  %v615 = vpack.c.bf16 %v560, %v559
  %v616 = vpack.c.bf16 %v562, %v561
  %v617 = vpack.c.bf16 %v564, %v563
  %v618 = vpack.c.bf16 %v566, %v565
  %v619 = vpack.c.bf16 %v568, %v567
  %v620 = vpack.c.bf16 %v570, %v569
  %v621 = vpack.c.bf16 %v572, %v571
  %v622 = vpack.c.bf16 %v574, %v573
  %v623 = vpack.c.bf16 %v576, %v575
  %v624 = vpack.c.bf16 %v578, %v577
  %v625 = vpack.c.bf16 %v580, %v579
  %v626 = vpack.c.bf16 %v582, %v581
  %v627 = vpack.c.bf16 %v584, %v583
  %v628 = vpack.c.bf16 %v586, %v585
  %v629 = vpack.c.bf16 %v588, %v587
  %v630 = vpack.c.bf16 %v590, %v589
  %v631 = vpack.c.bf16 %v592, %v591
  %v632 = vpack.c.bf16 %v594, %v593
  %v633 = vpack.c.bf16 %v596, %v595
  %v634 = vpack.c.bf16 %v598, %v597
  %v635 = vpack.c.bf16 %v600, %v599
  %v636 = vpack.c.bf16 %v602, %v601
  %v637 = vpack.c.bf16 %v604, %v603
  %v638 = vpack.c.bf16 %v606, %v605
  %v671 = vunpack.c.l.b16 %v607
  %v672 = vunpack.c.h.b16 %v607
  %v673 = vunpack.c.l.b16 %v608
  %v674 = vunpack.c.h.b16 %v608
  %v675 = vunpack.c.l.b16 %v609
  %v676 = vunpack.c.h.b16 %v609
  %v677 = vunpack.c.l.b16 %v610
  %v678 = vunpack.c.h.b16 %v610
  %v679 = vunpack.c.l.b16 %v611
  %v680 = vunpack.c.h.b16 %v611
  %v681 = vunpack.c.l.b16 %v612
  %v682 = vunpack.c.h.b16 %v612
  %v683 = vunpack.c.l.b16 %v613
  %v684 = vunpack.c.h.b16 %v613
  %v685 = vunpack.c.l.b16 %v614
  %v686 = vunpack.c.h.b16 %v614
  %v687 = vunpack.c.l.b16 %v615
  %v688 = vunpack.c.h.b16 %v615
  %v689 = vunpack.c.l.b16 %v616
  %v690 = vunpack.c.h.b16 %v616
  %v691 = vunpack.c.l.b16 %v617
  %v692 = vunpack.c.h.b16 %v617
  %v693 = vunpack.c.l.b16 %v618
  %v694 = vunpack.c.h.b16 %v618
  %v695 = vunpack.c.l.b16 %v619
  %v696 = vunpack.c.h.b16 %v619
  %v697 = vunpack.c.l.b16 %v620
  %v698 = vunpack.c.h.b16 %v620
  %v699 = vunpack.c.l.b16 %v621
  %v700 = vunpack.c.h.b16 %v621
  %v701 = vunpack.c.l.b16 %v622
  %v702 = vunpack.c.h.b16 %v622
  %v703 = vunpack.c.l.b16 %v623
  %v704 = vunpack.c.h.b16 %v623
  %v705 = vunpack.c.l.b16 %v624
  %v706 = vunpack.c.h.b16 %v624
  %v707 = vunpack.c.l.b16 %v625
  %v708 = vunpack.c.h.b16 %v625
  %v709 = vunpack.c.l.b16 %v626
  %v710 = vunpack.c.h.b16 %v626
  %v711 = vunpack.c.l.b16 %v627
  %v712 = vunpack.c.h.b16 %v627
  %v713 = vunpack.c.l.b16 %v628
  %v714 = vunpack.c.h.b16 %v628
  %v715 = vunpack.c.l.b16 %v629
  %v716 = vunpack.c.h.b16 %v629
  %v717 = vunpack.c.l.b16 %v630
  %v718 = vunpack.c.h.b16 %v630
  %v719 = vunpack.c.l.b16 %v631
  %v720 = vunpack.c.h.b16 %v631
  %v721 = vunpack.c.l.b16 %v632
  %v722 = vunpack.c.h.b16 %v632
  %v723 = vunpack.c.l.b16 %v633
  %v724 = vunpack.c.h.b16 %v633
  %v725 = vunpack.c.l.b16 %v634
  %v726 = vunpack.c.h.b16 %v634
  %v727 = vunpack.c.l.b16 %v635
  %v728 = vunpack.c.h.b16 %v635
  %v729 = vunpack.c.l.b16 %v636
  %v730 = vunpack.c.h.b16 %v636
  %v731 = vunpack.c.l.b16 %v637
  %v732 = vunpack.c.h.b16 %v637
  %v733 = vunpack.c.l.b16 %v638
  %v734 = vunpack.c.h.b16 %v638
  %v735 = vpack.c.b16 %v671, %v671
  %v736 = vpack.c.b16 %v672, %v672
  %v737 = vpack.c.b16 %v673, %v673
  %v738 = vpack.c.b16 %v674, %v674
  %v739 = vpack.c.b16 %v675, %v675
  %v740 = vpack.c.b16 %v676, %v676
  %v741 = vpack.c.b16 %v677, %v677
  %v742 = vpack.c.b16 %v678, %v678
  %v743 = vpack.c.b16 %v679, %v679
  %v744 = vpack.c.b16 %v680, %v680
  %v745 = vpack.c.b16 %v681, %v681
  %v746 = vpack.c.b16 %v682, %v682
  %v747 = vpack.c.b16 %v683, %v683
  %v748 = vpack.c.b16 %v684, %v684
  %v749 = vpack.c.b16 %v685, %v685
  %v750 = vpack.c.b16 %v686, %v686
  %v751 = vpack.c.b16 %v687, %v687
  %v752 = vpack.c.b16 %v688, %v688
  %v753 = vpack.c.b16 %v689, %v689
  %v754 = vpack.c.b16 %v690, %v690
  %v755 = vpack.c.b16 %v691, %v691
  %v756 = vpack.c.b16 %v692, %v692
  %v757 = vpack.c.b16 %v693, %v693
  %v758 = vpack.c.b16 %v694, %v694
  %v759 = vpack.c.b16 %v695, %v695
  %v760 = vpack.c.b16 %v696, %v696
  %v761 = vpack.c.b16 %v697, %v697
  %v762 = vpack.c.b16 %v698, %v698
  %v763 = vpack.c.b16 %v699, %v699
  %v764 = vpack.c.b16 %v700, %v700
  %v765 = vpack.c.b16 %v701, %v701
  %v766 = vpack.c.b16 %v702, %v702
  %v767 = vpack.c.b16 %v703, %v703
  %v768 = vpack.c.b16 %v704, %v704
  %v769 = vpack.c.b16 %v705, %v705
  %v770 = vpack.c.b16 %v706, %v706
  %v771 = vpack.c.b16 %v707, %v707
  %v772 = vpack.c.b16 %v708, %v708
  %v773 = vpack.c.b16 %v709, %v709
  %v774 = vpack.c.b16 %v710, %v710
  %v775 = vpack.c.b16 %v711, %v711
  %v776 = vpack.c.b16 %v712, %v712
  %v777 = vpack.c.b16 %v713, %v713
  %v778 = vpack.c.b16 %v714, %v714
  %v779 = vpack.c.b16 %v715, %v715
  %v780 = vpack.c.b16 %v716, %v716
  %v781 = vpack.c.b16 %v717, %v717
  %v782 = vpack.c.b16 %v718, %v718
  %v783 = vpack.c.b16 %v719, %v719
  %v784 = vpack.c.b16 %v720, %v720
  %v785 = vpack.c.b16 %v721, %v721
  %v786 = vpack.c.b16 %v722, %v722
  %v787 = vpack.c.b16 %v723, %v723
  %v788 = vpack.c.b16 %v724, %v724
  %v789 = vpack.c.b16 %v725, %v725
  %v790 = vpack.c.b16 %v726, %v726
  %v791 = vpack.c.b16 %v727, %v727
  %v792 = vpack.c.b16 %v728, %v728
  %v793 = vpack.c.b16 %v729, %v729
  %v794 = vpack.c.b16 %v730, %v730
  %v795 = vpack.c.b16 %v731, %v731
  %v796 = vpack.c.b16 %v732, %v732
  %v797 = vpack.c.b16 %v733, %v733
  %v798 = vpack.c.b16 %v734, %v734
  %863 = vst [vmem:[%s3] sm:$0xf] %v735
  %864 = vst [vmem:[%s3 + $0x4] sm:$0xf] %v736
  %865 = vst [vmem:[%s3 + $0x8] sm:$0xf] %v737
  %866 = vst [vmem:[%s3 + $0xc] sm:$0xf] %v738
  %867 = vst [vmem:[%s3 + $0x10] sm:$0xf] %v739
  %868 = vst [vmem:[%s3 + $0x14] sm:$0xf] %v740
  %869 = vst [vmem:[%s3 + $0x18] sm:$0xf] %v741
  %870 = vst [vmem:[%s3 + $0x1c] sm:$0xf] %v742
  %871 = vst [vmem:[%s3 + $0x20] sm:$0xf] %v743
  %872 = vst [vmem:[%s3 + $0x24] sm:$0xf] %v744
  %873 = vst [vmem:[%s3 + $0x28] sm:$0xf] %v745
  %874 = vst [vmem:[%s3 + $0x2c] sm:$0xf] %v746
  %875 = vst [vmem:[%s3 + $0x30] sm:$0xf] %v747
  %876 = vst [vmem:[%s3 + $0x34] sm:$0xf] %v748
  %877 = vst [vmem:[%s3 + $0x38] sm:$0xf] %v749
  %878 = vst [vmem:[%s3 + $0x3c] sm:$0xf] %v750
  %879 = vst [vmem:[%s3 + $0x40] sm:$0xf] %v751
  %880 = vst [vmem:[%s3 + $0x44] sm:$0xf] %v752
  %881 = vst [vmem:[%s3 + $0x48] sm:$0xf] %v753
  %882 = vst [vmem:[%s3 + $0x4c] sm:$0xf] %v754
  %883 = vst [vmem:[%s3 + $0x50] sm:$0xf] %v755
  %884 = vst [vmem:[%s3 + $0x54] sm:$0xf] %v756
  %885 = vst [vmem:[%s3 + $0x58] sm:$0xf] %v757
  %886 = vst [vmem:[%s3 + $0x5c] sm:$0xf] %v758
  %887 = vst [vmem:[%s3 + $0x60] sm:$0xf] %v759
  %888 = vst [vmem:[%s3 + $0x64] sm:$0xf] %v760
  %889 = vst [vmem:[%s3 + $0x68] sm:$0xf] %v761
  %890 = vst [vmem:[%s3 + $0x6c] sm:$0xf] %v762
  %891 = vst [vmem:[%s3 + $0x70] sm:$0xf] %v763
  %892 = vst [vmem:[%s3 + $0x74] sm:$0xf] %v764
  %893 = vst [vmem:[%s3 + $0x78] sm:$0xf] %v765
  %894 = vst [vmem:[%s3 + $0x7c] sm:$0xf] %v766
  %895 = vst [vmem:[%s3 + $0x80] sm:$0xf] %v767
  %896 = vst [vmem:[%s3 + $0x84] sm:$0xf] %v768
  %897 = vst [vmem:[%s3 + $0x88] sm:$0xf] %v769
  %898 = vst [vmem:[%s3 + $0x8c] sm:$0xf] %v770
  %899 = vst [vmem:[%s3 + $0x90] sm:$0xf] %v771
  %900 = vst [vmem:[%s3 + $0x94] sm:$0xf] %v772
  %901 = vst [vmem:[%s3 + $0x98] sm:$0xf] %v773
  %902 = vst [vmem:[%s3 + $0x9c] sm:$0xf] %v774
  %903 = vst [vmem:[%s3 + $0xa0] sm:$0xf] %v775
  %904 = vst [vmem:[%s3 + $0xa4] sm:$0xf] %v776
  %905 = vst [vmem:[%s3 + $0xa8] sm:$0xf] %v777
  %906 = vst [vmem:[%s3 + $0xac] sm:$0xf] %v778
  %907 = vst [vmem:[%s3 + $0xb0] sm:$0xf] %v779
  %908 = vst [vmem:[%s3 + $0xb4] sm:$0xf] %v780
  %909 = vst [vmem:[%s3 + $0xb8] sm:$0xf] %v781
  %910 = vst [vmem:[%s3 + $0xbc] sm:$0xf] %v782
  %911 = vst [vmem:[%s3 + $0xc0] sm:$0xf] %v783
  %912 = vst [vmem:[%s3 + $0xc4] sm:$0xf] %v784
  %913 = vst [vmem:[%s3 + $0xc8] sm:$0xf] %v785
  %914 = vst [vmem:[%s3 + $0xcc] sm:$0xf] %v786
  %915 = vst [vmem:[%s3 + $0xd0] sm:$0xf] %v787
  %916 = vst [vmem:[%s3 + $0xd4] sm:$0xf] %v788
  %917 = vst [vmem:[%s3 + $0xd8] sm:$0xf] %v789
  %918 = vst [vmem:[%s3 + $0xdc] sm:$0xf] %v790
  %919 = vst [vmem:[%s3 + $0xe0] sm:$0xf] %v791
  %920 = vst [vmem:[%s3 + $0xe4] sm:$0xf] %v792
  %921 = vst [vmem:[%s3 + $0xe8] sm:$0xf] %v793
  %922 = vst [vmem:[%s3 + $0xec] sm:$0xf] %v794
  %923 = vst [vmem:[%s3 + $0xf0] sm:$0xf] %v795
  %924 = vst [vmem:[%s3 + $0xf4] sm:$0xf] %v796
  %925 = vst [vmem:[%s3 + $0xf8] sm:$0xf] %v797
  %926 = vst [vmem:[%s3 + $0xfc] sm:$0xf] %v798
  // Predicated region
  $region14: #{bottleneck_forward.7} parent=0 // pred_check
    _
  $region15: #{bottleneck_forward.7} parent=0 // pred_check_branch
    %928 = sbr.rel (0) target = $region17
  $region16: #{bottleneck_forward.7} parent=0 // pred_region
    _
  $region17: #{bottleneck_forward.7} parent=0 // pred_fallthru
    _
  // Predicated region
  $region18: #{bottleneck_forward.7} parent=0 // pred_check
    _
  $region19: #{bottleneck_forward.7} parent=0 // pred_check_branch
    %930 = sbr.rel (0) target = $region21
  $region20: #{bottleneck_forward.7} parent=0 // pred_region
    _
  $region21: #{bottleneck_forward.7} parent=0 // pred_fallthru
    _

// kernel: bottleneck_forward.6
$region0: #{bottleneck_forward.6}
  #allocation0 [shape = 'u32[]', space=smem, size = 0x4, offset = 0x4, fixed_abs, tag = 'smem constant byte address 0x4 - core index']
  #allocation1 [shape = 'u32[144,128]{1,0:T(1,128)}', space=vmem, size = 0x12000, scoped, tag = 'internal scratch']
  %s0 = inlined_call_operand.vmem [shape: bf16[512,128], index: 0, kind: input, shape index: {}]
  %s1 = inlined_call_operand.vmem [shape: bf16[128,128], index: 1, kind: input, shape index: {}]
  %s2 = inlined_call_operand.vmem [shape: bf16[512,128], index: 2, kind: output, shape index: {0}]
  %s3 = inlined_call_operand.vmem [shape: f32[1,8,128], index: 3, kind: output, shape index: {1}]
  %4 = xla_tuple %s2, %s3
  %s5 = sld [smem:[#allocation0]]
  $region26: #{bottleneck_forward.6} parent=0
    _
  %s7 = ssub.s32 1, %s5
  %s8 = scalar_select 0, %s7, %s5
  // Predicated region
  $region2: #{bottleneck_forward.6} parent=0 // pred_check
    _
  $region3: #{bottleneck_forward.6} parent=0 // pred_check_branch
    %10 = sbr.rel (0) target = $region5
  $region4: #{bottleneck_forward.6} parent=0 // pred_region
    _
  $region5: #{bottleneck_forward.6} parent=0 // pred_fallthru
    _
  // Predicated region
  $region6: #{bottleneck_forward.6} parent=0 // pred_check
    _
  $region7: #{bottleneck_forward.6} parent=0 // pred_check_branch
    %12 = sbr.rel (0) target = $region9
  $region8: #{bottleneck_forward.6} parent=0 // pred_region
    _
  $region9: #{bottleneck_forward.6} parent=0 // pred_fallthru
    _
  %v14 = vld [vmem:[%s0] sm:$0xf]
  %v15 = vld [vmem:[%s0 + $0x4] sm:$0xf]
  %v16 = vld [vmem:[%s0 + $0x8] sm:$0xf]
  %v17 = vld [vmem:[%s0 + $0xc] sm:$0xf]
  %v18 = vld [vmem:[%s0 + $0x10] sm:$0xf]
  %v19 = vld [vmem:[%s0 + $0x14] sm:$0xf]
  %v20 = vld [vmem:[%s0 + $0x18] sm:$0xf]
  %v21 = vld [vmem:[%s0 + $0x1c] sm:$0xf]
  %v22 = vld [vmem:[%s0 + $0x20] sm:$0xf]
  %v23 = vld [vmem:[%s0 + $0x24] sm:$0xf]
  %v24 = vld [vmem:[%s0 + $0x28] sm:$0xf]
  %v25 = vld [vmem:[%s0 + $0x2c] sm:$0xf]
  %v26 = vld [vmem:[%s0 + $0x30] sm:$0xf]
  %v27 = vld [vmem:[%s0 + $0x34] sm:$0xf]
  %v28 = vld [vmem:[%s0 + $0x38] sm:$0xf]
  %v29 = vld [vmem:[%s0 + $0x3c] sm:$0xf]
  %v30 = vld [vmem:[%s0 + $0x40] sm:$0xf]
  %v31 = vld [vmem:[%s0 + $0x44] sm:$0xf]
  %v32 = vld [vmem:[%s0 + $0x48] sm:$0xf]
  %v33 = vld [vmem:[%s0 + $0x4c] sm:$0xf]
  %v34 = vld [vmem:[%s0 + $0x50] sm:$0xf]
  %v35 = vld [vmem:[%s0 + $0x54] sm:$0xf]
  %v36 = vld [vmem:[%s0 + $0x58] sm:$0xf]
  %v37 = vld [vmem:[%s0 + $0x5c] sm:$0xf]
  %v38 = vld [vmem:[%s0 + $0x60] sm:$0xf]
  %v39 = vld [vmem:[%s0 + $0x64] sm:$0xf]
  %v40 = vld [vmem:[%s0 + $0x68] sm:$0xf]
  %v41 = vld [vmem:[%s0 + $0x6c] sm:$0xf]
  %v42 = vld [vmem:[%s0 + $0x70] sm:$0xf]
  %v43 = vld [vmem:[%s0 + $0x74] sm:$0xf]
  %v44 = vld [vmem:[%s0 + $0x78] sm:$0xf]
  %v45 = vld [vmem:[%s0 + $0x7c] sm:$0xf]
  %v46 = vld [vmem:[%s0 + $0x80] sm:$0xf]
  %v47 = vld [vmem:[%s0 + $0x84] sm:$0xf]
  %v48 = vld [vmem:[%s0 + $0x88] sm:$0xf]
  %v49 = vld [vmem:[%s0 + $0x8c] sm:$0xf]
  %v50 = vld [vmem:[%s0 + $0x90] sm:$0xf]
  %v51 = vld [vmem:[%s0 + $0x94] sm:$0xf]
  %v52 = vld [vmem:[%s0 + $0x98] sm:$0xf]
  %v53 = vld [vmem:[%s0 + $0x9c] sm:$0xf]
  %v54 = vld [vmem:[%s0 + $0xa0] sm:$0xf]
  %v55 = vld [vmem:[%s0 + $0xa4] sm:$0xf]
  %v56 = vld [vmem:[%s0 + $0xa8] sm:$0xf]
  %v57 = vld [vmem:[%s0 + $0xac] sm:$0xf]
  %v58 = vld [vmem:[%s0 + $0xb0] sm:$0xf]
  %v59 = vld [vmem:[%s0 + $0xb4] sm:$0xf]
  %v60 = vld [vmem:[%s0 + $0xb8] sm:$0xf]
  %v61 = vld [vmem:[%s0 + $0xbc] sm:$0xf]
  %v62 = vld [vmem:[%s0 + $0xc0] sm:$0xf]
  %v63 = vld [vmem:[%s0 + $0xc4] sm:$0xf]
  %v64 = vld [vmem:[%s0 + $0xc8] sm:$0xf]
  %v65 = vld [vmem:[%s0 + $0xcc] sm:$0xf]
  %v66 = vld [vmem:[%s0 + $0xd0] sm:$0xf]
  %v67 = vld [vmem:[%s0 + $0xd4] sm:$0xf]
  %v68 = vld [vmem:[%s0 + $0xd8] sm:$0xf]
  %v69 = vld [vmem:[%s0 + $0xdc] sm:$0xf]
  %v70 = vld [vmem:[%s0 + $0xe0] sm:$0xf]
  %v71 = vld [vmem:[%s0 + $0xe4] sm:$0xf]
  %v72 = vld [vmem:[%s0 + $0xe8] sm:$0xf]
  %v73 = vld [vmem:[%s0 + $0xec] sm:$0xf]
  %v74 = vld [vmem:[%s0 + $0xf0] sm:$0xf]
  %v75 = vld [vmem:[%s0 + $0xf4] sm:$0xf]
  %v76 = vld [vmem:[%s0 + $0xf8] sm:$0xf]
  %v77 = vld [vmem:[%s0 + $0xfc] sm:$0xf]
  %v78 = vld [vmem:[%s1] sm:$0xf]
  %v79 = vld [vmem:[%s1 + $0x4] sm:$0xf]
  %v80 = vld [vmem:[%s1 + $0x8] sm:$0xf]
  %v81 = vld [vmem:[%s1 + $0xc] sm:$0xf]
  %v82 = vld [vmem:[%s1 + $0x10] sm:$0xf]
  %v83 = vld [vmem:[%s1 + $0x14] sm:$0xf]
  %v84 = vld [vmem:[%s1 + $0x18] sm:$0xf]
  %v85 = vld [vmem:[%s1 + $0x1c] sm:$0xf]
  %v86 = vld [vmem:[%s1 + $0x20] sm:$0xf]
  %v87 = vld [vmem:[%s1 + $0x24] sm:$0xf]
  %v88 = vld [vmem:[%s1 + $0x28] sm:$0xf]
  %v89 = vld [vmem:[%s1 + $0x2c] sm:$0xf]
  %v90 = vld [vmem:[%s1 + $0x30] sm:$0xf]
  %v91 = vld [vmem:[%s1 + $0x34] sm:$0xf]
  %v92 = vld [vmem:[%s1 + $0x38] sm:$0xf]
  %v93 = vld [vmem:[%s1 + $0x3c] sm:$0xf]
  %v158 = vunpack.c.l.b16 %v14
  %v159 = vunpack.c.l.b16 %v15
  %v160 = vunpack.c.l.b16 %v16
  %v161 = vunpack.c.l.b16 %v17
  %v162 = vunpack.c.l.b16 %v18
  %v163 = vunpack.c.l.b16 %v19
  %v164 = vunpack.c.l.b16 %v20
  %v165 = vunpack.c.l.b16 %v21
  %v166 = vunpack.c.l.b16 %v22
  %v167 = vunpack.c.l.b16 %v23
  %v168 = vunpack.c.l.b16 %v24
  %v169 = vunpack.c.l.b16 %v25
  %v170 = vunpack.c.l.b16 %v26
  %v171 = vunpack.c.l.b16 %v27
  %v172 = vunpack.c.l.b16 %v28
  %v173 = vunpack.c.l.b16 %v29
  %v174 = vunpack.c.l.b16 %v30
  %v175 = vunpack.c.l.b16 %v31
  %v176 = vunpack.c.l.b16 %v32
  %v177 = vunpack.c.l.b16 %v33
  %v178 = vunpack.c.l.b16 %v34
  %v179 = vunpack.c.l.b16 %v35
  %v180 = vunpack.c.l.b16 %v36
  %v181 = vunpack.c.l.b16 %v37
  %v182 = vunpack.c.l.b16 %v38
  %v183 = vunpack.c.l.b16 %v39
  %v184 = vunpack.c.l.b16 %v40
  %v185 = vunpack.c.l.b16 %v41
  %v186 = vunpack.c.l.b16 %v42
  %v187 = vunpack.c.l.b16 %v43
  %v188 = vunpack.c.l.b16 %v44
  %v189 = vunpack.c.l.b16 %v45
  %v190 = vunpack.c.l.b16 %v46
  %v191 = vunpack.c.l.b16 %v47
  %v192 = vunpack.c.l.b16 %v48
  %v193 = vunpack.c.l.b16 %v49
  %v194 = vunpack.c.l.b16 %v50
  %v195 = vunpack.c.l.b16 %v51
  %v196 = vunpack.c.l.b16 %v52
  %v197 = vunpack.c.l.b16 %v53
  %v198 = vunpack.c.l.b16 %v54
  %v199 = vunpack.c.l.b16 %v55
  %v200 = vunpack.c.l.b16 %v56
  %v201 = vunpack.c.l.b16 %v57
  %v202 = vunpack.c.l.b16 %v58
  %v203 = vunpack.c.l.b16 %v59
  %v204 = vunpack.c.l.b16 %v60
  %v205 = vunpack.c.l.b16 %v61
  %v206 = vunpack.c.l.b16 %v62
  %v207 = vunpack.c.l.b16 %v63
  %v208 = vunpack.c.l.b16 %v64
  %v209 = vunpack.c.l.b16 %v65
  %v210 = vunpack.c.l.b16 %v66
  %v211 = vunpack.c.l.b16 %v67
  %v212 = vunpack.c.l.b16 %v68
  %v213 = vunpack.c.l.b16 %v69
  %v214 = vunpack.c.l.b16 %v70
  %v215 = vunpack.c.l.b16 %v71
  %v216 = vunpack.c.l.b16 %v72
  %v217 = vunpack.c.l.b16 %v73
  %v218 = vunpack.c.l.b16 %v74
  %v219 = vunpack.c.l.b16 %v75
  %v220 = vunpack.c.l.b16 %v76
  %v221 = vunpack.c.l.b16 %v77
  %v222 = vpack.c.b16 %v159, %v158
  %v223 = vpack.c.b16 %v161, %v160
  %v224 = vpack.c.b16 %v163, %v162
  %v225 = vpack.c.b16 %v165, %v164
  %v226 = vpack.c.b16 %v167, %v166
  %v227 = vpack.c.b16 %v169, %v168
  %v228 = vpack.c.b16 %v171, %v170
  %v229 = vpack.c.b16 %v173, %v172
  %v230 = vpack.c.b16 %v175, %v174
  %v231 = vpack.c.b16 %v177, %v176
  %v232 = vpack.c.b16 %v179, %v178
  %v233 = vpack.c.b16 %v181, %v180
  %v234 = vpack.c.b16 %v183, %v182
  %v235 = vpack.c.b16 %v185, %v184
  %v236 = vpack.c.b16 %v187, %v186
  %v237 = vpack.c.b16 %v189, %v188
  %v238 = vpack.c.b16 %v191, %v190
  %v239 = vpack.c.b16 %v193, %v192
  %v240 = vpack.c.b16 %v195, %v194
  %v241 = vpack.c.b16 %v197, %v196
  %v242 = vpack.c.b16 %v199, %v198
  %v243 = vpack.c.b16 %v201, %v200
  %v244 = vpack.c.b16 %v203, %v202
  %v245 = vpack.c.b16 %v205, %v204
  %v246 = vpack.c.b16 %v207, %v206
  %v247 = vpack.c.b16 %v209, %v208
  %v248 = vpack.c.b16 %v211, %v210
  %v249 = vpack.c.b16 %v213, %v212
  %v250 = vpack.c.b16 %v215, %v214
  %v251 = vpack.c.b16 %v217, %v216
  %v252 = vpack.c.b16 %v219, %v218
  %v253 = vpack.c.b16 %v221, %v220
  %v302 = vunpack.c.l.b16 %v78
  %v303 = vunpack.c.l.b16 %v79
  %v304 = vunpack.c.l.b16 %v80
  %v305 = vunpack.c.l.b16 %v81
  %v306 = vunpack.c.l.b16 %v82
  %v307 = vunpack.c.l.b16 %v83
  %v308 = vunpack.c.l.b16 %v84
  %v309 = vunpack.c.l.b16 %v85
  %v310 = vunpack.c.l.b16 %v86
  %v311 = vunpack.c.l.b16 %v87
  %v312 = vunpack.c.l.b16 %v88
  %v313 = vunpack.c.l.b16 %v89
  %v314 = vunpack.c.l.b16 %v90
  %v315 = vunpack.c.l.b16 %v91
  %v316 = vunpack.c.l.b16 %v92
  %v317 = vunpack.c.l.b16 %v93
  %v318 = vpack.c.b16 %v303, %v302
  %v319 = vpack.c.b16 %v305, %v304
  %v320 = vpack.c.b16 %v307, %v306
  %v321 = vpack.c.b16 %v309, %v308
  %v322 = vpack.c.b16 %v311, %v310
  %v323 = vpack.c.b16 %v313, %v312
  %v324 = vpack.c.b16 %v315, %v314
  %v325 = vpack.c.b16 %v317, %v316
  %334 = vmatprep.subr.bf16.mxu0 0
  %335 = vmatpush1.bf16.msra.mxu0 %v325
  %336 = vmatprep.subr.bf16.mxu0 0
  %337 = vmatpush1.bf16.msra.mxu0 %v324
  %338 = vmatprep.subr.bf16.mxu0 0
  %339 = vmatpush1.bf16.msra.mxu0 %v323
  %340 = vmatprep.subr.bf16.mxu0 0
  %341 = vmatpush1.bf16.msra.mxu0 %v322
  %342 = vmatprep.subr.bf16.mxu0 0
  %343 = vmatpush1.bf16.msra.mxu0 %v321
  %344 = vmatprep.subr.bf16.mxu0 0
  %345 = vmatpush1.bf16.msra.mxu0 %v320
  %346 = vmatprep.subr.bf16.mxu0 0
  %347 = vmatpush1.bf16.msra.mxu0 %v319
  %348 = vmatprep.subr.bf16.mxu0 0
  %349 = vmatpush1.bf16.msra.mxu0 %v318
  %350 = vmatprep.subr.bf16.mxu0 0
  %351 = vmatpush2.bf16.msra.mxu0 0
  %352 = vmatprep.subr.bf16.mxu0 0
  %353 = vmatpush2.bf16.msra.mxu0 0
  %354 = vmatprep.subr.bf16.mxu0 0
  %355 = vmatpush2.bf16.msra.mxu0 0
  %356 = vmatprep.subr.bf16.mxu0 0
  %357 = vmatpush2.bf16.msra.mxu0 0
  %358 = vmatprep.subr.bf16.mxu0 0
  %359 = vmatpush2.bf16.msra.mxu0 0
  %360 = vmatprep.subr.bf16.mxu0 0
  %361 = vmatpush2.bf16.msra.mxu0 0
  %362 = vmatprep.subr.bf16.mxu0 0
  %363 = vmatpush2.bf16.msra.mxu0 0
  %364 = vmatprep.subr.bf16.mxu0 0
  %365 = vmatpush2.bf16.msra.mxu0 0
  %366 = vmatprep.mubr.bf16.mxu0 0
  %367 = vmatmul.mubr.bf16.gmra.mxu0 %v222
  %v368 = vpop.f32.mrf.mxu0
  %v369 = vadd.f32 0.0, %v368
  %v370 = vpop.f32.mrf.mxu0
  %v371 = vpop.f32.mrf.mxu0
  %v372 = vadd.f32 0.0, %v371
  %v373 = vpop.f32.mrf.mxu0
  %374 = vmatprep.mubr.bf16.mxu0 0
  %375 = vmatmul.mubr.bf16.gmra.mxu0 %v223
  %v376 = vpop.f32.mrf.mxu0
  %v377 = vadd.f32 0.0, %v376
  %v378 = vpop.f32.mrf.mxu0
  %v379 = vpop.f32.mrf.mxu0
  %v380 = vadd.f32 0.0, %v379
  %v381 = vpop.f32.mrf.mxu0
  %382 = vmatprep.mubr.bf16.mxu0 0
  %383 = vmatmul.mubr.bf16.gmra.mxu0 %v224
  %v384 = vpop.f32.mrf.mxu0
  %v385 = vadd.f32 0.0, %v384
  %v386 = vpop.f32.mrf.mxu0
  %v387 = vpop.f32.mrf.mxu0
  %v388 = vadd.f32 0.0, %v387
  %v389 = vpop.f32.mrf.mxu0
  %390 = vmatprep.mubr.bf16.mxu0 0
  %391 = vmatmul.mubr.bf16.gmra.mxu0 %v225
  %v392 = vpop.f32.mrf.mxu0
  %v393 = vadd.f32 0.0, %v392
  %v394 = vpop.f32.mrf.mxu0
  %v395 = vpop.f32.mrf.mxu0
  %v396 = vadd.f32 0.0, %v395
  %v397 = vpop.f32.mrf.mxu0
  %398 = vmatprep.mubr.bf16.mxu0 0
  %399 = vmatmul.mubr.bf16.gmra.mxu0 %v226
  %v400 = vpop.f32.mrf.mxu0
  %v401 = vadd.f32 0.0, %v400
  %v402 = vpop.f32.mrf.mxu0
  %v403 = vpop.f32.mrf.mxu0
  %v404 = vadd.f32 0.0, %v403
  %v405 = vpop.f32.mrf.mxu0
  %406 = vmatprep.mubr.bf16.mxu0 0
  %407 = vmatmul.mubr.bf16.gmra.mxu0 %v227
  %v408 = vpop.f32.mrf.mxu0
  %v409 = vadd.f32 0.0, %v408
  %v410 = vpop.f32.mrf.mxu0
  %v411 = vpop.f32.mrf.mxu0
  %v412 = vadd.f32 0.0, %v411
  %v413 = vpop.f32.mrf.mxu0
  %414 = vmatprep.mubr.bf16.mxu0 0
  %415 = vmatmul.mubr.bf16.gmra.mxu0 %v228
  %v416 = vpop.f32.mrf.mxu0
  %v417 = vadd.f32 0.0, %v416
  %v418 = vpop.f32.mrf.mxu0
  %v419 = vpop.f32.mrf.mxu0
  %v420 = vadd.f32 0.0, %v419
  %v421 = vpop.f32.mrf.mxu0
  %422 = vmatprep.mubr.bf16.mxu0 0
  %423 = vmatmul.mubr.bf16.gmra.mxu0 %v229
  %v424 = vpop.f32.mrf.mxu0
  %v425 = vadd.f32 0.0, %v424
  %v426 = vpop.f32.mrf.mxu0
  %v427 = vpop.f32.mrf.mxu0
  %v428 = vadd.f32 0.0, %v427
  %v429 = vpop.f32.mrf.mxu0
  %430 = vmatprep.mubr.bf16.mxu0 0
  %431 = vmatmul.mubr.bf16.gmra.mxu0 %v230
  %v432 = vpop.f32.mrf.mxu0
  %v433 = vadd.f32 0.0, %v432
  %v434 = vpop.f32.mrf.mxu0
  %v435 = vpop.f32.mrf.mxu0
  %v436 = vadd.f32 0.0, %v435
  %v437 = vpop.f32.mrf.mxu0
  %438 = vmatprep.mubr.bf16.mxu0 0
  %439 = vmatmul.mubr.bf16.gmra.mxu0 %v231
  %v440 = vpop.f32.mrf.mxu0
  %v441 = vadd.f32 0.0, %v440
  %v442 = vpop.f32.mrf.mxu0
  %v443 = vpop.f32.mrf.mxu0
  %v444 = vadd.f32 0.0, %v443
  %v445 = vpop.f32.mrf.mxu0
  %446 = vmatprep.mubr.bf16.mxu0 0
  %447 = vmatmul.mubr.bf16.gmra.mxu0 %v232
  %v448 = vpop.f32.mrf.mxu0
  %v449 = vadd.f32 0.0, %v448
  %v450 = vpop.f32.mrf.mxu0
  %v451 = vpop.f32.mrf.mxu0
  %v452 = vadd.f32 0.0, %v451
  %v453 = vpop.f32.mrf.mxu0
  %454 = vmatprep.mubr.bf16.mxu0 0
  %455 = vmatmul.mubr.bf16.gmra.mxu0 %v233
  %v456 = vpop.f32.mrf.mxu0
  %v457 = vadd.f32 0.0, %v456
  %v458 = vpop.f32.mrf.mxu0
  %v459 = vpop.f32.mrf.mxu0
  %v460 = vadd.f32 0.0, %v459
  %v461 = vpop.f32.mrf.mxu0
  %462 = vmatprep.mubr.bf16.mxu0 0
  %463 = vmatmul.mubr.bf16.gmra.mxu0 %v234
  %v464 = vpop.f32.mrf.mxu0
  %v465 = vadd.f32 0.0, %v464
  %v466 = vpop.f32.mrf.mxu0
  %v467 = vpop.f32.mrf.mxu0
  %v468 = vadd.f32 0.0, %v467
  %v469 = vpop.f32.mrf.mxu0
  %470 = vmatprep.mubr.bf16.mxu0 0
  %471 = vmatmul.mubr.bf16.gmra.mxu0 %v235
  %v472 = vpop.f32.mrf.mxu0
  %v473 = vadd.f32 0.0, %v472
  %v474 = vpop.f32.mrf.mxu0
  %v475 = vpop.f32.mrf.mxu0
  %v476 = vadd.f32 0.0, %v475
  %v477 = vpop.f32.mrf.mxu0
  %478 = vmatprep.mubr.bf16.mxu0 0
  %479 = vmatmul.mubr.bf16.gmra.mxu0 %v236
  %v480 = vpop.f32.mrf.mxu0
  %v481 = vadd.f32 0.0, %v480
  %v482 = vpop.f32.mrf.mxu0
  %v483 = vpop.f32.mrf.mxu0
  %v484 = vadd.f32 0.0, %v483
  %v485 = vpop.f32.mrf.mxu0
  %486 = vmatprep.mubr.bf16.mxu0 0
  %487 = vmatmul.mubr.bf16.gmra.mxu0 %v237
  %v488 = vpop.f32.mrf.mxu0
  %v489 = vadd.f32 0.0, %v488
  %v490 = vpop.f32.mrf.mxu0
  %v491 = vpop.f32.mrf.mxu0
  %v492 = vadd.f32 0.0, %v491
  %v493 = vpop.f32.mrf.mxu0
  %494 = vmatprep.mubr.bf16.mxu0 0
  %495 = vmatmul.mubr.bf16.gmra.mxu0 %v238
  %v496 = vpop.f32.mrf.mxu0
  %v497 = vadd.f32 0.0, %v496
  %v498 = vpop.f32.mrf.mxu0
  %v499 = vpop.f32.mrf.mxu0
  %v500 = vadd.f32 0.0, %v499
  %v501 = vpop.f32.mrf.mxu0
  %502 = vmatprep.mubr.bf16.mxu0 0
  %503 = vmatmul.mubr.bf16.gmra.mxu0 %v239
  %v504 = vpop.f32.mrf.mxu0
  %v505 = vadd.f32 0.0, %v504
  %v506 = vpop.f32.mrf.mxu0
  %v507 = vpop.f32.mrf.mxu0
  %v508 = vadd.f32 0.0, %v507
  %v509 = vpop.f32.mrf.mxu0
  %510 = vmatprep.mubr.bf16.mxu0 0
  %511 = vmatmul.mubr.bf16.gmra.mxu0 %v240
  %v512 = vpop.f32.mrf.mxu0
  %v513 = vadd.f32 0.0, %v512
  %v514 = vpop.f32.mrf.mxu0
  %v515 = vpop.f32.mrf.mxu0
  %v516 = vadd.f32 0.0, %v515
  %v517 = vpop.f32.mrf.mxu0
  %518 = vmatprep.mubr.bf16.mxu0 0
  %519 = vmatmul.mubr.bf16.gmra.mxu0 %v241
  %v520 = vpop.f32.mrf.mxu0
  %v521 = vadd.f32 0.0, %v520
  %v522 = vpop.f32.mrf.mxu0
  %v523 = vpop.f32.mrf.mxu0
  %v524 = vadd.f32 0.0, %v523
  %v525 = vpop.f32.mrf.mxu0
  %526 = vmatprep.mubr.bf16.mxu0 0
  %527 = vmatmul.mubr.bf16.gmra.mxu0 %v242
  %v528 = vpop.f32.mrf.mxu0
  %v529 = vadd.f32 0.0, %v528
  %v530 = vpop.f32.mrf.mxu0
  %v531 = vpop.f32.mrf.mxu0
  %v532 = vadd.f32 0.0, %v531
  %v533 = vpop.f32.mrf.mxu0
  %534 = vmatprep.mubr.bf16.mxu0 0
  %535 = vmatmul.mubr.bf16.gmra.mxu0 %v243
  %v536 = vpop.f32.mrf.mxu0
  %v537 = vadd.f32 0.0, %v536
  %v538 = vpop.f32.mrf.mxu0
  %v539 = vpop.f32.mrf.mxu0
  %v540 = vadd.f32 0.0, %v539
  %v541 = vpop.f32.mrf.mxu0
  %542 = vmatprep.mubr.bf16.mxu0 0
  %543 = vmatmul.mubr.bf16.gmra.mxu0 %v244
  %v544 = vpop.f32.mrf.mxu0
  %v545 = vadd.f32 0.0, %v544
  %v546 = vpop.f32.mrf.mxu0
  %v547 = vpop.f32.mrf.mxu0
  %v548 = vadd.f32 0.0, %v547
  %v549 = vpop.f32.mrf.mxu0
  %550 = vmatprep.mubr.bf16.mxu0 0
  %551 = vmatmul.mubr.bf16.gmra.mxu0 %v245
  %v552 = vpop.f32.mrf.mxu0
  %v553 = vadd.f32 0.0, %v552
  %v554 = vpop.f32.mrf.mxu0
  %v555 = vpop.f32.mrf.mxu0
  %v556 = vadd.f32 0.0, %v555
  %v557 = vpop.f32.mrf.mxu0
  %558 = vmatprep.mubr.bf16.mxu0 0
  %559 = vmatmul.mubr.bf16.gmra.mxu0 %v246
  %v560 = vpop.f32.mrf.mxu0
  %v561 = vadd.f32 0.0, %v560
  %v562 = vpop.f32.mrf.mxu0
  %v563 = vpop.f32.mrf.mxu0
  %v564 = vadd.f32 0.0, %v563
  %v565 = vpop.f32.mrf.mxu0
  %566 = vmatprep.mubr.bf16.mxu0 0
  %567 = vmatmul.mubr.bf16.gmra.mxu0 %v247
  %v568 = vpop.f32.mrf.mxu0
  %v569 = vadd.f32 0.0, %v568
  %v570 = vpop.f32.mrf.mxu0
  %v571 = vpop.f32.mrf.mxu0
  %v572 = vadd.f32 0.0, %v571
  %v573 = vpop.f32.mrf.mxu0
  %574 = vmatprep.mubr.bf16.mxu0 0
  %575 = vmatmul.mubr.bf16.gmra.mxu0 %v248
  %v576 = vpop.f32.mrf.mxu0
  %v577 = vadd.f32 0.0, %v576
  %v578 = vpop.f32.mrf.mxu0
  %v579 = vpop.f32.mrf.mxu0
  %v580 = vadd.f32 0.0, %v579
  %v581 = vpop.f32.mrf.mxu0
  %582 = vmatprep.mubr.bf16.mxu0 0
  %583 = vmatmul.mubr.bf16.gmra.mxu0 %v249
  %v584 = vpop.f32.mrf.mxu0
  %v585 = vadd.f32 0.0, %v584
  %v586 = vpop.f32.mrf.mxu0
  %v587 = vpop.f32.mrf.mxu0
  %v588 = vadd.f32 0.0, %v587
  %v589 = vpop.f32.mrf.mxu0
  %590 = vmatprep.mubr.bf16.mxu0 0
  %591 = vmatmul.mubr.bf16.gmra.mxu0 %v250
  %v592 = vpop.f32.mrf.mxu0
  %v593 = vadd.f32 0.0, %v592
  %v594 = vpop.f32.mrf.mxu0
  %v595 = vpop.f32.mrf.mxu0
  %v596 = vadd.f32 0.0, %v595
  %v597 = vpop.f32.mrf.mxu0
  %598 = vmatprep.mubr.bf16.mxu0 0
  %599 = vmatmul.mubr.bf16.gmra.mxu0 %v251
  %v600 = vpop.f32.mrf.mxu0
  %v601 = vadd.f32 0.0, %v600
  %v602 = vpop.f32.mrf.mxu0
  %v603 = vpop.f32.mrf.mxu0
  %v604 = vadd.f32 0.0, %v603
  %v605 = vpop.f32.mrf.mxu0
  %606 = vmatprep.mubr.bf16.mxu0 0
  %607 = vmatmul.mubr.bf16.gmra.mxu0 %v252
  %v608 = vpop.f32.mrf.mxu0
  %v609 = vadd.f32 0.0, %v608
  %v610 = vpop.f32.mrf.mxu0
  %v611 = vpop.f32.mrf.mxu0
  %v612 = vadd.f32 0.0, %v611
  %v613 = vpop.f32.mrf.mxu0
  %614 = vmatprep.mubr.bf16.mxu0 0
  %615 = vmatmul.mubr.bf16.gmra.mxu0 %v253
  %v616 = vpop.f32.mrf.mxu0
  %v617 = vadd.f32 0.0, %v616
  %v618 = vpop.f32.mrf.mxu0
  %v619 = vpop.f32.mrf.mxu0
  %v620 = vadd.f32 0.0, %v619
  %v621 = vpop.f32.mrf.mxu0
  %622 = vdwg.mxu0
  %v623 = vpack.c.bf16 %v372, %v369
  %v624 = vpack.c.bf16 %v380, %v377
  %v625 = vpack.c.bf16 %v388, %v385
  %v626 = vpack.c.bf16 %v396, %v393
  %v627 = vpack.c.bf16 %v404, %v401
  %v628 = vpack.c.bf16 %v412, %v409
  %v629 = vpack.c.bf16 %v420, %v417
  %v630 = vpack.c.bf16 %v428, %v425
  %v631 = vpack.c.bf16 %v436, %v433
  %v632 = vpack.c.bf16 %v444, %v441
  %v633 = vpack.c.bf16 %v452, %v449
  %v634 = vpack.c.bf16 %v460, %v457
  %v635 = vpack.c.bf16 %v468, %v465
  %v636 = vpack.c.bf16 %v476, %v473
  %v637 = vpack.c.bf16 %v484, %v481
  %v638 = vpack.c.bf16 %v492, %v489
  %v639 = vpack.c.bf16 %v500, %v497
  %v640 = vpack.c.bf16 %v508, %v505
  %v641 = vpack.c.bf16 %v516, %v513
  %v642 = vpack.c.bf16 %v524, %v521
  %v643 = vpack.c.bf16 %v532, %v529
  %v644 = vpack.c.bf16 %v540, %v537
  %v645 = vpack.c.bf16 %v548, %v545
  %v646 = vpack.c.bf16 %v556, %v553
  %v647 = vpack.c.bf16 %v564, %v561
  %v648 = vpack.c.bf16 %v572, %v569
  %v649 = vpack.c.bf16 %v580, %v577
  %v650 = vpack.c.bf16 %v588, %v585
  %v651 = vpack.c.bf16 %v596, %v593
  %v652 = vpack.c.bf16 %v604, %v601
  %v653 = vpack.c.bf16 %v612, %v609
  %v654 = vpack.c.bf16 %v620, %v617
  %v687 = vunpack.c.l.b16 %v623
  %v688 = vunpack.c.h.b16 %v623
  %v689 = vunpack.c.l.b16 %v624
  %v690 = vunpack.c.h.b16 %v624
  %v691 = vunpack.c.l.b16 %v625
  %v692 = vunpack.c.h.b16 %v625
  %v693 = vunpack.c.l.b16 %v626
  %v694 = vunpack.c.h.b16 %v626
  %v695 = vunpack.c.l.b16 %v627
  %v696 = vunpack.c.h.b16 %v627
  %v697 = vunpack.c.l.b16 %v628
  %v698 = vunpack.c.h.b16 %v628
  %v699 = vunpack.c.l.b16 %v629
  %v700 = vunpack.c.h.b16 %v629
  %v701 = vunpack.c.l.b16 %v630
  %v702 = vunpack.c.h.b16 %v630
  %v703 = vunpack.c.l.b16 %v631
  %v704 = vunpack.c.h.b16 %v631
  %v705 = vunpack.c.l.b16 %v632
  %v706 = vunpack.c.h.b16 %v632
  %v707 = vunpack.c.l.b16 %v633
  %v708 = vunpack.c.h.b16 %v633
  %v709 = vunpack.c.l.b16 %v634
  %v710 = vunpack.c.h.b16 %v634
  %v711 = vunpack.c.l.b16 %v635
  %v712 = vunpack.c.h.b16 %v635
  %v713 = vunpack.c.l.b16 %v636
  %v714 = vunpack.c.h.b16 %v636
  %v715 = vunpack.c.l.b16 %v637
  %v716 = vunpack.c.h.b16 %v637
  %v717 = vunpack.c.l.b16 %v638
  %v718 = vunpack.c.h.b16 %v638
  %v719 = vunpack.c.l.b16 %v639
  %v720 = vunpack.c.h.b16 %v639
  %v721 = vunpack.c.l.b16 %v640
  %v722 = vunpack.c.h.b16 %v640
  %v723 = vunpack.c.l.b16 %v641
  %v724 = vunpack.c.h.b16 %v641
  %v725 = vunpack.c.l.b16 %v642
  %v726 = vunpack.c.h.b16 %v642
  %v727 = vunpack.c.l.b16 %v643
  %v728 = vunpack.c.h.b16 %v643
  %v729 = vunpack.c.l.b16 %v644
  %v730 = vunpack.c.h.b16 %v644
  %v731 = vunpack.c.l.b16 %v645
  %v732 = vunpack.c.h.b16 %v645
  %v733 = vunpack.c.l.b16 %v646
  %v734 = vunpack.c.h.b16 %v646
  %v735 = vunpack.c.l.b16 %v647
  %v736 = vunpack.c.h.b16 %v647
  %v737 = vunpack.c.l.b16 %v648
  %v738 = vunpack.c.h.b16 %v648
  %v739 = vunpack.c.l.b16 %v649
  %v740 = vunpack.c.h.b16 %v649
  %v741 = vunpack.c.l.b16 %v650
  %v742 = vunpack.c.h.b16 %v650
  %v743 = vunpack.c.l.b16 %v651
  %v744 = vunpack.c.h.b16 %v651
  %v745 = vunpack.c.l.b16 %v652
  %v746 = vunpack.c.h.b16 %v652
  %v747 = vunpack.c.l.b16 %v653
  %v748 = vunpack.c.h.b16 %v653
  %v749 = vunpack.c.l.b16 %v654
  %v750 = vunpack.c.h.b16 %v654
  %v751 = vpack.c.b16 %v687, %v687
  %v752 = vpack.c.b16 %v688, %v688
  %v753 = vpack.c.b16 %v689, %v689
  %v754 = vpack.c.b16 %v690, %v690
  %v755 = vpack.c.b16 %v691, %v691
  %v756 = vpack.c.b16 %v692, %v692
  %v757 = vpack.c.b16 %v693, %v693
  %v758 = vpack.c.b16 %v694, %v694
  %v759 = vpack.c.b16 %v695, %v695
  %v760 = vpack.c.b16 %v696, %v696
  %v761 = vpack.c.b16 %v697, %v697
  %v762 = vpack.c.b16 %v698, %v698
  %v763 = vpack.c.b16 %v699, %v699
  %v764 = vpack.c.b16 %v700, %v700
  %v765 = vpack.c.b16 %v701, %v701
  %v766 = vpack.c.b16 %v702, %v702
  %v767 = vpack.c.b16 %v703, %v703
  %v768 = vpack.c.b16 %v704, %v704
  %v769 = vpack.c.b16 %v705, %v705
  %v770 = vpack.c.b16 %v706, %v706
  %v771 = vpack.c.b16 %v707, %v707
  %v772 = vpack.c.b16 %v708, %v708
  %v773 = vpack.c.b16 %v709, %v709
  %v774 = vpack.c.b16 %v710, %v710
  %v775 = vpack.c.b16 %v711, %v711
  %v776 = vpack.c.b16 %v712, %v712
  %v777 = vpack.c.b16 %v713, %v713
  %v778 = vpack.c.b16 %v714, %v714
  %v779 = vpack.c.b16 %v715, %v715
  %v780 = vpack.c.b16 %v716, %v716
  %v781 = vpack.c.b16 %v717, %v717
  %v782 = vpack.c.b16 %v718, %v718
  %v783 = vpack.c.b16 %v719, %v719
  %v784 = vpack.c.b16 %v720, %v720
  %v785 = vpack.c.b16 %v721, %v721
  %v786 = vpack.c.b16 %v722, %v722
  %v787 = vpack.c.b16 %v723, %v723
  %v788 = vpack.c.b16 %v724, %v724
  %v789 = vpack.c.b16 %v725, %v725
  %v790 = vpack.c.b16 %v726, %v726
  %v791 = vpack.c.b16 %v727, %v727
  %v792 = vpack.c.b16 %v728, %v728
  %v793 = vpack.c.b16 %v729, %v729
  %v794 = vpack.c.b16 %v730, %v730
  %v795 = vpack.c.b16 %v731, %v731
  %v796 = vpack.c.b16 %v732, %v732
  %v797 = vpack.c.b16 %v733, %v733
  %v798 = vpack.c.b16 %v734, %v734
  %v799 = vpack.c.b16 %v735, %v735
  %v800 = vpack.c.b16 %v736, %v736
  %v801 = vpack.c.b16 %v737, %v737
  %v802 = vpack.c.b16 %v738, %v738
  %v803 = vpack.c.b16 %v739, %v739
  %v804 = vpack.c.b16 %v740, %v740
  %v805 = vpack.c.b16 %v741, %v741
  %v806 = vpack.c.b16 %v742, %v742
  %v807 = vpack.c.b16 %v743, %v743
  %v808 = vpack.c.b16 %v744, %v744
  %v809 = vpack.c.b16 %v745, %v745
  %v810 = vpack.c.b16 %v746, %v746
  %v811 = vpack.c.b16 %v747, %v747
  %v812 = vpack.c.b16 %v748, %v748
  %v813 = vpack.c.b16 %v749, %v749
  %v814 = vpack.c.b16 %v750, %v750
  %879 = vst [vmem:[%s2] sm:$0xf] %v751
  %880 = vst [vmem:[%s2 + $0x4] sm:$0xf] %v752
  %881 = vst [vmem:[%s2 + $0x8] sm:$0xf] %v753
  %882 = vst [vmem:[%s2 + $0xc] sm:$0xf] %v754
  %883 = vst [vmem:[%s2 + $0x10] sm:$0xf] %v755
  %884 = vst [vmem:[%s2 + $0x14] sm:$0xf] %v756
  %885 = vst [vmem:[%s2 + $0x18] sm:$0xf] %v757
  %886 = vst [vmem:[%s2 + $0x1c] sm:$0xf] %v758
  %887 = vst [vmem:[%s2 + $0x20] sm:$0xf] %v759
  %888 = vst [vmem:[%s2 + $0x24] sm:$0xf] %v760
  %889 = vst [vmem:[%s2 + $0x28] sm:$0xf] %v761
  %890 = vst [vmem:[%s2 + $0x2c] sm:$0xf] %v762
  %891 = vst [vmem:[%s2 + $0x30] sm:$0xf] %v763
  %892 = vst [vmem:[%s2 + $0x34] sm:$0xf] %v764
  %893 = vst [vmem:[%s2 + $0x38] sm:$0xf] %v765
  %894 = vst [vmem:[%s2 + $0x3c] sm:$0xf] %v766
  %895 = vst [vmem:[%s2 + $0x40] sm:$0xf] %v767
  %896 = vst [vmem:[%s2 + $0x44] sm:$0xf] %v768
  %897 = vst [vmem:[%s2 + $0x48] sm:$0xf] %v769
  %898 = vst [vmem:[%s2 + $0x4c] sm:$0xf] %v770
  %899 = vst [vmem:[%s2 + $0x50] sm:$0xf] %v771
  %900 = vst [vmem:[%s2 + $0x54] sm:$0xf] %v772
  %901 = vst [vmem:[%s2 + $0x58] sm:$0xf] %v773
  %902 = vst [vmem:[%s2 + $0x5c] sm:$0xf] %v774
  %903 = vst [vmem:[%s2 + $0x60] sm:$0xf] %v775
  %904 = vst [vmem:[%s2 + $0x64] sm:$0xf] %v776
  %905 = vst [vmem:[%s2 + $0x68] sm:$0xf] %v777
  %906 = vst [vmem:[%s2 + $0x6c] sm:$0xf] %v778
  %907 = vst [vmem:[%s2 + $0x70] sm:$0xf] %v779
  %908 = vst [vmem:[%s2 + $0x74] sm:$0xf] %v780
  %909 = vst [vmem:[%s2 + $0x78] sm:$0xf] %v781
  %910 = vst [vmem:[%s2 + $0x7c] sm:$0xf] %v782
  %911 = vst [vmem:[%s2 + $0x80] sm:$0xf] %v783
  %912 = vst [vmem:[%s2 + $0x84] sm:$0xf] %v784
  %913 = vst [vmem:[%s2 + $0x88] sm:$0xf] %v785
  %914 = vst [vmem:[%s2 + $0x8c] sm:$0xf] %v786
  %915 = vst [vmem:[%s2 + $0x90] sm:$0xf] %v787
  %916 = vst [vmem:[%s2 + $0x94] sm:$0xf] %v788
  %917 = vst [vmem:[%s2 + $0x98] sm:$0xf] %v789
  %918 = vst [vmem:[%s2 + $0x9c] sm:$0xf] %v790
  %919 = vst [vmem:[%s2 + $0xa0] sm:$0xf] %v791
  %920 = vst [vmem:[%s2 + $0xa4] sm:$0xf] %v792
  %921 = vst [vmem:[%s2 + $0xa8] sm:$0xf] %v793
  %922 = vst [vmem:[%s2 + $0xac] sm:$0xf] %v794
  %923 = vst [vmem:[%s2 + $0xb0] sm:$0xf] %v795
  %924 = vst [vmem:[%s2 + $0xb4] sm:$0xf] %v796
  %925 = vst [vmem:[%s2 + $0xb8] sm:$0xf] %v797
  %926 = vst [vmem:[%s2 + $0xbc] sm:$0xf] %v798
  %927 = vst [vmem:[%s2 + $0xc0] sm:$0xf] %v799
  %928 = vst [vmem:[%s2 + $0xc4] sm:$0xf] %v800
  %929 = vst [vmem:[%s2 + $0xc8] sm:$0xf] %v801
  %930 = vst [vmem:[%s2 + $0xcc] sm:$0xf] %v802
  %931 = vst [vmem:[%s2 + $0xd0] sm:$0xf] %v803
  %932 = vst [vmem:[%s2 + $0xd4] sm:$0xf] %v804
  %933 = vst [vmem:[%s2 + $0xd8] sm:$0xf] %v805
  %934 = vst [vmem:[%s2 + $0xdc] sm:$0xf] %v806
  %935 = vst [vmem:[%s2 + $0xe0] sm:$0xf] %v807
  %936 = vst [vmem:[%s2 + $0xe4] sm:$0xf] %v808
  %937 = vst [vmem:[%s2 + $0xe8] sm:$0xf] %v809
  %938 = vst [vmem:[%s2 + $0xec] sm:$0xf] %v810
  %939 = vst [vmem:[%s2 + $0xf0] sm:$0xf] %v811
  %940 = vst [vmem:[%s2 + $0xf4] sm:$0xf] %v812
  %941 = vst [vmem:[%s2 + $0xf8] sm:$0xf] %v813
  %942 = vst [vmem:[%s2 + $0xfc] sm:$0xf] %v814
  %v943 = vadd.f32 %v369, %v372
  %v944 = vadd.f32 %v943, %v377
  %v945 = vadd.f32 %v944, %v380
  %v946 = vadd.f32 %v945, %v385
  %v947 = vadd.f32 %v946, %v388
  %v948 = vadd.f32 %v947, %v393
  %v949 = vadd.f32 %v948, %v396
  %v950 = vadd.f32 %v949, %v401
  %v951 = vadd.f32 %v950, %v404
  %v952 = vadd.f32 %v951, %v409
  %v953 = vadd.f32 %v952, %v412
  %v954 = vadd.f32 %v953, %v417
  %v955 = vadd.f32 %v954, %v420
  %v956 = vadd.f32 %v955, %v425
  %v957 = vadd.f32 %v956, %v428
  %v958 = vadd.f32 %v957, %v433
  %v959 = vadd.f32 %v958, %v436
  %v960 = vadd.f32 %v959, %v441
  %v961 = vadd.f32 %v960, %v444
  %v962 = vadd.f32 %v961, %v449
  %v963 = vadd.f32 %v962, %v452
  %v964 = vadd.f32 %v963, %v457
  %v965 = vadd.f32 %v964, %v460
  %v966 = vadd.f32 %v965, %v465
  %v967 = vadd.f32 %v966, %v468
  %v968 = vadd.f32 %v967, %v473
  %v969 = vadd.f32 %v968, %v476
  %v970 = vadd.f32 %v969, %v481
  %v971 = vadd.f32 %v970, %v484
  %v972 = vadd.f32 %v971, %v489
  %v973 = vadd.f32 %v972, %v492
  %v974 = vadd.f32 %v973, %v497
  %v975 = vadd.f32 %v974, %v500
  %v976 = vadd.f32 %v975, %v505
  %v977 = vadd.f32 %v976, %v508
  %v978 = vadd.f32 %v977, %v513
  %v979 = vadd.f32 %v978, %v516
  %v980 = vadd.f32 %v979, %v521
  %v981 = vadd.f32 %v980, %v524
  %v982 = vadd.f32 %v981, %v529
  %v983 = vadd.f32 %v982, %v532
  %v984 = vadd.f32 %v983, %v537
  %v985 = vadd.f32 %v984, %v540
  %v986 = vadd.f32 %v985, %v545
  %v987 = vadd.f32 %v986, %v548
  %v988 = vadd.f32 %v987, %v553
  %v989 = vadd.f32 %v988, %v556
  %v990 = vadd.f32 %v989, %v561
  %v991 = vadd.f32 %v990, %v564
  %v992 = vadd.f32 %v991, %v569
  %v993 = vadd.f32 %v992, %v572
  %v994 = vadd.f32 %v993, %v577
  %v995 = vadd.f32 %v994, %v580
  %v996 = vadd.f32 %v995, %v585
  %v997 = vadd.f32 %v996, %v588
  %v998 = vadd.f32 %v997, %v593
  %v999 = vadd.f32 %v998, %v596
  %v1000 = vadd.f32 %v999, %v601
  %v1001 = vadd.f32 %v1000, %v604
  %v1002 = vadd.f32 %v1001, %v609
  %v1003 = vadd.f32 %v1002, %v612
  %v1004 = vadd.f32 %v1003, %v617
  %v1005 = vadd.f32 %v1004, %v620
  %v1006 = vrot.slane %v1005, 4
  %v1007 = vadd.f32 %v1005, %v1006
  %v1008 = vrot.slane %v1007, 2
  %v1009 = vadd.f32 %v1007, %v1008
  %v1010 = vrot.slane %v1009, 1
  %v1011 = vadd.f32 %v1009, %v1010
  %v1012 = vmul.f32 %v369, %v369
  %v1013 = vmul.f32 %v372, %v372
  %v1014 = vmul.f32 %v377, %v377
  %v1015 = vmul.f32 %v380, %v380
  %v1016 = vmul.f32 %v385, %v385
  %v1017 = vmul.f32 %v388, %v388
  %v1018 = vmul.f32 %v393, %v393
  %v1019 = vmul.f32 %v396, %v396
  %v1020 = vmul.f32 %v401, %v401
  %v1021 = vmul.f32 %v404, %v404
  %v1022 = vmul.f32 %v409, %v409
  %v1023 = vmul.f32 %v412, %v412
  %v1024 = vmul.f32 %v417, %v417
  %v1025 = vmul.f32 %v420, %v420
  %v1026 = vmul.f32 %v425, %v425
  %v1027 = vmul.f32 %v428, %v428
  %v1028 = vmul.f32 %v433, %v433
  %v1029 = vmul.f32 %v436, %v436
  %v1030 = vmul.f32 %v441, %v441
  %v1031 = vmul.f32 %v444, %v444
  %v1032 = vmul.f32 %v449, %v449
  %v1033 = vmul.f32 %v452, %v452
  %v1034 = vmul.f32 %v457, %v457
  %v1035 = vmul.f32 %v460, %v460
  %v1036 = vmul.f32 %v465, %v465
  %v1037 = vmul.f32 %v468, %v468
  %v1038 = vmul.f32 %v473, %v473
  %v1039 = vmul.f32 %v476, %v476
  %v1040 = vmul.f32 %v481, %v481
  %v1041 = vmul.f32 %v484, %v484
  %v1042 = vmul.f32 %v489, %v489
  %v1043 = vmul.f32 %v492, %v492
  %v1044 = vmul.f32 %v497, %v497
  %v1045 = vmul.f32 %v500, %v500
  %v1046 = vmul.f32 %v505, %v505
  %v1047 = vmul.f32 %v508, %v508
  %v1048 = vmul.f32 %v513, %v513
  %v1049 = vmul.f32 %v516, %v516
  %v1050 = vmul.f32 %v521, %v521
  %v1051 = vmul.f32 %v524, %v524
  %v1052 = vmul.f32 %v529, %v529
  %v1053 = vmul.f32 %v532, %v532
  %v1054 = vmul.f32 %v537, %v537
  %v1055 = vmul.f32 %v540, %v540
  %v1056 = vmul.f32 %v545, %v545
  %v1057 = vmul.f32 %v548, %v548
  %v1058 = vmul.f32 %v553, %v553
  %v1059 = vmul.f32 %v556, %v556
  %v1060 = vmul.f32 %v561, %v561
  %v1061 = vmul.f32 %v564, %v564
  %v1062 = vmul.f32 %v569, %v569
  %v1063 = vmul.f32 %v572, %v572
  %v1064 = vmul.f32 %v577, %v577
  %v1065 = vmul.f32 %v580, %v580
  %v1066 = vmul.f32 %v585, %v585
  %v1067 = vmul.f32 %v588, %v588
  %v1068 = vmul.f32 %v593, %v593
  %v1069 = vmul.f32 %v596, %v596
  %v1070 = vmul.f32 %v601, %v601
  %v1071 = vmul.f32 %v604, %v604
  %v1072 = vmul.f32 %v609, %v609
  %v1073 = vmul.f32 %v612, %v612
  %v1074 = vmul.f32 %v617, %v617
  %v1075 = vmul.f32 %v620, %v620
  %v1076 = vadd.f32 %v1012, %v1013
  %v1077 = vadd.f32 %v1076, %v1014
  %v1078 = vadd.f32 %v1077, %v1015
  %v1079 = vadd.f32 %v1078, %v1016
  %v1080 = vadd.f32 %v1079, %v1017
  %v1081 = vadd.f32 %v1080, %v1018
  %v1082 = vadd.f32 %v1081, %v1019
  %v1083 = vadd.f32 %v1082, %v1020
  %v1084 = vadd.f32 %v1083, %v1021
  %v1085 = vadd.f32 %v1084, %v1022
  %v1086 = vadd.f32 %v1085, %v1023
  %v1087 = vadd.f32 %v1086, %v1024
  %v1088 = vadd.f32 %v1087, %v1025
  %v1089 = vadd.f32 %v1088, %v1026
  %v1090 = vadd.f32 %v1089, %v1027
  %v1091 = vadd.f32 %v1090, %v1028
  %v1092 = vadd.f32 %v1091, %v1029
  %v1093 = vadd.f32 %v1092, %v1030
  %v1094 = vadd.f32 %v1093, %v1031
  %v1095 = vadd.f32 %v1094, %v1032
  %v1096 = vadd.f32 %v1095, %v1033
  %v1097 = vadd.f32 %v1096, %v1034
  %v1098 = vadd.f32 %v1097, %v1035
  %v1099 = vadd.f32 %v1098, %v1036
  %v1100 = vadd.f32 %v1099, %v1037
  %v1101 = vadd.f32 %v1100, %v1038
  %v1102 = vadd.f32 %v1101, %v1039
  %v1103 = vadd.f32 %v1102, %v1040
  %v1104 = vadd.f32 %v1103, %v1041
  %v1105 = vadd.f32 %v1104, %v1042
  %v1106 = vadd.f32 %v1105, %v1043
  %v1107 = vadd.f32 %v1106, %v1044
  %v1108 = vadd.f32 %v1107, %v1045
  %v1109 = vadd.f32 %v1108, %v1046
  %v1110 = vadd.f32 %v1109, %v1047
  %v1111 = vadd.f32 %v1110, %v1048
  %v1112 = vadd.f32 %v1111, %v1049
  %v1113 = vadd.f32 %v1112, %v1050
  %v1114 = vadd.f32 %v1113, %v1051
  %v1115 = vadd.f32 %v1114, %v1052
  %v1116 = vadd.f32 %v1115, %v1053
  %v1117 = vadd.f32 %v1116, %v1054
  %v1118 = vadd.f32 %v1117, %v1055
  %v1119 = vadd.f32 %v1118, %v1056
  %v1120 = vadd.f32 %v1119, %v1057
  %v1121 = vadd.f32 %v1120, %v1058
  %v1122 = vadd.f32 %v1121, %v1059
  %v1123 = vadd.f32 %v1122, %v1060
  %v1124 = vadd.f32 %v1123, %v1061
  %v1125 = vadd.f32 %v1124, %v1062
  %v1126 = vadd.f32 %v1125, %v1063
  %v1127 = vadd.f32 %v1126, %v1064
  %v1128 = vadd.f32 %v1127, %v1065
  %v1129 = vadd.f32 %v1128, %v1066
  %v1130 = vadd.f32 %v1129, %v1067
  %v1131 = vadd.f32 %v1130, %v1068
  %v1132 = vadd.f32 %v1131, %v1069
  %v1133 = vadd.f32 %v1132, %v1070
  %v1134 = vadd.f32 %v1133, %v1071
  %v1135 = vadd.f32 %v1134, %v1072
  %v1136 = vadd.f32 %v1135, %v1073
  %v1137 = vadd.f32 %v1136, %v1074
  %v1138 = vadd.f32 %v1137, %v1075
  %v1139 = vrot.slane %v1138, 4
  %v1140 = vadd.f32 %v1138, %v1139
  %v1141 = vrot.slane %v1140, 2
  %v1142 = vadd.f32 %v1140, %v1141
  %v1143 = vrot.slane %v1142, 1
  %v1144 = vadd.f32 %v1142, %v1143
  %v1145 = vlaneseq
  %v1146 = vshrl.u32 %v1145, 7
  %vm1147 = vcmp.eq.s32.totalorder %v1146, 0
  %vm1148 = vcmp.eq.s32.totalorder %v1146, 1
  %v1149 = vsel %vm1148, %v1144, 0.0
  %v1150 = vsel %vm1147, %v1011, %v1149
  %1151 = vst [vmem:[%s3] sm:$0xff] %v1150
  // Predicated region
  $region10: #{bottleneck_forward.6} parent=0 // pred_check
    _
  $region11: #{bottleneck_forward.6} parent=0 // pred_check_branch
    %1153 = sbr.rel (0) target = $region13
  $region12: #{bottleneck_forward.6} parent=0 // pred_region
    _
  $region13: #{bottleneck_forward.6} parent=0 // pred_fallthru
    _
  // Predicated region
  $region14: #{bottleneck_forward.6} parent=0 // pred_check
    _
  $region15: #{bottleneck_forward.6} parent=0 // pred_check_branch
    %1155 = sbr.rel (0) target = $region17
  $region16: #{bottleneck_forward.6} parent=0 // pred_region
    _
  $region17: #{bottleneck_forward.6} parent=0 // pred_fallthru
    _
  // Predicated region
  $region18: #{bottleneck_forward.6} parent=0 // pred_check
    _
  $region19: #{bottleneck_forward.6} parent=0 // pred_check_branch
    %1157 = sbr.rel (0) target = $region21
  $region20: #{bottleneck_forward.6} parent=0 // pred_region
    _
  $region21: #{bottleneck_forward.6} parent=0 // pred_fallthru
    _
  // Predicated region
  $region22: #{bottleneck_forward.6} parent=0 // pred_check
    _
  $region23: #{bottleneck_forward.6} parent=0 // pred_check_branch
    %1159 = sbr.rel (0) target = $region25
  $region24: #{bottleneck_forward.6} parent=0 // pred_region
    _
  $region25: #{bottleneck_forward.6} parent=0 // pred_fallthru
    _

// kernel: bottleneck_forward.9
$region0: #{bottleneck_forward.9}
  #allocation0 [shape = 'u32[]', space=smem, size = 0x4, offset = 0x4, fixed_abs, tag = 'smem constant byte address 0x4 - core index']
  #allocation1 [shape = 'u32[144,128]{1,0:T(1,128)}', space=vmem, size = 0x12000, scoped, tag = 'internal scratch']
  %s0 = inlined_call_operand.vmem [shape: bf16[128,128], index: 0, kind: input, shape index: {}]
  %s1 = inlined_call_operand.vmem [shape: f32[1,128], index: 1, kind: input, shape index: {}]
  %s2 = inlined_call_operand.vmem [shape: f32[1,128], index: 2, kind: input, shape index: {}]
  %s3 = inlined_call_operand.vmem [shape: bf16[128,128], index: 3, kind: input, shape index: {}]
  %s4 = inlined_call_operand.vmem [shape: bf16[128,128], index: 4, kind: output, shape index: {0}]
  %s5 = inlined_call_operand.vmem [shape: f32[1,8,128], index: 5, kind: output, shape index: {1}]
  %6 = xla_tuple %s4, %s5
  %s7 = sld [smem:[#allocation0]]
  $region34: #{bottleneck_forward.9} parent=0
    _
  %s9 = ssub.s32 1, %s7
  %s10 = scalar_select 0, %s9, %s7
  // Predicated region
  $region2: #{bottleneck_forward.9} parent=0 // pred_check
    _
  $region3: #{bottleneck_forward.9} parent=0 // pred_check_branch
    %12 = sbr.rel (0) target = $region5
  $region4: #{bottleneck_forward.9} parent=0 // pred_region
    _
  $region5: #{bottleneck_forward.9} parent=0 // pred_fallthru
    _
  // Predicated region
  $region6: #{bottleneck_forward.9} parent=0 // pred_check
    _
  $region7: #{bottleneck_forward.9} parent=0 // pred_check_branch
    %14 = sbr.rel (0) target = $region9
  $region8: #{bottleneck_forward.9} parent=0 // pred_region
    _
  $region9: #{bottleneck_forward.9} parent=0 // pred_fallthru
    _
  // Predicated region
  $region10: #{bottleneck_forward.9} parent=0 // pred_check
    _
  $region11: #{bottleneck_forward.9} parent=0 // pred_check_branch
    %16 = sbr.rel (0) target = $region13
  $region12: #{bottleneck_forward.9} parent=0 // pred_region
    _
  $region13: #{bottleneck_forward.9} parent=0 // pred_fallthru
    _
  // Predicated region
  $region14: #{bottleneck_forward.9} parent=0 // pred_check
    _
  $region15: #{bottleneck_forward.9} parent=0 // pred_check_branch
    %18 = sbr.rel (0) target = $region17
  $region16: #{bottleneck_forward.9} parent=0 // pred_region
    _
  $region17: #{bottleneck_forward.9} parent=0 // pred_fallthru
    _
  %v20 = vld [vmem:[%s0] sm:$0xf]
  %v21 = vld [vmem:[%s0 + $0x4] sm:$0xf]
  %v22 = vld [vmem:[%s0 + $0x8] sm:$0xf]
  %v23 = vld [vmem:[%s0 + $0xc] sm:$0xf]
  %v24 = vld [vmem:[%s0 + $0x10] sm:$0xf]
  %v25 = vld [vmem:[%s0 + $0x14] sm:$0xf]
  %v26 = vld [vmem:[%s0 + $0x18] sm:$0xf]
  %v27 = vld [vmem:[%s0 + $0x1c] sm:$0xf]
  %v28 = vld [vmem:[%s0 + $0x20] sm:$0xf]
  %v29 = vld [vmem:[%s0 + $0x24] sm:$0xf]
  %v30 = vld [vmem:[%s0 + $0x28] sm:$0xf]
  %v31 = vld [vmem:[%s0 + $0x2c] sm:$0xf]
  %v32 = vld [vmem:[%s0 + $0x30] sm:$0xf]
  %v33 = vld [vmem:[%s0 + $0x34] sm:$0xf]
  %v34 = vld [vmem:[%s0 + $0x38] sm:$0xf]
  %v35 = vld [vmem:[%s0 + $0x3c] sm:$0xf]
  %v36 = vunpack.c.l.bf16 %v20
  %v37 = vunpack.c.l.bf16 %v21
  %v38 = vunpack.c.l.bf16 %v22
  %v39 = vunpack.c.l.bf16 %v23
  %v40 = vunpack.c.l.bf16 %v24
  %v41 = vunpack.c.l.bf16 %v25
  %v42 = vunpack.c.l.bf16 %v26
  %v43 = vunpack.c.l.bf16 %v27
  %v44 = vunpack.c.l.bf16 %v28
  %v45 = vunpack.c.l.bf16 %v29
  %v46 = vunpack.c.l.bf16 %v30
  %v47 = vunpack.c.l.bf16 %v31
  %v48 = vunpack.c.l.bf16 %v32
  %v49 = vunpack.c.l.bf16 %v33
  %v50 = vunpack.c.l.bf16 %v34
  %v51 = vunpack.c.l.bf16 %v35
  %v52 = vld [vmem:[%s1] sm:$0x1]
  %v54 = vlaneseq
  %v55 = vshrl.u32 %v54, 7
  %v56 = vsub.s32 0, %v55
  %v57 = vrot.slane %v52, %v56
  %v59 = vmul.f32 %v36, %v57
  %v60 = vmul.f32 %v37, %v57
  %v61 = vmul.f32 %v38, %v57
  %v62 = vmul.f32 %v39, %v57
  %v63 = vmul.f32 %v40, %v57
  %v64 = vmul.f32 %v41, %v57
  %v65 = vmul.f32 %v42, %v57
  %v66 = vmul.f32 %v43, %v57
  %v67 = vmul.f32 %v44, %v57
  %v68 = vmul.f32 %v45, %v57
  %v69 = vmul.f32 %v46, %v57
  %v70 = vmul.f32 %v47, %v57
  %v71 = vmul.f32 %v48, %v57
  %v72 = vmul.f32 %v49, %v57
  %v73 = vmul.f32 %v50, %v57
  %v74 = vmul.f32 %v51, %v57
  %v75 = vld [vmem:[%s2] sm:$0x1]
  %v77 = vlaneseq
  %v78 = vshrl.u32 %v77, 7
  %v79 = vsub.s32 0, %v78
  %v80 = vrot.slane %v75, %v79
  %v82 = vadd.f32 %v59, %v80
  %v83 = vadd.f32 %v60, %v80
  %v84 = vadd.f32 %v61, %v80
  %v85 = vadd.f32 %v62, %v80
  %v86 = vadd.f32 %v63, %v80
  %v87 = vadd.f32 %v64, %v80
  %v88 = vadd.f32 %v65, %v80
  %v89 = vadd.f32 %v66, %v80
  %v90 = vadd.f32 %v67, %v80
  %v91 = vadd.f32 %v68, %v80
  %v92 = vadd.f32 %v69, %v80
  %v93 = vadd.f32 %v70, %v80
  %v94 = vadd.f32 %v71, %v80
  %v95 = vadd.f32 %v72, %v80
  %v96 = vadd.f32 %v73, %v80
  %v97 = vadd.f32 %v74, %v80
  %v98 = vmax.f32 %v82, 0.0
  %v99 = vmax.f32 %v83, 0.0
  %v100 = vmax.f32 %v84, 0.0
  %v101 = vmax.f32 %v85, 0.0
  %v102 = vmax.f32 %v86, 0.0
  %v103 = vmax.f32 %v87, 0.0
  %v104 = vmax.f32 %v88, 0.0
  %v105 = vmax.f32 %v89, 0.0
  %v106 = vmax.f32 %v90, 0.0
  %v107 = vmax.f32 %v91, 0.0
  %v108 = vmax.f32 %v92, 0.0
  %v109 = vmax.f32 %v93, 0.0
  %v110 = vmax.f32 %v94, 0.0
  %v111 = vmax.f32 %v95, 0.0
  %v112 = vmax.f32 %v96, 0.0
  %v113 = vmax.f32 %v97, 0.0
  %v114 = vlaneseq
  %v115 = vshrl.u32 %v114, 7
  %v116 = vadd.s32 %v115, 8
  %v117 = vadd.s32 %v115, 16
  %v118 = vadd.s32 %v115, 24
  %v119 = vadd.s32 %v115, 32
  %v120 = vadd.s32 %v115, 40
  %v121 = vadd.s32 %v115, 48
  %v122 = vadd.s32 %v115, 56
  %v123 = vadd.s32 %v115, 64
  %v124 = vadd.s32 %v115, 72
  %v125 = vadd.s32 %v115, 80
  %v126 = vadd.s32 %v115, 88
  %v127 = vadd.s32 %v115, 96
  %v128 = vadd.s32 %v115, 104
  %v129 = vadd.s32 %v115, 112
  %v130 = vadd.s32 %v115, 120
  %s131 = smul.u32 0, 128
  %v132 = vstv %s131
  %v133 = vadd.s32 %v115, %v132
  %v134 = vadd.s32 %v116, %v132
  %v135 = vadd.s32 %v117, %v132
  %v136 = vadd.s32 %v118, %v132
  %v137 = vadd.s32 %v119, %v132
  %v138 = vadd.s32 %v120, %v132
  %v139 = vadd.s32 %v121, %v132
  %v140 = vadd.s32 %v122, %v132
  %v141 = vadd.s32 %v123, %v132
  %v142 = vadd.s32 %v124, %v132
  %v143 = vadd.s32 %v125, %v132
  %v144 = vadd.s32 %v126, %v132
  %v145 = vadd.s32 %v127, %v132
  %v146 = vadd.s32 %v128, %v132
  %v147 = vadd.s32 %v129, %v132
  %v148 = vadd.s32 %v130, %v132
  %vm149 = vcmp.lt.s32.totalorder %v133, 128
  %vm150 = vcmp.lt.s32.totalorder %v134, 128
  %vm151 = vcmp.lt.s32.totalorder %v135, 128
  %vm152 = vcmp.lt.s32.totalorder %v136, 128
  %vm153 = vcmp.lt.s32.totalorder %v137, 128
  %vm154 = vcmp.lt.s32.totalorder %v138, 128
  %vm155 = vcmp.lt.s32.totalorder %v139, 128
  %vm156 = vcmp.lt.s32.totalorder %v140, 128
  %vm157 = vcmp.lt.s32.totalorder %v141, 128
  %vm158 = vcmp.lt.s32.totalorder %v142, 128
  %vm159 = vcmp.lt.s32.totalorder %v143, 128
  %vm160 = vcmp.lt.s32.totalorder %v144, 128
  %vm161 = vcmp.lt.s32.totalorder %v145, 128
  %vm162 = vcmp.lt.s32.totalorder %v146, 128
  %vm163 = vcmp.lt.s32.totalorder %v147, 128
  %vm164 = vcmp.lt.s32.totalorder %v148, 128
  %v165 = vsel %vm149, %v98, 0.0
  %v166 = vsel %vm150, %v99, 0.0
  %v167 = vsel %vm151, %v100, 0.0
  %v168 = vsel %vm152, %v101, 0.0
  %v169 = vsel %vm153, %v102, 0.0
  %v170 = vsel %vm154, %v103, 0.0
  %v171 = vsel %vm155, %v104, 0.0
  %v172 = vsel %vm156, %v105, 0.0
  %v173 = vsel %vm157, %v106, 0.0
  %v174 = vsel %vm158, %v107, 0.0
  %v175 = vsel %vm159, %v108, 0.0
  %v176 = vsel %vm160, %v109, 0.0
  %v177 = vsel %vm161, %v110, 0.0
  %v178 = vsel %vm162, %v111, 0.0
  %v179 = vsel %vm163, %v112, 0.0
  %v180 = vsel %vm164, %v113, 0.0
  %v181 = vpack.c.bf16 %v166, %v165
  %v182 = vpack.c.bf16 %v168, %v167
  %v183 = vpack.c.bf16 %v170, %v169
  %v184 = vpack.c.bf16 %v172, %v171
  %v185 = vpack.c.bf16 %v174, %v173
  %v186 = vpack.c.bf16 %v176, %v175
  %v187 = vpack.c.bf16 %v178, %v177
  %v188 = vpack.c.bf16 %v180, %v179
  %v189 = vld [vmem:[%s3] sm:$0xf]
  %v190 = vld [vmem:[%s3 + $0x4] sm:$0xf]
  %v191 = vld [vmem:[%s3 + $0x8] sm:$0xf]
  %v192 = vld [vmem:[%s3 + $0xc] sm:$0xf]
  %v193 = vld [vmem:[%s3 + $0x10] sm:$0xf]
  %v194 = vld [vmem:[%s3 + $0x14] sm:$0xf]
  %v195 = vld [vmem:[%s3 + $0x18] sm:$0xf]
  %v196 = vld [vmem:[%s3 + $0x1c] sm:$0xf]
  %v197 = vld [vmem:[%s3 + $0x20] sm:$0xf]
  %v198 = vld [vmem:[%s3 + $0x24] sm:$0xf]
  %v199 = vld [vmem:[%s3 + $0x28] sm:$0xf]
  %v200 = vld [vmem:[%s3 + $0x2c] sm:$0xf]
  %v201 = vld [vmem:[%s3 + $0x30] sm:$0xf]
  %v202 = vld [vmem:[%s3 + $0x34] sm:$0xf]
  %v203 = vld [vmem:[%s3 + $0x38] sm:$0xf]
  %v204 = vld [vmem:[%s3 + $0x3c] sm:$0xf]
  %v221 = vunpack.c.l.b16 %v189
  %v222 = vunpack.c.l.b16 %v190
  %v223 = vunpack.c.l.b16 %v191
  %v224 = vunpack.c.l.b16 %v192
  %v225 = vunpack.c.l.b16 %v193
  %v226 = vunpack.c.l.b16 %v194
  %v227 = vunpack.c.l.b16 %v195
  %v228 = vunpack.c.l.b16 %v196
  %v229 = vunpack.c.l.b16 %v197
  %v230 = vunpack.c.l.b16 %v198
  %v231 = vunpack.c.l.b16 %v199
  %v232 = vunpack.c.l.b16 %v200
  %v233 = vunpack.c.l.b16 %v201
  %v234 = vunpack.c.l.b16 %v202
  %v235 = vunpack.c.l.b16 %v203
  %v236 = vunpack.c.l.b16 %v204
  %v237 = vpack.c.b16 %v222, %v221
  %v238 = vpack.c.b16 %v224, %v223
  %v239 = vpack.c.b16 %v226, %v225
  %v240 = vpack.c.b16 %v228, %v227
  %v241 = vpack.c.b16 %v230, %v229
  %v242 = vpack.c.b16 %v232, %v231
  %v243 = vpack.c.b16 %v234, %v233
  %v244 = vpack.c.b16 %v236, %v235
  %253 = vmatprep.subr.bf16.mxu0 0
  %254 = vmatpush1.bf16.msra.mxu0 %v244
  %255 = vmatprep.subr.bf16.mxu0 0
  %256 = vmatpush1.bf16.msra.mxu0 %v243
  %257 = vmatprep.subr.bf16.mxu0 0
  %258 = vmatpush1.bf16.msra.mxu0 %v242
  %259 = vmatprep.subr.bf16.mxu0 0
  %260 = vmatpush1.bf16.msra.mxu0 %v241
  %261 = vmatprep.subr.bf16.mxu0 0
  %262 = vmatpush1.bf16.msra.mxu0 %v240
  %263 = vmatprep.subr.bf16.mxu0 0
  %264 = vmatpush1.bf16.msra.mxu0 %v239
  %265 = vmatprep.subr.bf16.mxu0 0
  %266 = vmatpush1.bf16.msra.mxu0 %v238
  %267 = vmatprep.subr.bf16.mxu0 0
  %268 = vmatpush1.bf16.msra.mxu0 %v237
  %269 = vmatprep.subr.bf16.mxu0 0
  %270 = vmatpush2.bf16.msra.mxu0 0
  %271 = vmatprep.subr.bf16.mxu0 0
  %272 = vmatpush2.bf16.msra.mxu0 0
  %273 = vmatprep.subr.bf16.mxu0 0
  %274 = vmatpush2.bf16.msra.mxu0 0
  %275 = vmatprep.subr.bf16.mxu0 0
  %276 = vmatpush2.bf16.msra.mxu0 0
  %277 = vmatprep.subr.bf16.mxu0 0
  %278 = vmatpush2.bf16.msra.mxu0 0
  %279 = vmatprep.subr.bf16.mxu0 0
  %280 = vmatpush2.bf16.msra.mxu0 0
  %281 = vmatprep.subr.bf16.mxu0 0
  %282 = vmatpush2.bf16.msra.mxu0 0
  %283 = vmatprep.subr.bf16.mxu0 0
  %284 = vmatpush2.bf16.msra.mxu0 0
  %285 = vmatprep.mubr.bf16.mxu0 0
  %286 = vmatmul.mubr.bf16.gmra.mxu0 %v181
  %v287 = vpop.f32.mrf.mxu0
  %v288 = vadd.f32 0.0, %v287
  %v289 = vpop.f32.mrf.mxu0
  %v290 = vpop.f32.mrf.mxu0
  %v291 = vadd.f32 0.0, %v290
  %v292 = vpop.f32.mrf.mxu0
  %293 = vmatprep.mubr.bf16.mxu0 0
  %294 = vmatmul.mubr.bf16.gmra.mxu0 %v182
  %v295 = vpop.f32.mrf.mxu0
  %v296 = vadd.f32 0.0, %v295
  %v297 = vpop.f32.mrf.mxu0
  %v298 = vpop.f32.mrf.mxu0
  %v299 = vadd.f32 0.0, %v298
  %v300 = vpop.f32.mrf.mxu0
  %301 = vmatprep.mubr.bf16.mxu0 0
  %302 = vmatmul.mubr.bf16.gmra.mxu0 %v183
  %v303 = vpop.f32.mrf.mxu0
  %v304 = vadd.f32 0.0, %v303
  %v305 = vpop.f32.mrf.mxu0
  %v306 = vpop.f32.mrf.mxu0
  %v307 = vadd.f32 0.0, %v306
  %v308 = vpop.f32.mrf.mxu0
  %309 = vmatprep.mubr.bf16.mxu0 0
  %310 = vmatmul.mubr.bf16.gmra.mxu0 %v184
  %v311 = vpop.f32.mrf.mxu0
  %v312 = vadd.f32 0.0, %v311
  %v313 = vpop.f32.mrf.mxu0
  %v314 = vpop.f32.mrf.mxu0
  %v315 = vadd.f32 0.0, %v314
  %v316 = vpop.f32.mrf.mxu0
  %317 = vmatprep.mubr.bf16.mxu0 0
  %318 = vmatmul.mubr.bf16.gmra.mxu0 %v185
  %v319 = vpop.f32.mrf.mxu0
  %v320 = vadd.f32 0.0, %v319
  %v321 = vpop.f32.mrf.mxu0
  %v322 = vpop.f32.mrf.mxu0
  %v323 = vadd.f32 0.0, %v322
  %v324 = vpop.f32.mrf.mxu0
  %325 = vmatprep.mubr.bf16.mxu0 0
  %326 = vmatmul.mubr.bf16.gmra.mxu0 %v186
  %v327 = vpop.f32.mrf.mxu0
  %v328 = vadd.f32 0.0, %v327
  %v329 = vpop.f32.mrf.mxu0
  %v330 = vpop.f32.mrf.mxu0
  %v331 = vadd.f32 0.0, %v330
  %v332 = vpop.f32.mrf.mxu0
  %333 = vmatprep.mubr.bf16.mxu0 0
  %334 = vmatmul.mubr.bf16.gmra.mxu0 %v187
  %v335 = vpop.f32.mrf.mxu0
  %v336 = vadd.f32 0.0, %v335
  %v337 = vpop.f32.mrf.mxu0
  %v338 = vpop.f32.mrf.mxu0
  %v339 = vadd.f32 0.0, %v338
  %v340 = vpop.f32.mrf.mxu0
  %341 = vmatprep.mubr.bf16.mxu0 0
  %342 = vmatmul.mubr.bf16.gmra.mxu0 %v188
  %v343 = vpop.f32.mrf.mxu0
  %v344 = vadd.f32 0.0, %v343
  %v345 = vpop.f32.mrf.mxu0
  %v346 = vpop.f32.mrf.mxu0
  %v347 = vadd.f32 0.0, %v346
  %v348 = vpop.f32.mrf.mxu0
  %349 = vdwg.mxu0
  %v350 = vpack.c.bf16 %v291, %v288
  %v351 = vpack.c.bf16 %v299, %v296
  %v352 = vpack.c.bf16 %v307, %v304
  %v353 = vpack.c.bf16 %v315, %v312
  %v354 = vpack.c.bf16 %v323, %v320
  %v355 = vpack.c.bf16 %v331, %v328
  %v356 = vpack.c.bf16 %v339, %v336
  %v357 = vpack.c.bf16 %v347, %v344
  %v366 = vunpack.c.l.b16 %v350
  %v367 = vunpack.c.h.b16 %v350
  %v368 = vunpack.c.l.b16 %v351
  %v369 = vunpack.c.h.b16 %v351
  %v370 = vunpack.c.l.b16 %v352
  %v371 = vunpack.c.h.b16 %v352
  %v372 = vunpack.c.l.b16 %v353
  %v373 = vunpack.c.h.b16 %v353
  %v374 = vunpack.c.l.b16 %v354
  %v375 = vunpack.c.h.b16 %v354
  %v376 = vunpack.c.l.b16 %v355
  %v377 = vunpack.c.h.b16 %v355
  %v378 = vunpack.c.l.b16 %v356
  %v379 = vunpack.c.h.b16 %v356
  %v380 = vunpack.c.l.b16 %v357
  %v381 = vunpack.c.h.b16 %v357
  %v382 = vpack.c.b16 %v366, %v366
  %v383 = vpack.c.b16 %v367, %v367
  %v384 = vpack.c.b16 %v368, %v368
  %v385 = vpack.c.b16 %v369, %v369
  %v386 = vpack.c.b16 %v370, %v370
  %v387 = vpack.c.b16 %v371, %v371
  %v388 = vpack.c.b16 %v372, %v372
  %v389 = vpack.c.b16 %v373, %v373
  %v390 = vpack.c.b16 %v374, %v374
  %v391 = vpack.c.b16 %v375, %v375
  %v392 = vpack.c.b16 %v376, %v376
  %v393 = vpack.c.b16 %v377, %v377
  %v394 = vpack.c.b16 %v378, %v378
  %v395 = vpack.c.b16 %v379, %v379
  %v396 = vpack.c.b16 %v380, %v380
  %v397 = vpack.c.b16 %v381, %v381
  %414 = vst [vmem:[%s4] sm:$0xf] %v382
  %415 = vst [vmem:[%s4 + $0x4] sm:$0xf] %v383
  %416 = vst [vmem:[%s4 + $0x8] sm:$0xf] %v384
  %417 = vst [vmem:[%s4 + $0xc] sm:$0xf] %v385
  %418 = vst [vmem:[%s4 + $0x10] sm:$0xf] %v386
  %419 = vst [vmem:[%s4 + $0x14] sm:$0xf] %v387
  %420 = vst [vmem:[%s4 + $0x18] sm:$0xf] %v388
  %421 = vst [vmem:[%s4 + $0x1c] sm:$0xf] %v389
  %422 = vst [vmem:[%s4 + $0x20] sm:$0xf] %v390
  %423 = vst [vmem:[%s4 + $0x24] sm:$0xf] %v391
  %424 = vst [vmem:[%s4 + $0x28] sm:$0xf] %v392
  %425 = vst [vmem:[%s4 + $0x2c] sm:$0xf] %v393
  %426 = vst [vmem:[%s4 + $0x30] sm:$0xf] %v394
  %427 = vst [vmem:[%s4 + $0x34] sm:$0xf] %v395
  %428 = vst [vmem:[%s4 + $0x38] sm:$0xf] %v396
  %429 = vst [vmem:[%s4 + $0x3c] sm:$0xf] %v397
  %v430 = vadd.f32 %v288, %v291
  %v431 = vadd.f32 %v430, %v296
  %v432 = vadd.f32 %v431, %v299
  %v433 = vadd.f32 %v432, %v304
  %v434 = vadd.f32 %v433, %v307
  %v435 = vadd.f32 %v434, %v312
  %v436 = vadd.f32 %v435, %v315
  %v437 = vadd.f32 %v436, %v320
  %v438 = vadd.f32 %v437, %v323
  %v439 = vadd.f32 %v438, %v328
  %v440 = vadd.f32 %v439, %v331
  %v441 = vadd.f32 %v440, %v336
  %v442 = vadd.f32 %v441, %v339
  %v443 = vadd.f32 %v442, %v344
  %v444 = vadd.f32 %v443, %v347
  %v445 = vrot.slane %v444, 4
  %v446 = vadd.f32 %v444, %v445
  %v447 = vrot.slane %v446, 2
  %v448 = vadd.f32 %v446, %v447
  %v449 = vrot.slane %v448, 1
  %v450 = vadd.f32 %v448, %v449
  %v451 = vmul.f32 %v288, %v288
  %v452 = vmul.f32 %v291, %v291
  %v453 = vmul.f32 %v296, %v296
  %v454 = vmul.f32 %v299, %v299
  %v455 = vmul.f32 %v304, %v304
  %v456 = vmul.f32 %v307, %v307
  %v457 = vmul.f32 %v312, %v312
  %v458 = vmul.f32 %v315, %v315
  %v459 = vmul.f32 %v320, %v320
  %v460 = vmul.f32 %v323, %v323
  %v461 = vmul.f32 %v328, %v328
  %v462 = vmul.f32 %v331, %v331
  %v463 = vmul.f32 %v336, %v336
  %v464 = vmul.f32 %v339, %v339
  %v465 = vmul.f32 %v344, %v344
  %v466 = vmul.f32 %v347, %v347
  %v467 = vadd.f32 %v451, %v452
  %v468 = vadd.f32 %v467, %v453
  %v469 = vadd.f32 %v468, %v454
  %v470 = vadd.f32 %v469, %v455
  %v471 = vadd.f32 %v470, %v456
  %v472 = vadd.f32 %v471, %v457
  %v473 = vadd.f32 %v472, %v458
  %v474 = vadd.f32 %v473, %v459
  %v475 = vadd.f32 %v474, %v460
  %v476 = vadd.f32 %v475, %v461
  %v477 = vadd.f32 %v476, %v462
  %v478 = vadd.f32 %v477, %v463
  %v479 = vadd.f32 %v478, %v464
  %v480 = vadd.f32 %v479, %v465
  %v481 = vadd.f32 %v480, %v466
  %v482 = vrot.slane %v481, 4
  %v483 = vadd.f32 %v481, %v482
  %v484 = vrot.slane %v483, 2
  %v485 = vadd.f32 %v483, %v484
  %v486 = vrot.slane %v485, 1
  %v487 = vadd.f32 %v485, %v486
  %vm488 = vcmp.eq.s32.totalorder %v115, 0
  %vm489 = vcmp.eq.s32.totalorder %v115, 1
  %v490 = vsel %vm489, %v487, 0.0
  %v491 = vsel %vm488, %v450, %v490
  %492 = vst [vmem:[%s5] sm:$0xff] %v491
  // Predicated region
  $region18: #{bottleneck_forward.9} parent=0 // pred_check
    _
  $region19: #{bottleneck_forward.9} parent=0 // pred_check_branch
    %494 = sbr.rel (0) target = $region21
  $region20: #{bottleneck_forward.9} parent=0 // pred_region
    _
  $region21: #{bottleneck_forward.9} parent=0 // pred_fallthru
    _
  // Predicated region
  $region22: #{bottleneck_forward.9} parent=0 // pred_check
    _
  $region23: #{bottleneck_forward.9} parent=0 // pred_check_branch
    %496 = sbr.rel (0) target = $region25
  $region24: #{bottleneck_forward.9} parent=0 // pred_region
    _
  $region25: #{bottleneck_forward.9} parent=0 // pred_fallthru
    _
  // Predicated region
  $region26: #{bottleneck_forward.9} parent=0 // pred_check
    _
  $region27: #{bottleneck_forward.9} parent=0 // pred_check_branch
    %498 = sbr.rel (0) target = $region29
  $region28: #{bottleneck_forward.9} parent=0 // pred_region
    _
  $region29: #{bottleneck_forward.9} parent=0 // pred_fallthru
    _
  // Predicated region
  $region30: #{bottleneck_forward.9} parent=0 // pred_check
    _
  $region31: #{bottleneck_forward.9} parent=0 // pred_check_branch
    %500 = sbr.rel (0) target = $region33
  $region32: #{bottleneck_forward.9} parent=0 // pred_region
    _
  $region33: #{bottleneck_forward.9} parent=0 // pred_fallthru
    _

// kernel: bottleneck_forward.8
$region0: #{bottleneck_forward.8}
  #allocation0 [shape = 'u32[]', space=smem, size = 0x4, offset = 0x4, fixed_abs, tag = 'smem constant byte address 0x4 - core index']
  #allocation1 [shape = 'u32[144,128]{1,0:T(1,128)}', space=vmem, size = 0x12000, scoped, tag = 'internal scratch']
  %s0 = inlined_call_operand.vmem [shape: bf16[2,4,9,9,128], index: 0, kind: input, shape index: {}]
  %s1 = inlined_call_operand.vmem [shape: bf16[9,128,128], index: 1, kind: input, shape index: {}]
  %s2 = inlined_call_operand.vmem [shape: bf16[2,8,8,128], index: 2, kind: output, shape index: {0}]
  %s3 = inlined_call_operand.vmem [shape: f32[2,1,8,128], index: 3, kind: output, shape index: {1}]
  %4 = xla_tuple %s2, %s3
  %s5 = sld [smem:[#allocation0]]
  $region49: #{bottleneck_forward.8} parent=0
    _
  %s7 = ssub.s32 1, %s5
  %s8 = scalar_select 0, %s7, %s5
  loop: start=0, step=1, limit=4
  $region2: #{bottleneck_forward.8} parent=0 // loop_pre_header
    _
  $region3: #{bottleneck_forward.8} parent=0 // loop_header
    %s10 = sphi 0, %s14
    %p11 = scmp.ge.s32.totalorder %s10, 4
    %s17 = sphi 0, %s29
    %s18 = sphi 0, %s25
    %s19 = sphi 0, %s17
    %s20 = sphi 0, %s18
    %s21 = sphi 0, %s19
    %s22 = sphi 0, %s20
    %s32 = sphi 0, %s34
    %s35 = sphi 0, %s32
    %s36 = sphi 0, %s35
    %s52 = sphi 0, %s36
    %s56 = sphi 0, %s56
    %s58 = sphi 0, %s56
    %s59 = sphi 0, %s58
    %s73 = sphi 0, %s59
    %s81 = sphi 0, %s83
    %s84 = sphi 0, %s81
    %s85 = sphi 0, %s84
    %s101 = sphi 0, %s85
    %s109 = sphi 0, %s111
    %s112 = sphi 0, %s109
    %s113 = sphi 0, %s112
    %s129 = sphi 0, %s113
  $region4: #{bottleneck_forward.8} parent=0 // loop_header_branch
    %13 = sbr.rel (%p11) target = $region8
  $region5: #{bottleneck_forward.8} parent=0 // loop_body
    %s15 = ssub.s32 %s10, 1
    %s16 = ssub.s32 %s10, 2
    %s23 = sadd.s32 1, %s18
    %p24 = scmp.ge.s32.totalorder %s23, 1
    %s25 = scalar_select %p24, 0, %s23
    %s26 = sadd.s32 1, %s17
    %s27 = scalar_select %p24, %s26, %s17
    %p28 = scmp.ge.s32.totalorder %s27, 2
    %s29 = scalar_select %p28, 0, %s27
    %s30 = ssub.s32 %s17, %s29
    %p31 = scmp.eq.s32.totalorder %s30, 0
    %s33 = sadd.s32 %s32, 1
    %s34 = scalar_select %p31, %s32, %s33
    %p37 = pneg %p31
    %p38 = scmp.eq.s32.totalorder %s10, 1
    %p39 = por %p37, %p38
    %p40 = scmp.ne.s32.totalorder %s32, %s35
    %p41 = scmp.eq.s32.totalorder %s10, 0
    %p42 = por %p40, %p41
    %p43 = scmp.ne.s32.totalorder %s32, %s35
    %p44 = scmp.eq.s32.totalorder %s15, 1
    %p45 = por %p43, %p44
    %p46 = scmp.ne.s32.totalorder %s35, %s36
    %p47 = scmp.eq.s32.totalorder %s15, 0
    %p48 = por %p46, %p47
    %p49 = scmp.ne.s32.totalorder %s35, %s36
    %p50 = scmp.eq.s32.totalorder %s16, 1
    %p51 = por %p49, %p50
    %p53 = scmp.ne.s32.totalorder %s36, %s52
    %p54 = scmp.eq.s32.totalorder %s16, 0
    %p55 = por %p53, %p54
    %s57 = sadd.s32 %s56, 1
    %p60 = scmp.eq.s32.totalorder %s10, 1
    %p61 = scmp.ne.s32.totalorder %s56, %s58
    %p62 = scmp.eq.s32.totalorder %s10, 0
    %p63 = por %p61, %p62
    %p64 = scmp.ne.s32.totalorder %s56, %s58
    %p65 = scmp.eq.s32.totalorder %s15, 1
    %p66 = por %p64, %p65
    %p67 = scmp.ne.s32.totalorder %s58, %s59
    %p68 = scmp.eq.s32.totalorder %s15, 0
    %p69 = por %p67, %p68
    %p70 = scmp.ne.s32.totalorder %s58, %s59
    %p71 = scmp.eq.s32.totalorder %s16, 1
    %p72 = por %p70, %p71
    %p74 = scmp.ne.s32.totalorder %s59, %s73
    %p75 = scmp.eq.s32.totalorder %s16, 0
    %p76 = por %p74, %p75
    %s77 = ssub.s32 %s17, %s29
    %s78 = ssub.s32 %s18, %s25
    %s79 = sor.u32 %s77, %s78
    %p80 = scmp.eq.s32.totalorder %s79, 0
    %s82 = sadd.s32 %s81, 1
    %s83 = scalar_select %p80, %s81, %s82
    %p86 = pneg %p80
    %p87 = scmp.eq.s32.totalorder %s10, 1
    %p88 = por %p86, %p87
    %p89 = scmp.ne.s32.totalorder %s81, %s84
    %p90 = scmp.eq.s32.totalorder %s10, 0
    %p91 = por %p89, %p90
    %p92 = scmp.ne.s32.totalorder %s81, %s84
    %p93 = scmp.eq.s32.totalorder %s15, 1
    %p94 = por %p92, %p93
    %p95 = scmp.ne.s32.totalorder %s84, %s85
    %p96 = scmp.eq.s32.totalorder %s15, 0
    %p97 = por %p95, %p96
    %p98 = scmp.ne.s32.totalorder %s84, %s85
    %p99 = scmp.eq.s32.totalorder %s16, 1
    %p100 = por %p98, %p99
    %p102 = scmp.ne.s32.totalorder %s85, %s101
    %p103 = scmp.eq.s32.totalorder %s16, 0
    %p104 = por %p102, %p103
    %s105 = ssub.s32 %s17, %s29
    %s106 = ssub.s32 %s18, %s25
    %s107 = sor.u32 %s105, %s106
    %p108 = scmp.eq.s32.totalorder %s107, 0
    %s110 = sadd.s32 %s109, 1
    %s111 = scalar_select %p108, %s109, %s110
    %p114 = pneg %p108
    %p115 = scmp.eq.s32.totalorder %s10, 1
    %p116 = por %p114, %p115
    %p117 = scmp.ne.s32.totalorder %s109, %s112
    %p118 = scmp.eq.s32.totalorder %s10, 0
    %p119 = por %p117, %p118
    %p120 = scmp.ne.s32.totalorder %s109, %s112
    %p121 = scmp.eq.s32.totalorder %s15, 1
    %p122 = por %p120, %p121
    %p123 = scmp.ne.s32.totalorder %s112, %s113
    %p124 = scmp.eq.s32.totalorder %s15, 0
    %p125 = por %p123, %p124
    %p126 = scmp.ne.s32.totalorder %s112, %s113
    %p127 = scmp.eq.s32.totalorder %s16, 1
    %p128 = por %p126, %p127
    %p130 = scmp.ne.s32.totalorder %s113, %s129
    %p131 = scmp.eq.s32.totalorder %s16, 0
    %p132 = por %p130, %p131
    %p133 = scmp.le.s32.totalorder 1, %s10
    %p134 = scmp.lt.s32.totalorder %s10, 3
    %p135 = pnand %p133, %p134
    %p136 = pneg %p135
    // Predicated region
    $region9: #{bottleneck_forward.8} parent=5 // pred_check
      _
    $region10: #{bottleneck_forward.8} parent=5 // pred_check_branch
      %138 = sbr.rel (%p135) target = $region12
    $region11: #{bottleneck_forward.8} parent=5 // pred_region
      %s139 = ssub.s32 %s10, 1
      // Predicated region
      $region13: #{bottleneck_forward.8} parent=11 // pred_check
        %p140 = pneg %p69
      $region14: #{bottleneck_forward.8} parent=11 // pred_check_branch
        %142 = sbr.rel (%p140) target = $region16
      $region15: #{bottleneck_forward.8} parent=11 // pred_region
        _
      $region16: #{bottleneck_forward.8} parent=11 // pred_fallthru
        _
    $region12: #{bottleneck_forward.8} parent=5 // pred_fallthru
      _
    %p143 = scmp.lt.s32.totalorder %s10, 2
    // Predicated region
    $region17: #{bottleneck_forward.8} parent=5 // pred_check
      %p144 = pneg %p143
    $region18: #{bottleneck_forward.8} parent=5 // pred_check_branch
      %146 = sbr.rel (%p144) target = $region20
    $region19: #{bottleneck_forward.8} parent=5 // pred_region
      // Predicated region
      $region21: #{bottleneck_forward.8} parent=19 // pred_check
        %p147 = pneg %p42
      $region22: #{bottleneck_forward.8} parent=19 // pred_check_branch
        %149 = sbr.rel (%p147) target = $region24
      $region23: #{bottleneck_forward.8} parent=19 // pred_region
        %p150 = scmp.lt.s32.totalorder %s17, 1
        %s151 = scalar_select %p150, %s17, 1
        %s152 = smul.addr %s151, 72
        %s153 = smul.addr %s152, 4
        %s154 = scalar_lea.vmem %s0, %s153
      $region24: #{bottleneck_forward.8} parent=19 // pred_fallthru
        _
    $region20: #{bottleneck_forward.8} parent=5 // pred_fallthru
      _
    %p155 = scmp.le.s32.totalorder 1, %s10
    %p156 = scmp.lt.s32.totalorder %s10, 3
    %p157 = pnand %p155, %p156
    %p158 = pneg %p157
    // Predicated region
    $region25: #{bottleneck_forward.8} parent=5 // pred_check
      _
    $region26: #{bottleneck_forward.8} parent=5 // pred_check_branch
      %160 = sbr.rel (%p157) target = $region28
    $region27: #{bottleneck_forward.8} parent=5 // pred_region
      %s161 = ssub.s32 %s10, 1
      %p162 = scmp.lt.s32.totalorder %s19, 1
      %s163 = scalar_select %p162, %s19, 1
      %s164 = smul.addr %s163, 72
      %s165 = smul.addr %s164, 4
      %s166 = scalar_lea.vmem %s0, %s165
      %p167 = pneg %p48
      %p168 = pneg %p45
      %p169 = pneg %p69
      %p170 = pneg %p66
      %p171 = pneg %p97
      %p172 = pneg %p94
      %s173 = smul.u32 8, %s20
      %p174 = scmp.lt.s32.totalorder %s19, 1
      %s175 = scalar_select %p174, %s19, 1
      %p176 = scmp.lt.s32.totalorder %s173, 7
      %s177 = scalar_select %p176, %s173, 7
      %s178 = smul.addr %s175, 8
      %s179 = sadd.s32 %s177, %s178
      %s180 = smul.addr %s179, 4
      %s181 = scalar_lea.vmem %s2, %s180
      %p182 = pneg %p125
      %p183 = pneg %p122
      %p184 = scmp.lt.s32.totalorder %s19, 1
      %s185 = scalar_select %p184, %s19, 1
      %p186 = scmp.lt.s32.totalorder %s20, 0
      %s187 = scalar_select %p186, %s20, 0
      %s188 = sadd.s32 %s187, %s185
      %s189 = smul.addr %s188, 8
      %s190 = scalar_lea.vmem %s3, %s189
      %p191 = scmp.lt.s32.totalorder %s19, 1
      %s192 = scalar_select %p191, %s19, 1
      %s193 = smul.addr %s192, 72
      %s194 = smul.addr %s193, 4
      %s195 = scalar_lea.vmem %s0, %s194
      %s196 = smul.u32 8, %s20
      %p197 = scmp.lt.s32.totalorder %s19, 1
      %s198 = scalar_select %p197, %s19, 1
      %p199 = scmp.lt.s32.totalorder %s196, 7
      %s200 = scalar_select %p199, %s196, 7
      %s201 = smul.addr %s198, 8
      %s202 = sadd.s32 %s200, %s201
      %s203 = smul.addr %s202, 4
      %s204 = scalar_lea.vmem %s2, %s203
      %s205 = smul.u32 8, %s20
      %p206 = scmp.lt.s32.totalorder %s19, 1
      %s207 = scalar_select %p206, %s19, 1
      %p208 = scmp.lt.s32.totalorder %s20, 0
      %s209 = scalar_select %p208, %s20, 0
      %s210 = sadd.s32 %s209, %s207
      %s211 = smul.addr %s210, 8
      %s212 = scalar_lea.vmem %s3, %s211
      %s214 = smul.u32 %s20, 8
      %s215 = smul.u32 %s214, 2
      %s216 = smul.addr %s215, 4
      %s217 = scalar_lea.vmem %s195, %s216
      %v218 = vld [vmem:[%s217] sm:$0xf]
      %v219 = vld [vmem:[%s217 + $0x8] sm:$0xf]
      %v220 = vld [vmem:[%s217 + $0x10] sm:$0xf]
      %v221 = vld [vmem:[%s217 + $0x18] sm:$0xf]
      %v222 = vld [vmem:[%s217 + $0x20] sm:$0xf]
      %v223 = vld [vmem:[%s217 + $0x28] sm:$0xf]
      %v224 = vld [vmem:[%s217 + $0x30] sm:$0xf]
      %v225 = vld [vmem:[%s217 + $0x38] sm:$0xf]
      %v226 = vld [vmem:[%s1] sm:$0xf]
      %v227 = vld [vmem:[%s1 + $0x4] sm:$0xf]
      %v228 = vld [vmem:[%s1 + $0x8] sm:$0xf]
      %v229 = vld [vmem:[%s1 + $0xc] sm:$0xf]
      %v230 = vld [vmem:[%s1 + $0x10] sm:$0xf]
      %v231 = vld [vmem:[%s1 + $0x14] sm:$0xf]
      %v232 = vld [vmem:[%s1 + $0x18] sm:$0xf]
      %v233 = vld [vmem:[%s1 + $0x1c] sm:$0xf]
      %v234 = vld [vmem:[%s1 + $0x20] sm:$0xf]
      %v235 = vld [vmem:[%s1 + $0x24] sm:$0xf]
      %v236 = vld [vmem:[%s1 + $0x28] sm:$0xf]
      %v237 = vld [vmem:[%s1 + $0x2c] sm:$0xf]
      %v238 = vld [vmem:[%s1 + $0x30] sm:$0xf]
      %v239 = vld [vmem:[%s1 + $0x34] sm:$0xf]
      %v240 = vld [vmem:[%s1 + $0x38] sm:$0xf]
      %v241 = vld [vmem:[%s1 + $0x3c] sm:$0xf]
      %s242 = sadd.s32 %s215, 18
      %s243 = smul.addr %s242, 4
      %s244 = scalar_lea.vmem %s195, %s243
      %v245 = vld [vmem:[%s244] sm:$0xf]
      %v246 = vld [vmem:[%s244 + $0x8] sm:$0xf]
      %v247 = vld [vmem:[%s244 + $0x10] sm:$0xf]
      %v248 = vld [vmem:[%s244 + $0x18] sm:$0xf]
      %v249 = vld [vmem:[%s244 + $0x20] sm:$0xf]
      %v250 = vld [vmem:[%s244 + $0x28] sm:$0xf]
      %v251 = vld [vmem:[%s244 + $0x30] sm:$0xf]
      %v252 = vld [vmem:[%s244 + $0x38] sm:$0xf]
      %s253 = scalar_lea.vmem %s1, 64
      %v254 = vld [vmem:[%s253] sm:$0xf]
      %v255 = vld [vmem:[%s253 + $0x4] sm:$0xf]
      %v256 = vld [vmem:[%s253 + $0x8] sm:$0xf]
      %v257 = vld [vmem:[%s253 + $0xc] sm:$0xf]
      %v258 = vld [vmem:[%s253 + $0x10] sm:$0xf]
      %v259 = vld [vmem:[%s253 + $0x14] sm:$0xf]
      %v260 = vld [vmem:[%s253 + $0x18] sm:$0xf]
      %v261 = vld [vmem:[%s253 + $0x1c] sm:$0xf]
      %v262 = vld [vmem:[%s253 + $0x20] sm:$0xf]
      %v263 = vld [vmem:[%s253 + $0x24] sm:$0xf]
      %v264 = vld [vmem:[%s253 + $0x28] sm:$0xf]
      %v265 = vld [vmem:[%s253 + $0x2c] sm:$0xf]
      %v266 = vld [vmem:[%s253 + $0x30] sm:$0xf]
      %v267 = vld [vmem:[%s253 + $0x34] sm:$0xf]
      %v268 = vld [vmem:[%s253 + $0x38] sm:$0xf]
      %v269 = vld [vmem:[%s253 + $0x3c] sm:$0xf]
      %v278 = vunpack.c.l.b16 %v245
      %v279 = vunpack.c.l.b16 %v246
      %v280 = vunpack.c.l.b16 %v247
      %v281 = vunpack.c.l.b16 %v248
      %v282 = vunpack.c.l.b16 %v249
      %v283 = vunpack.c.l.b16 %v250
      %v284 = vunpack.c.l.b16 %v251
      %v285 = vunpack.c.l.b16 %v252
      %v286 = vpack.c.b16 %v279, %v278
      %v287 = vpack.c.b16 %v281, %v280
      %v288 = vpack.c.b16 %v283, %v282
      %v289 = vpack.c.b16 %v285, %v284
      %v310 = vunpack.c.l.b16 %v254
      %v311 = vunpack.c.l.b16 %v255
      %v312 = vunpack.c.l.b16 %v256
      %v313 = vunpack.c.l.b16 %v257
      %v314 = vunpack.c.l.b16 %v258
      %v315 = vunpack.c.l.b16 %v259
      %v316 = vunpack.c.l.b16 %v260
      %v317 = vunpack.c.l.b16 %v261
      %v318 = vunpack.c.l.b16 %v262
      %v319 = vunpack.c.l.b16 %v263
      %v320 = vunpack.c.l.b16 %v264
      %v321 = vunpack.c.l.b16 %v265
      %v322 = vunpack.c.l.b16 %v266
      %v323 = vunpack.c.l.b16 %v267
      %v324 = vunpack.c.l.b16 %v268
      %v325 = vunpack.c.l.b16 %v269
      %v326 = vpack.c.b16 %v311, %v310
      %v327 = vpack.c.b16 %v313, %v312
      %v328 = vpack.c.b16 %v315, %v314
      %v329 = vpack.c.b16 %v317, %v316
      %v330 = vpack.c.b16 %v319, %v318
      %v331 = vpack.c.b16 %v321, %v320
      %v332 = vpack.c.b16 %v323, %v322
      %v333 = vpack.c.b16 %v325, %v324
      %342 = vmatprep.subr.bf16.mxu0 0
      %343 = vmatpush1.bf16.msra.mxu0 %v333
      %344 = vmatprep.subr.bf16.mxu0 0
      %345 = vmatpush1.bf16.msra.mxu0 %v332
      %346 = vmatprep.subr.bf16.mxu0 0
      %347 = vmatpush1.bf16.msra.mxu0 %v331
      %348 = vmatprep.subr.bf16.mxu0 0
      %349 = vmatpush1.bf16.msra.mxu0 %v330
      %350 = vmatprep.subr.bf16.mxu0 0
      %351 = vmatpush1.bf16.msra.mxu0 %v329
      %352 = vmatprep.subr.bf16.mxu0 0
      %353 = vmatpush1.bf16.msra.mxu0 %v328
      %354 = vmatprep.subr.bf16.mxu0 0
      %355 = vmatpush1.bf16.msra.mxu0 %v327
      %356 = vmatprep.subr.bf16.mxu0 0
      %357 = vmatpush1.bf16.msra.mxu0 %v326
      %358 = vmatprep.subr.bf16.mxu0 0
      %359 = vmatpush2.bf16.msra.mxu0 0
      %360 = vmatprep.subr.bf16.mxu0 0
      %361 = vmatpush2.bf16.msra.mxu0 0
      %362 = vmatprep.subr.bf16.mxu0 0
      %363 = vmatpush2.bf16.msra.mxu0 0
      %364 = vmatprep.subr.bf16.mxu0 0
      %365 = vmatpush2.bf16.msra.mxu0 0
      %366 = vmatprep.subr.bf16.mxu0 0
      %367 = vmatpush2.bf16.msra.mxu0 0
      %368 = vmatprep.subr.bf16.mxu0 0
      %369 = vmatpush2.bf16.msra.mxu0 0
      %370 = vmatprep.subr.bf16.mxu0 0
      %371 = vmatpush2.bf16.msra.mxu0 0
      %372 = vmatprep.subr.bf16.mxu0 0
      %373 = vmatpush2.bf16.msra.mxu0 0
      %374 = vmatprep.mubr.bf16.mxu0 0
      %375 = vmatmul.mubr.bf16.gmra.mxu0 %v286
      %v376 = vpop.f32.mrf.mxu0
      %v377 = vadd.f32 0.0, %v376
      %v378 = vpop.f32.mrf.mxu0
      %v379 = vpop.f32.mrf.mxu0
      %v380 = vadd.f32 0.0, %v379
      %v381 = vpop.f32.mrf.mxu0
      %382 = vmatprep.mubr.bf16.mxu0 0
      %383 = vmatmul.mubr.bf16.gmra.mxu0 %v287
      %v384 = vpop.f32.mrf.mxu0
      %v385 = vadd.f32 0.0, %v384
      %v386 = vpop.f32.mrf.mxu0
      %v387 = vpop.f32.mrf.mxu0
      %v388 = vadd.f32 0.0, %v387
      %v389 = vpop.f32.mrf.mxu0
      %390 = vmatprep.mubr.bf16.mxu0 0
      %391 = vmatmul.mubr.bf16.gmra.mxu0 %v288
      %v392 = vpop.f32.mrf.mxu0
      %v393 = vadd.f32 0.0, %v392
      %v394 = vpop.f32.mrf.mxu0
      %v395 = vpop.f32.mrf.mxu0
      %v396 = vadd.f32 0.0, %v395
      %v397 = vpop.f32.mrf.mxu0
      %398 = vmatprep.mubr.bf16.mxu0 0
      %399 = vmatmul.mubr.bf16.gmra.mxu0 %v289
      %v400 = vpop.f32.mrf.mxu0
      %v401 = vadd.f32 0.0, %v400
      %v402 = vpop.f32.mrf.mxu0
      %v403 = vpop.f32.mrf.mxu0
      %v404 = vadd.f32 0.0, %v403
      %v405 = vpop.f32.mrf.mxu0
      %406 = vdwg.mxu0
      %v415 = vunpack.c.l.b16 %v218
      %v416 = vunpack.c.l.b16 %v219
      %v417 = vunpack.c.l.b16 %v220
      %v418 = vunpack.c.l.b16 %v221
      %v419 = vunpack.c.l.b16 %v222
      %v420 = vunpack.c.l.b16 %v223
      %v421 = vunpack.c.l.b16 %v224
      %v422 = vunpack.c.l.b16 %v225
      %v423 = vpack.c.b16 %v416, %v415
      %v424 = vpack.c.b16 %v418, %v417
      %v425 = vpack.c.b16 %v420, %v419
      %v426 = vpack.c.b16 %v422, %v421
      %v447 = vunpack.c.l.b16 %v226
      %v448 = vunpack.c.l.b16 %v227
      %v449 = vunpack.c.l.b16 %v228
      %v450 = vunpack.c.l.b16 %v229
      %v451 = vunpack.c.l.b16 %v230
      %v452 = vunpack.c.l.b16 %v231
      %v453 = vunpack.c.l.b16 %v232
      %v454 = vunpack.c.l.b16 %v233
      %v455 = vunpack.c.l.b16 %v234
      %v456 = vunpack.c.l.b16 %v235
      %v457 = vunpack.c.l.b16 %v236
      %v458 = vunpack.c.l.b16 %v237
      %v459 = vunpack.c.l.b16 %v238
      %v460 = vunpack.c.l.b16 %v239
      %v461 = vunpack.c.l.b16 %v240
      %v462 = vunpack.c.l.b16 %v241
      %v463 = vpack.c.b16 %v448, %v447
      %v464 = vpack.c.b16 %v450, %v449
      %v465 = vpack.c.b16 %v452, %v451
      %v466 = vpack.c.b16 %v454, %v453
      %v467 = vpack.c.b16 %v456, %v455
      %v468 = vpack.c.b16 %v458, %v457
      %v469 = vpack.c.b16 %v460, %v459
      %v470 = vpack.c.b16 %v462, %v461
      %479 = vmatprep.subr.bf16.mxu0 0
      %480 = vmatpush1.bf16.msra.mxu0 %v470
      %481 = vmatprep.subr.bf16.mxu0 0
      %482 = vmatpush1.bf16.msra.mxu0 %v469
      %483 = vmatprep.subr.bf16.mxu0 0
      %484 = vmatpush1.bf16.msra.mxu0 %v468
      %485 = vmatprep.subr.bf16.mxu0 0
      %486 = vmatpush1.bf16.msra.mxu0 %v467
      %487 = vmatprep.subr.bf16.mxu0 0
      %488 = vmatpush1.bf16.msra.mxu0 %v466
      %489 = vmatprep.subr.bf16.mxu0 0
      %490 = vmatpush1.bf16.msra.mxu0 %v465
      %491 = vmatprep.subr.bf16.mxu0 0
      %492 = vmatpush1.bf16.msra.mxu0 %v464
      %493 = vmatprep.subr.bf16.mxu0 0
      %494 = vmatpush1.bf16.msra.mxu0 %v463
      %495 = vmatprep.subr.bf16.mxu0 0
      %496 = vmatpush2.bf16.msra.mxu0 0
      %497 = vmatprep.subr.bf16.mxu0 0
      %498 = vmatpush2.bf16.msra.mxu0 0
      %499 = vmatprep.subr.bf16.mxu0 0
      %500 = vmatpush2.bf16.msra.mxu0 0
      %501 = vmatprep.subr.bf16.mxu0 0
      %502 = vmatpush2.bf16.msra.mxu0 0
      %503 = vmatprep.subr.bf16.mxu0 0
      %504 = vmatpush2.bf16.msra.mxu0 0
      %505 = vmatprep.subr.bf16.mxu0 0
      %506 = vmatpush2.bf16.msra.mxu0 0
      %507 = vmatprep.subr.bf16.mxu0 0
      %508 = vmatpush2.bf16.msra.mxu0 0
      %509 = vmatprep.subr.bf16.mxu0 0
      %510 = vmatpush2.bf16.msra.mxu0 0
      %511 = vmatprep.mubr.bf16.mxu0 0
      %512 = vmatmul.mubr.bf16.gmra.mxu0 %v423
      %v513 = vpop.f32.mrf.mxu0
      %v514 = vadd.f32 %v377, %v513
      %v515 = vpop.f32.mrf.mxu0
      %v516 = vpop.f32.mrf.mxu0
      %v517 = vadd.f32 %v380, %v516
      %v518 = vpop.f32.mrf.mxu0
      %519 = vmatprep.mubr.bf16.mxu0 0
      %520 = vmatmul.mubr.bf16.gmra.mxu0 %v424
      %v521 = vpop.f32.mrf.mxu0
      %v522 = vadd.f32 %v385, %v521
      %v523 = vpop.f32.mrf.mxu0
      %v524 = vpop.f32.mrf.mxu0
      %v525 = vadd.f32 %v388, %v524
      %v526 = vpop.f32.mrf.mxu0
      %527 = vmatprep.mubr.bf16.mxu0 0
      %528 = vmatmul.mubr.bf16.gmra.mxu0 %v425
      %v529 = vpop.f32.mrf.mxu0
      %v530 = vadd.f32 %v393, %v529
      %v531 = vpop.f32.mrf.mxu0
      %v532 = vpop.f32.mrf.mxu0
      %v533 = vadd.f32 %v396, %v532
      %v534 = vpop.f32.mrf.mxu0
      %535 = vmatprep.mubr.bf16.mxu0 0
      %536 = vmatmul.mubr.bf16.gmra.mxu0 %v426
      %v537 = vpop.f32.mrf.mxu0
      %v538 = vadd.f32 %v401, %v537
      %v539 = vpop.f32.mrf.mxu0
      %v540 = vpop.f32.mrf.mxu0
      %v541 = vadd.f32 %v404, %v540
      %v542 = vpop.f32.mrf.mxu0
      %543 = vdwg.mxu0
      %v544 = vld [vmem:[%s217] sm:$0xf]
      %v545 = vld [vmem:[%s217 + $0x4] sm:$0x1]
      %v546 = vld [vmem:[%s217 + $0x8] sm:$0xf]
      %v547 = vld [vmem:[%s217 + $0xc] sm:$0x1]
      %v548 = vld [vmem:[%s217 + $0x10] sm:$0xf]
      %v549 = vld [vmem:[%s217 + $0x14] sm:$0x1]
      %v550 = vld [vmem:[%s217 + $0x18] sm:$0xf]
      %v551 = vld [vmem:[%s217 + $0x1c] sm:$0x1]
      %v552 = vld [vmem:[%s217 + $0x20] sm:$0xf]
      %v553 = vld [vmem:[%s217 + $0x24] sm:$0x1]
      %v554 = vld [vmem:[%s217 + $0x28] sm:$0xf]
      %v555 = vld [vmem:[%s217 + $0x2c] sm:$0x1]
      %v556 = vld [vmem:[%s217 + $0x30] sm:$0xf]
      %v557 = vld [vmem:[%s217 + $0x34] sm:$0x1]
      %v558 = vld [vmem:[%s217 + $0x38] sm:$0xf]
      %v559 = vld [vmem:[%s217 + $0x3c] sm:$0x1]
      %vm560 = vsmask.f32 3328
      %vm561 = vsmask.f32 7440
      %vm562 = vmor %vm560, %vm561
      %v564 = vshrl.u32 %v544, 16
      %v566 = vrot.slane %v564, 4
      %v567 = vshll.u32 %v544, 16
      %v569 = vrot.slane %v567, 5
      %v570 = vor.u32 %v566, %v569
      %v571 = vrot.slane %v570, 4
      %v573 = vshll.u32 %v545, 16
      %v575 = vrot.slane %v573, 5
      %v576 = vsel %vm562, %v571, %v575
      %v578 = vshrl.u32 %v546, 16
      %v580 = vrot.slane %v578, 4
      %v581 = vshll.u32 %v546, 16
      %v583 = vrot.slane %v581, 5
      %v584 = vor.u32 %v580, %v583
      %v585 = vrot.slane %v584, 4
      %v587 = vshll.u32 %v547, 16
      %v589 = vrot.slane %v587, 5
      %v590 = vsel %vm562, %v585, %v589
      %v592 = vshrl.u32 %v548, 16
      %v594 = vrot.slane %v592, 4
      %v595 = vshll.u32 %v548, 16
      %v597 = vrot.slane %v595, 5
      %v598 = vor.u32 %v594, %v597
      %v599 = vrot.slane %v598, 4
      %v601 = vshll.u32 %v549, 16
      %v603 = vrot.slane %v601, 5
      %v604 = vsel %vm562, %v599, %v603
      %v606 = vshrl.u32 %v550, 16
      %v608 = vrot.slane %v606, 4
      %v609 = vshll.u32 %v550, 16
      %v611 = vrot.slane %v609, 5
      %v612 = vor.u32 %v608, %v611
      %v613 = vrot.slane %v612, 4
      %v615 = vshll.u32 %v551, 16
      %v617 = vrot.slane %v615, 5
      %v618 = vsel %vm562, %v613, %v617
      %v620 = vshrl.u32 %v552, 16
      %v622 = vrot.slane %v620, 4
      %v623 = vshll.u32 %v552, 16
      %v625 = vrot.slane %v623, 5
      %v626 = vor.u32 %v622, %v625
      %v627 = vrot.slane %v626, 4
      %v629 = vshll.u32 %v553, 16
      %v631 = vrot.slane %v629, 5
      %v632 = vsel %vm562, %v627, %v631
      %v634 = vshrl.u32 %v554, 16
      %v636 = vrot.slane %v634, 4
      %v637 = vshll.u32 %v554, 16
      %v639 = vrot.slane %v637, 5
      %v640 = vor.u32 %v636, %v639
      %v641 = vrot.slane %v640, 4
      %v643 = vshll.u32 %v555, 16
      %v645 = vrot.slane %v643, 5
      %v646 = vsel %vm562, %v641, %v645
      %v648 = vshrl.u32 %v556, 16
      %v650 = vrot.slane %v648, 4
      %v651 = vshll.u32 %v556, 16
      %v653 = vrot.slane %v651, 5
      %v654 = vor.u32 %v650, %v653
      %v655 = vrot.slane %v654, 4
      %v657 = vshll.u32 %v557, 16
      %v659 = vrot.slane %v657, 5
      %v660 = vsel %vm562, %v655, %v659
      %v662 = vshrl.u32 %v558, 16
      %v664 = vrot.slane %v662, 4
      %v665 = vshll.u32 %v558, 16
      %v667 = vrot.slane %v665, 5
      %v668 = vor.u32 %v664, %v667
      %v669 = vrot.slane %v668, 4
      %v671 = vshll.u32 %v559, 16
      %v673 = vrot.slane %v671, 5
      %v674 = vsel %vm562, %v669, %v673
      %s675 = scalar_lea.vmem %s1, 128
      %v676 = vld [vmem:[%s675] sm:$0xf]
      %v677 = vld [vmem:[%s675 + $0x4] sm:$0xf]
      %v678 = vld [vmem:[%s675 + $0x8] sm:$0xf]
      %v679 = vld [vmem:[%s675 + $0xc] sm:$0xf]
      %v680 = vld [vmem:[%s675 + $0x10] sm:$0xf]
      %v681 = vld [vmem:[%s675 + $0x14] sm:$0xf]
      %v682 = vld [vmem:[%s675 + $0x18] sm:$0xf]
      %v683 = vld [vmem:[%s675 + $0x1c] sm:$0xf]
      %v684 = vld [vmem:[%s675 + $0x20] sm:$0xf]
      %v685 = vld [vmem:[%s675 + $0x24] sm:$0xf]
      %v686 = vld [vmem:[%s675 + $0x28] sm:$0xf]
      %v687 = vld [vmem:[%s675 + $0x2c] sm:$0xf]
      %v688 = vld [vmem:[%s675 + $0x30] sm:$0xf]
      %v689 = vld [vmem:[%s675 + $0x34] sm:$0xf]
      %v690 = vld [vmem:[%s675 + $0x38] sm:$0xf]
      %v691 = vld [vmem:[%s675 + $0x3c] sm:$0xf]
      %v692 = vunpack.c.l.b16 %v576
      %v693 = vunpack.c.l.b16 %v590
      %v694 = vunpack.c.l.b16 %v604
      %v695 = vunpack.c.l.b16 %v618
      %v696 = vunpack.c.l.b16 %v632
      %v697 = vunpack.c.l.b16 %v646
      %v698 = vunpack.c.l.b16 %v660
      %v699 = vunpack.c.l.b16 %v674
      %v700 = vpack.c.b16 %v693, %v692
      %v701 = vpack.c.b16 %v695, %v694
      %v702 = vpack.c.b16 %v697, %v696
      %v703 = vpack.c.b16 %v699, %v698
      %v724 = vunpack.c.l.b16 %v676
      %v725 = vunpack.c.l.b16 %v677
      %v726 = vunpack.c.l.b16 %v678
      %v727 = vunpack.c.l.b16 %v679
      %v728 = vunpack.c.l.b16 %v680
      %v729 = vunpack.c.l.b16 %v681
      %v730 = vunpack.c.l.b16 %v682
      %v731 = vunpack.c.l.b16 %v683
      %v732 = vunpack.c.l.b16 %v684
      %v733 = vunpack.c.l.b16 %v685
      %v734 = vunpack.c.l.b16 %v686
      %v735 = vunpack.c.l.b16 %v687
      %v736 = vunpack.c.l.b16 %v688
      %v737 = vunpack.c.l.b16 %v689
      %v738 = vunpack.c.l.b16 %v690
      %v739 = vunpack.c.l.b16 %v691
      %v740 = vpack.c.b16 %v725, %v724
      %v741 = vpack.c.b16 %v727, %v726
      %v742 = vpack.c.b16 %v729, %v728
      %v743 = vpack.c.b16 %v731, %v730
      %v744 = vpack.c.b16 %v733, %v732
      %v745 = vpack.c.b16 %v735, %v734
      %v746 = vpack.c.b16 %v737, %v736
      %v747 = vpack.c.b16 %v739, %v738
      %756 = vmatprep.subr.bf16.mxu0 0
      %757 = vmatpush1.bf16.msra.mxu0 %v747
      %758 = vmatprep.subr.bf16.mxu0 0
      %759 = vmatpush1.bf16.msra.mxu0 %v746
      %760 = vmatprep.subr.bf16.mxu0 0
      %761 = vmatpush1.bf16.msra.mxu0 %v745
      %762 = vmatprep.subr.bf16.mxu0 0
      %763 = vmatpush1.bf16.msra.mxu0 %v744
      %764 = vmatprep.subr.bf16.mxu0 0
      %765 = vmatpush1.bf16.msra.mxu0 %v743
      %766 = vmatprep.subr.bf16.mxu0 0
      %767 = vmatpush1.bf16.msra.mxu0 %v742
      %768 = vmatprep.subr.bf16.mxu0 0
      %769 = vmatpush1.bf16.msra.mxu0 %v741
      %770 = vmatprep.subr.bf16.mxu0 0
      %771 = vmatpush1.bf16.msra.mxu0 %v740
      %772 = vmatprep.subr.bf16.mxu0 0
      %773 = vmatpush2.bf16.msra.mxu0 0
      %774 = vmatprep.subr.bf16.mxu0 0
      %775 = vmatpush2.bf16.msra.mxu0 0
      %776 = vmatprep.subr.bf16.mxu0 0
      %777 = vmatpush2.bf16.msra.mxu0 0
      %778 = vmatprep.subr.bf16.mxu0 0
      %779 = vmatpush2.bf16.msra.mxu0 0
      %780 = vmatprep.subr.bf16.mxu0 0
      %781 = vmatpush2.bf16.msra.mxu0 0
      %782 = vmatprep.subr.bf16.mxu0 0
      %783 = vmatpush2.bf16.msra.mxu0 0
      %784 = vmatprep.subr.bf16.mxu0 0
      %785 = vmatpush2.bf16.msra.mxu0 0
      %786 = vmatprep.subr.bf16.mxu0 0
      %787 = vmatpush2.bf16.msra.mxu0 0
      %788 = vmatprep.mubr.bf16.mxu0 0
      %789 = vmatmul.mubr.bf16.gmra.mxu0 %v700
      %v790 = vpop.f32.mrf.mxu0
      %v791 = vadd.f32 0.0, %v790
      %v792 = vpop.f32.mrf.mxu0
      %v793 = vpop.f32.mrf.mxu0
      %v794 = vadd.f32 0.0, %v793
      %v795 = vpop.f32.mrf.mxu0
      %796 = vmatprep.mubr.bf16.mxu0 0
      %797 = vmatmul.mubr.bf16.gmra.mxu0 %v701
      %v798 = vpop.f32.mrf.mxu0
      %v799 = vadd.f32 0.0, %v798
      %v800 = vpop.f32.mrf.mxu0
      %v801 = vpop.f32.mrf.mxu0
      %v802 = vadd.f32 0.0, %v801
      %v803 = vpop.f32.mrf.mxu0
      %804 = vmatprep.mubr.bf16.mxu0 0
      %805 = vmatmul.mubr.bf16.gmra.mxu0 %v702
      %v806 = vpop.f32.mrf.mxu0
      %v807 = vadd.f32 0.0, %v806
      %v808 = vpop.f32.mrf.mxu0
      %v809 = vpop.f32.mrf.mxu0
      %v810 = vadd.f32 0.0, %v809
      %v811 = vpop.f32.mrf.mxu0
      %812 = vmatprep.mubr.bf16.mxu0 0
      %813 = vmatmul.mubr.bf16.gmra.mxu0 %v703
      %v814 = vpop.f32.mrf.mxu0
      %v815 = vadd.f32 0.0, %v814
      %v816 = vpop.f32.mrf.mxu0
      %v817 = vpop.f32.mrf.mxu0
      %v818 = vadd.f32 0.0, %v817
      %v819 = vpop.f32.mrf.mxu0
      %820 = vdwg.mxu0
      %v821 = vadd.f32 %v514, %v791
      %v822 = vadd.f32 %v517, %v794
      %v823 = vadd.f32 %v522, %v799
      %v824 = vadd.f32 %v525, %v802
      %v825 = vadd.f32 %v530, %v807
      %v826 = vadd.f32 %v533, %v810
      %v827 = vadd.f32 %v538, %v815
      %v828 = vadd.f32 %v541, %v818
      %s829 = sadd.s32 %s215, 36
      %s830 = smul.addr %s829, 4
      %s831 = scalar_lea.vmem %s195, %s830
      %v832 = vld [vmem:[%s831] sm:$0xf]
      %v833 = vld [vmem:[%s831 + $0x8] sm:$0xf]
      %v834 = vld [vmem:[%s831 + $0x10] sm:$0xf]
      %v835 = vld [vmem:[%s831 + $0x18] sm:$0xf]
      %v836 = vld [vmem:[%s831 + $0x20] sm:$0xf]
      %v837 = vld [vmem:[%s831 + $0x28] sm:$0xf]
      %v838 = vld [vmem:[%s831 + $0x30] sm:$0xf]
      %v839 = vld [vmem:[%s831 + $0x38] sm:$0xf]
      %s840 = scalar_lea.vmem %s1, 192
      %v841 = vld [vmem:[%s840] sm:$0xf]
      %v842 = vld [vmem:[%s840 + $0x4] sm:$0xf]
      %v843 = vld [vmem:[%s840 + $0x8] sm:$0xf]
      %v844 = vld [vmem:[%s840 + $0xc] sm:$0xf]
      %v845 = vld [vmem:[%s840 + $0x10] sm:$0xf]
      %v846 = vld [vmem:[%s840 + $0x14] sm:$0xf]
      %v847 = vld [vmem:[%s840 + $0x18] sm:$0xf]
      %v848 = vld [vmem:[%s840 + $0x1c] sm:$0xf]
      %v849 = vld [vmem:[%s840 + $0x20] sm:$0xf]
      %v850 = vld [vmem:[%s840 + $0x24] sm:$0xf]
      %v851 = vld [vmem:[%s840 + $0x28] sm:$0xf]
      %v852 = vld [vmem:[%s840 + $0x2c] sm:$0xf]
      %v853 = vld [vmem:[%s840 + $0x30] sm:$0xf]
      %v854 = vld [vmem:[%s840 + $0x34] sm:$0xf]
      %v855 = vld [vmem:[%s840 + $0x38] sm:$0xf]
      %v856 = vld [vmem:[%s840 + $0x3c] sm:$0xf]
      %v865 = vunpack.c.l.b16 %v832
      %v866 = vunpack.c.l.b16 %v833
      %v867 = vunpack.c.l.b16 %v834
      %v868 = vunpack.c.l.b16 %v835
      %v869 = vunpack.c.l.b16 %v836
      %v870 = vunpack.c.l.b16 %v837
      %v871 = vunpack.c.l.b16 %v838
      %v872 = vunpack.c.l.b16 %v839
      %v873 = vpack.c.b16 %v866, %v865
      %v874 = vpack.c.b16 %v868, %v867
      %v875 = vpack.c.b16 %v870, %v869
      %v876 = vpack.c.b16 %v872, %v871
      %v897 = vunpack.c.l.b16 %v841
      %v898 = vunpack.c.l.b16 %v842
      %v899 = vunpack.c.l.b16 %v843
      %v900 = vunpack.c.l.b16 %v844
      %v901 = vunpack.c.l.b16 %v845
      %v902 = vunpack.c.l.b16 %v846
      %v903 = vunpack.c.l.b16 %v847
      %v904 = vunpack.c.l.b16 %v848
      %v905 = vunpack.c.l.b16 %v849
      %v906 = vunpack.c.l.b16 %v850
      %v907 = vunpack.c.l.b16 %v851
      %v908 = vunpack.c.l.b16 %v852
      %v909 = vunpack.c.l.b16 %v853
      %v910 = vunpack.c.l.b16 %v854
      %v911 = vunpack.c.l.b16 %v855
      %v912 = vunpack.c.l.b16 %v856
      %v913 = vpack.c.b16 %v898, %v897
      %v914 = vpack.c.b16 %v900, %v899
      %v915 = vpack.c.b16 %v902, %v901
      %v916 = vpack.c.b16 %v904, %v903
      %v917 = vpack.c.b16 %v906, %v905
      %v918 = vpack.c.b16 %v908, %v907
      %v919 = vpack.c.b16 %v910, %v909
      %v920 = vpack.c.b16 %v912, %v911
      %929 = vmatprep.subr.bf16.mxu0 0
      %930 = vmatpush1.bf16.msra.mxu0 %v920
      %931 = vmatprep.subr.bf16.mxu0 0
      %932 = vmatpush1.bf16.msra.mxu0 %v919
      %933 = vmatprep.subr.bf16.mxu0 0
      %934 = vmatpush1.bf16.msra.mxu0 %v918
      %935 = vmatprep.subr.bf16.mxu0 0
      %936 = vmatpush1.bf16.msra.mxu0 %v917
      %937 = vmatprep.subr.bf16.mxu0 0
      %938 = vmatpush1.bf16.msra.mxu0 %v916
      %939 = vmatprep.subr.bf16.mxu0 0
      %940 = vmatpush1.bf16.msra.mxu0 %v915
      %941 = vmatprep.subr.bf16.mxu0 0
      %942 = vmatpush1.bf16.msra.mxu0 %v914
      %943 = vmatprep.subr.bf16.mxu0 0
      %944 = vmatpush1.bf16.msra.mxu0 %v913
      %945 = vmatprep.subr.bf16.mxu0 0
      %946 = vmatpush2.bf16.msra.mxu0 0
      %947 = vmatprep.subr.bf16.mxu0 0
      %948 = vmatpush2.bf16.msra.mxu0 0
      %949 = vmatprep.subr.bf16.mxu0 0
      %950 = vmatpush2.bf16.msra.mxu0 0
      %951 = vmatprep.subr.bf16.mxu0 0
      %952 = vmatpush2.bf16.msra.mxu0 0
      %953 = vmatprep.subr.bf16.mxu0 0
      %954 = vmatpush2.bf16.msra.mxu0 0
      %955 = vmatprep.subr.bf16.mxu0 0
      %956 = vmatpush2.bf16.msra.mxu0 0
      %957 = vmatprep.subr.bf16.mxu0 0
      %958 = vmatpush2.bf16.msra.mxu0 0
      %959 = vmatprep.subr.bf16.mxu0 0
      %960 = vmatpush2.bf16.msra.mxu0 0
      %961 = vmatprep.mubr.bf16.mxu0 0
      %962 = vmatmul.mubr.bf16.gmra.mxu0 %v873
      %v963 = vpop.f32.mrf.mxu0
      %v964 = vadd.f32 0.0, %v963
      %v965 = vpop.f32.mrf.mxu0
      %v966 = vpop.f32.mrf.mxu0
      %v967 = vadd.f32 0.0, %v966
      %v968 = vpop.f32.mrf.mxu0
      %969 = vmatprep.mubr.bf16.mxu0 0
      %970 = vmatmul.mubr.bf16.gmra.mxu0 %v874
      %v971 = vpop.f32.mrf.mxu0
      %v972 = vadd.f32 0.0, %v971
      %v973 = vpop.f32.mrf.mxu0
      %v974 = vpop.f32.mrf.mxu0
      %v975 = vadd.f32 0.0, %v974
      %v976 = vpop.f32.mrf.mxu0
      %977 = vmatprep.mubr.bf16.mxu0 0
      %978 = vmatmul.mubr.bf16.gmra.mxu0 %v875
      %v979 = vpop.f32.mrf.mxu0
      %v980 = vadd.f32 0.0, %v979
      %v981 = vpop.f32.mrf.mxu0
      %v982 = vpop.f32.mrf.mxu0
      %v983 = vadd.f32 0.0, %v982
      %v984 = vpop.f32.mrf.mxu0
      %985 = vmatprep.mubr.bf16.mxu0 0
      %986 = vmatmul.mubr.bf16.gmra.mxu0 %v876
      %v987 = vpop.f32.mrf.mxu0
      %v988 = vadd.f32 0.0, %v987
      %v989 = vpop.f32.mrf.mxu0
      %v990 = vpop.f32.mrf.mxu0
      %v991 = vadd.f32 0.0, %v990
      %v992 = vpop.f32.mrf.mxu0
      %993 = vdwg.mxu0
      %v994 = vadd.f32 %v821, %v964
      %v995 = vadd.f32 %v822, %v967
      %v996 = vadd.f32 %v823, %v972
      %v997 = vadd.f32 %v824, %v975
      %v998 = vadd.f32 %v825, %v980
      %v999 = vadd.f32 %v826, %v983
      %v1000 = vadd.f32 %v827, %v988
      %v1001 = vadd.f32 %v828, %v991
      %s1002 = sadd.s32 %s215, 54
      %s1003 = smul.addr %s1002, 4
      %s1004 = scalar_lea.vmem %s195, %s1003
      %v1005 = vld [vmem:[%s1004] sm:$0xf]
      %v1006 = vld [vmem:[%s1004 + $0x8] sm:$0xf]
      %v1007 = vld [vmem:[%s1004 + $0x10] sm:$0xf]
      %v1008 = vld [vmem:[%s1004 + $0x18] sm:$0xf]
      %v1009 = vld [vmem:[%s1004 + $0x20] sm:$0xf]
      %v1010 = vld [vmem:[%s1004 + $0x28] sm:$0xf]
      %v1011 = vld [vmem:[%s1004 + $0x30] sm:$0xf]
      %v1012 = vld [vmem:[%s1004 + $0x38] sm:$0xf]
      %s1013 = scalar_lea.vmem %s1, 256
      %v1014 = vld [vmem:[%s1013] sm:$0xf]
      %v1015 = vld [vmem:[%s1013 + $0x4] sm:$0xf]
      %v1016 = vld [vmem:[%s1013 + $0x8] sm:$0xf]
      %v1017 = vld [vmem:[%s1013 + $0xc] sm:$0xf]
      %v1018 = vld [vmem:[%s1013 + $0x10] sm:$0xf]
      %v1019 = vld [vmem:[%s1013 + $0x14] sm:$0xf]
      %v1020 = vld [vmem:[%s1013 + $0x18] sm:$0xf]
      %v1021 = vld [vmem:[%s1013 + $0x1c] sm:$0xf]
      %v1022 = vld [vmem:[%s1013 + $0x20] sm:$0xf]
      %v1023 = vld [vmem:[%s1013 + $0x24] sm:$0xf]
      %v1024 = vld [vmem:[%s1013 + $0x28] sm:$0xf]
      %v1025 = vld [vmem:[%s1013 + $0x2c] sm:$0xf]
      %v1026 = vld [vmem:[%s1013 + $0x30] sm:$0xf]
      %v1027 = vld [vmem:[%s1013 + $0x34] sm:$0xf]
      %v1028 = vld [vmem:[%s1013 + $0x38] sm:$0xf]
      %v1029 = vld [vmem:[%s1013 + $0x3c] sm:$0xf]
      %v1038 = vunpack.c.l.b16 %v1005
      %v1039 = vunpack.c.l.b16 %v1006
      %v1040 = vunpack.c.l.b16 %v1007
      %v1041 = vunpack.c.l.b16 %v1008
      %v1042 = vunpack.c.l.b16 %v1009
      %v1043 = vunpack.c.l.b16 %v1010
      %v1044 = vunpack.c.l.b16 %v1011
      %v1045 = vunpack.c.l.b16 %v1012
      %v1046 = vpack.c.b16 %v1039, %v1038
      %v1047 = vpack.c.b16 %v1041, %v1040
      %v1048 = vpack.c.b16 %v1043, %v1042
      %v1049 = vpack.c.b16 %v1045, %v1044
      %v1070 = vunpack.c.l.b16 %v1014
      %v1071 = vunpack.c.l.b16 %v1015
      %v1072 = vunpack.c.l.b16 %v1016
      %v1073 = vunpack.c.l.b16 %v1017
      %v1074 = vunpack.c.l.b16 %v1018
      %v1075 = vunpack.c.l.b16 %v1019
      %v1076 = vunpack.c.l.b16 %v1020
      %v1077 = vunpack.c.l.b16 %v1021
      %v1078 = vunpack.c.l.b16 %v1022
      %v1079 = vunpack.c.l.b16 %v1023
      %v1080 = vunpack.c.l.b16 %v1024
      %v1081 = vunpack.c.l.b16 %v1025
      %v1082 = vunpack.c.l.b16 %v1026
      %v1083 = vunpack.c.l.b16 %v1027
      %v1084 = vunpack.c.l.b16 %v1028
      %v1085 = vunpack.c.l.b16 %v1029
      %v1086 = vpack.c.b16 %v1071, %v1070
      %v1087 = vpack.c.b16 %v1073, %v1072
      %v1088 = vpack.c.b16 %v1075, %v1074
      %v1089 = vpack.c.b16 %v1077, %v1076
      %v1090 = vpack.c.b16 %v1079, %v1078
      %v1091 = vpack.c.b16 %v1081, %v1080
      %v1092 = vpack.c.b16 %v1083, %v1082
      %v1093 = vpack.c.b16 %v1085, %v1084
      %1102 = vmatprep.subr.bf16.mxu0 0
      %1103 = vmatpush1.bf16.msra.mxu0 %v1093
      %1104 = vmatprep.subr.bf16.mxu0 0
      %1105 = vmatpush1.bf16.msra.mxu0 %v1092
      %1106 = vmatprep.subr.bf16.mxu0 0
      %1107 = vmatpush1.bf16.msra.mxu0 %v1091
      %1108 = vmatprep.subr.bf16.mxu0 0
      %1109 = vmatpush1.bf16.msra.mxu0 %v1090
      %1110 = vmatprep.subr.bf16.mxu0 0
      %1111 = vmatpush1.bf16.msra.mxu0 %v1089
      %1112 = vmatprep.subr.bf16.mxu0 0
      %1113 = vmatpush1.bf16.msra.mxu0 %v1088
      %1114 = vmatprep.subr.bf16.mxu0 0
      %1115 = vmatpush1.bf16.msra.mxu0 %v1087
      %1116 = vmatprep.subr.bf16.mxu0 0
      %1117 = vmatpush1.bf16.msra.mxu0 %v1086
      %1118 = vmatprep.subr.bf16.mxu0 0
      %1119 = vmatpush2.bf16.msra.mxu0 0
      %1120 = vmatprep.subr.bf16.mxu0 0
      %1121 = vmatpush2.bf16.msra.mxu0 0
      %1122 = vmatprep.subr.bf16.mxu0 0
      %1123 = vmatpush2.bf16.msra.mxu0 0
      %1124 = vmatprep.subr.bf16.mxu0 0
      %1125 = vmatpush2.bf16.msra.mxu0 0
      %1126 = vmatprep.subr.bf16.mxu0 0
      %1127 = vmatpush2.bf16.msra.mxu0 0
      %1128 = vmatprep.subr.bf16.mxu0 0
      %1129 = vmatpush2.bf16.msra.mxu0 0
      %1130 = vmatprep.subr.bf16.mxu0 0
      %1131 = vmatpush2.bf16.msra.mxu0 0
      %1132 = vmatprep.subr.bf16.mxu0 0
      %1133 = vmatpush2.bf16.msra.mxu0 0
      %1134 = vmatprep.mubr.bf16.mxu0 0
      %1135 = vmatmul.mubr.bf16.gmra.mxu0 %v1046
      %v1136 = vpop.f32.mrf.mxu0
      %v1137 = vadd.f32 0.0, %v1136
      %v1138 = vpop.f32.mrf.mxu0
      %v1139 = vpop.f32.mrf.mxu0
      %v1140 = vadd.f32 0.0, %v1139
      %v1141 = vpop.f32.mrf.mxu0
      %1142 = vmatprep.mubr.bf16.mxu0 0
      %1143 = vmatmul.mubr.bf16.gmra.mxu0 %v1047
      %v1144 = vpop.f32.mrf.mxu0
      %v1145 = vadd.f32 0.0, %v1144
      %v1146 = vpop.f32.mrf.mxu0
      %v1147 = vpop.f32.mrf.mxu0
      %v1148 = vadd.f32 0.0, %v1147
      %v1149 = vpop.f32.mrf.mxu0
      %1150 = vmatprep.mubr.bf16.mxu0 0
      %1151 = vmatmul.mubr.bf16.gmra.mxu0 %v1048
      %v1152 = vpop.f32.mrf.mxu0
      %v1153 = vadd.f32 0.0, %v1152
      %v1154 = vpop.f32.mrf.mxu0
      %v1155 = vpop.f32.mrf.mxu0
      %v1156 = vadd.f32 0.0, %v1155
      %v1157 = vpop.f32.mrf.mxu0
      %1158 = vmatprep.mubr.bf16.mxu0 0
      %1159 = vmatmul.mubr.bf16.gmra.mxu0 %v1049
      %v1160 = vpop.f32.mrf.mxu0
      %v1161 = vadd.f32 0.0, %v1160
      %v1162 = vpop.f32.mrf.mxu0
      %v1163 = vpop.f32.mrf.mxu0
      %v1164 = vadd.f32 0.0, %v1163
      %v1165 = vpop.f32.mrf.mxu0
      %1166 = vdwg.mxu0
      %v1167 = vadd.f32 %v994, %v1137
      %v1168 = vadd.f32 %v995, %v1140
      %v1169 = vadd.f32 %v996, %v1145
      %v1170 = vadd.f32 %v997, %v1148
      %v1171 = vadd.f32 %v998, %v1153
      %v1172 = vadd.f32 %v999, %v1156
      %v1173 = vadd.f32 %v1000, %v1161
      %v1174 = vadd.f32 %v1001, %v1164
      %v1175 = vld [vmem:[%s831] sm:$0xf]
      %v1176 = vld [vmem:[%s831 + $0x4] sm:$0x1]
      %v1177 = vld [vmem:[%s831 + $0x8] sm:$0xf]
      %v1178 = vld [vmem:[%s831 + $0xc] sm:$0x1]
      %v1179 = vld [vmem:[%s831 + $0x10] sm:$0xf]
      %v1180 = vld [vmem:[%s831 + $0x14] sm:$0x1]
      %v1181 = vld [vmem:[%s831 + $0x18] sm:$0xf]
      %v1182 = vld [vmem:[%s831 + $0x1c] sm:$0x1]
      %v1183 = vld [vmem:[%s831 + $0x20] sm:$0xf]
      %v1184 = vld [vmem:[%s831 + $0x24] sm:$0x1]
      %v1185 = vld [vmem:[%s831 + $0x28] sm:$0xf]
      %v1186 = vld [vmem:[%s831 + $0x2c] sm:$0x1]
      %v1187 = vld [vmem:[%s831 + $0x30] sm:$0xf]
      %v1188 = vld [vmem:[%s831 + $0x34] sm:$0x1]
      %v1189 = vld [vmem:[%s831 + $0x38] sm:$0xf]
      %v1190 = vld [vmem:[%s831 + $0x3c] sm:$0x1]
      %v1192 = vshrl.u32 %v1175, 16
      %v1194 = vrot.slane %v1192, 4
      %v1195 = vshll.u32 %v1175, 16
      %v1197 = vrot.slane %v1195, 5
      %v1198 = vor.u32 %v1194, %v1197
      %v1199 = vrot.slane %v1198, 4
      %v1201 = vshll.u32 %v1176, 16
      %v1203 = vrot.slane %v1201, 5
      %v1204 = vsel %vm562, %v1199, %v1203
      %v1206 = vshrl.u32 %v1177, 16
      %v1208 = vrot.slane %v1206, 4
      %v1209 = vshll.u32 %v1177, 16
      %v1211 = vrot.slane %v1209, 5
      %v1212 = vor.u32 %v1208, %v1211
      %v1213 = vrot.slane %v1212, 4
      %v1215 = vshll.u32 %v1178, 16
      %v1217 = vrot.slane %v1215, 5
      %v1218 = vsel %vm562, %v1213, %v1217
      %v1220 = vshrl.u32 %v1179, 16
      %v1222 = vrot.slane %v1220, 4
      %v1223 = vshll.u32 %v1179, 16
      %v1225 = vrot.slane %v1223, 5
      %v1226 = vor.u32 %v1222, %v1225
      %v1227 = vrot.slane %v1226, 4
      %v1229 = vshll.u32 %v1180, 16
      %v1231 = vrot.slane %v1229, 5
      %v1232 = vsel %vm562, %v1227, %v1231
      %v1234 = vshrl.u32 %v1181, 16
      %v1236 = vrot.slane %v1234, 4
      %v1237 = vshll.u32 %v1181, 16
      %v1239 = vrot.slane %v1237, 5
      %v1240 = vor.u32 %v1236, %v1239
      %v1241 = vrot.slane %v1240, 4
      %v1243 = vshll.u32 %v1182, 16
      %v1245 = vrot.slane %v1243, 5
      %v1246 = vsel %vm562, %v1241, %v1245
      %v1248 = vshrl.u32 %v1183, 16
      %v1250 = vrot.slane %v1248, 4
      %v1251 = vshll.u32 %v1183, 16
      %v1253 = vrot.slane %v1251, 5
      %v1254 = vor.u32 %v1250, %v1253
      %v1255 = vrot.slane %v1254, 4
      %v1257 = vshll.u32 %v1184, 16
      %v1259 = vrot.slane %v1257, 5
      %v1260 = vsel %vm562, %v1255, %v1259
      %v1262 = vshrl.u32 %v1185, 16
      %v1264 = vrot.slane %v1262, 4
      %v1265 = vshll.u32 %v1185, 16
      %v1267 = vrot.slane %v1265, 5
      %v1268 = vor.u32 %v1264, %v1267
      %v1269 = vrot.slane %v1268, 4
      %v1271 = vshll.u32 %v1186, 16
      %v1273 = vrot.slane %v1271, 5
      %v1274 = vsel %vm562, %v1269, %v1273
      %v1276 = vshrl.u32 %v1187, 16
      %v1278 = vrot.slane %v1276, 4
      %v1279 = vshll.u32 %v1187, 16
      %v1281 = vrot.slane %v1279, 5
      %v1282 = vor.u32 %v1278, %v1281
      %v1283 = vrot.slane %v1282, 4
      %v1285 = vshll.u32 %v1188, 16
      %v1287 = vrot.slane %v1285, 5
      %v1288 = vsel %vm562, %v1283, %v1287
      %v1290 = vshrl.u32 %v1189, 16
      %v1292 = vrot.slane %v1290, 4
      %v1293 = vshll.u32 %v1189, 16
      %v1295 = vrot.slane %v1293, 5
      %v1296 = vor.u32 %v1292, %v1295
      %v1297 = vrot.slane %v1296, 4
      %v1299 = vshll.u32 %v1190, 16
      %v1301 = vrot.slane %v1299, 5
      %v1302 = vsel %vm562, %v1297, %v1301
      %s1303 = scalar_lea.vmem %s1, 320
      %v1304 = vld [vmem:[%s1303] sm:$0xf]
      %v1305 = vld [vmem:[%s1303 + $0x4] sm:$0xf]
      %v1306 = vld [vmem:[%s1303 + $0x8] sm:$0xf]
      %v1307 = vld [vmem:[%s1303 + $0xc] sm:$0xf]
      %v1308 = vld [vmem:[%s1303 + $0x10] sm:$0xf]
      %v1309 = vld [vmem:[%s1303 + $0x14] sm:$0xf]
      %v1310 = vld [vmem:[%s1303 + $0x18] sm:$0xf]
      %v1311 = vld [vmem:[%s1303 + $0x1c] sm:$0xf]
      %v1312 = vld [vmem:[%s1303 + $0x20] sm:$0xf]
      %v1313 = vld [vmem:[%s1303 + $0x24] sm:$0xf]
      %v1314 = vld [vmem:[%s1303 + $0x28] sm:$0xf]
      %v1315 = vld [vmem:[%s1303 + $0x2c] sm:$0xf]
      %v1316 = vld [vmem:[%s1303 + $0x30] sm:$0xf]
      %v1317 = vld [vmem:[%s1303 + $0x34] sm:$0xf]
      %v1318 = vld [vmem:[%s1303 + $0x38] sm:$0xf]
      %v1319 = vld [vmem:[%s1303 + $0x3c] sm:$0xf]
      %v1320 = vunpack.c.l.b16 %v1204
      %v1321 = vunpack.c.l.b16 %v1218
      %v1322 = vunpack.c.l.b16 %v1232
      %v1323 = vunpack.c.l.b16 %v1246
      %v1324 = vunpack.c.l.b16 %v1260
      %v1325 = vunpack.c.l.b16 %v1274
      %v1326 = vunpack.c.l.b16 %v1288
      %v1327 = vunpack.c.l.b16 %v1302
      %v1328 = vpack.c.b16 %v1321, %v1320
      %v1329 = vpack.c.b16 %v1323, %v1322
      %v1330 = vpack.c.b16 %v1325, %v1324
      %v1331 = vpack.c.b16 %v1327, %v1326
      %v1352 = vunpack.c.l.b16 %v1304
      %v1353 = vunpack.c.l.b16 %v1305
      %v1354 = vunpack.c.l.b16 %v1306
      %v1355 = vunpack.c.l.b16 %v1307
      %v1356 = vunpack.c.l.b16 %v1308
      %v1357 = vunpack.c.l.b16 %v1309
      %v1358 = vunpack.c.l.b16 %v1310
      %v1359 = vunpack.c.l.b16 %v1311
      %v1360 = vunpack.c.l.b16 %v1312
      %v1361 = vunpack.c.l.b16 %v1313
      %v1362 = vunpack.c.l.b16 %v1314
      %v1363 = vunpack.c.l.b16 %v1315
      %v1364 = vunpack.c.l.b16 %v1316
      %v1365 = vunpack.c.l.b16 %v1317
      %v1366 = vunpack.c.l.b16 %v1318
      %v1367 = vunpack.c.l.b16 %v1319
      %v1368 = vpack.c.b16 %v1353, %v1352
      %v1369 = vpack.c.b16 %v1355, %v1354
      %v1370 = vpack.c.b16 %v1357, %v1356
      %v1371 = vpack.c.b16 %v1359, %v1358
      %v1372 = vpack.c.b16 %v1361, %v1360
      %v1373 = vpack.c.b16 %v1363, %v1362
      %v1374 = vpack.c.b16 %v1365, %v1364
      %v1375 = vpack.c.b16 %v1367, %v1366
      %1384 = vmatprep.subr.bf16.mxu0 0
      %1385 = vmatpush1.bf16.msra.mxu0 %v1375
      %1386 = vmatprep.subr.bf16.mxu0 0
      %1387 = vmatpush1.bf16.msra.mxu0 %v1374
      %1388 = vmatprep.subr.bf16.mxu0 0
      %1389 = vmatpush1.bf16.msra.mxu0 %v1373
      %1390 = vmatprep.subr.bf16.mxu0 0
      %1391 = vmatpush1.bf16.msra.mxu0 %v1372
      %1392 = vmatprep.subr.bf16.mxu0 0
      %1393 = vmatpush1.bf16.msra.mxu0 %v1371
      %1394 = vmatprep.subr.bf16.mxu0 0
      %1395 = vmatpush1.bf16.msra.mxu0 %v1370
      %1396 = vmatprep.subr.bf16.mxu0 0
      %1397 = vmatpush1.bf16.msra.mxu0 %v1369
      %1398 = vmatprep.subr.bf16.mxu0 0
      %1399 = vmatpush1.bf16.msra.mxu0 %v1368
      %1400 = vmatprep.subr.bf16.mxu0 0
      %1401 = vmatpush2.bf16.msra.mxu0 0
      %1402 = vmatprep.subr.bf16.mxu0 0
      %1403 = vmatpush2.bf16.msra.mxu0 0
      %1404 = vmatprep.subr.bf16.mxu0 0
      %1405 = vmatpush2.bf16.msra.mxu0 0
      %1406 = vmatprep.subr.bf16.mxu0 0
      %1407 = vmatpush2.bf16.msra.mxu0 0
      %1408 = vmatprep.subr.bf16.mxu0 0
      %1409 = vmatpush2.bf16.msra.mxu0 0
      %1410 = vmatprep.subr.bf16.mxu0 0
      %1411 = vmatpush2.bf16.msra.mxu0 0
      %1412 = vmatprep.subr.bf16.mxu0 0
      %1413 = vmatpush2.bf16.msra.mxu0 0
      %1414 = vmatprep.subr.bf16.mxu0 0
      %1415 = vmatpush2.bf16.msra.mxu0 0
      %1416 = vmatprep.mubr.bf16.mxu0 0
      %1417 = vmatmul.mubr.bf16.gmra.mxu0 %v1328
      %v1418 = vpop.f32.mrf.mxu0
      %v1419 = vadd.f32 0.0, %v1418
      %v1420 = vpop.f32.mrf.mxu0
      %v1421 = vpop.f32.mrf.mxu0
      %v1422 = vadd.f32 0.0, %v1421
      %v1423 = vpop.f32.mrf.mxu0
      %1424 = vmatprep.mubr.bf16.mxu0 0
      %1425 = vmatmul.mubr.bf16.gmra.mxu0 %v1329
      %v1426 = vpop.f32.mrf.mxu0
      %v1427 = vadd.f32 0.0, %v1426
      %v1428 = vpop.f32.mrf.mxu0
      %v1429 = vpop.f32.mrf.mxu0
      %v1430 = vadd.f32 0.0, %v1429
      %v1431 = vpop.f32.mrf.mxu0
      %1432 = vmatprep.mubr.bf16.mxu0 0
      %1433 = vmatmul.mubr.bf16.gmra.mxu0 %v1330
      %v1434 = vpop.f32.mrf.mxu0
      %v1435 = vadd.f32 0.0, %v1434
      %v1436 = vpop.f32.mrf.mxu0
      %v1437 = vpop.f32.mrf.mxu0
      %v1438 = vadd.f32 0.0, %v1437
      %v1439 = vpop.f32.mrf.mxu0
      %1440 = vmatprep.mubr.bf16.mxu0 0
      %1441 = vmatmul.mubr.bf16.gmra.mxu0 %v1331
      %v1442 = vpop.f32.mrf.mxu0
      %v1443 = vadd.f32 0.0, %v1442
      %v1444 = vpop.f32.mrf.mxu0
      %v1445 = vpop.f32.mrf.mxu0
      %v1446 = vadd.f32 0.0, %v1445
      %v1447 = vpop.f32.mrf.mxu0
      %1448 = vdwg.mxu0
      %v1449 = vadd.f32 %v1167, %v1419
      %v1450 = vadd.f32 %v1168, %v1422
      %v1451 = vadd.f32 %v1169, %v1427
      %v1452 = vadd.f32 %v1170, %v1430
      %v1453 = vadd.f32 %v1171, %v1435
      %v1454 = vadd.f32 %v1172, %v1438
      %v1455 = vadd.f32 %v1173, %v1443
      %v1456 = vadd.f32 %v1174, %v1446
      %s1457 = sadd.s32 %s214, 1
      %s1458 = smul.u32 %s1457, 2
      %s1459 = smul.addr %s1458, 4
      %s1460 = scalar_lea.vmem %s195, %s1459
      %v1461 = vld [vmem:[%s1460] sm:$0xf]
      %v1462 = vld [vmem:[%s1460 + $0x8] sm:$0xf]
      %v1463 = vld [vmem:[%s1460 + $0x10] sm:$0xf]
      %v1464 = vld [vmem:[%s1460 + $0x18] sm:$0xf]
      %v1465 = vld [vmem:[%s1460 + $0x20] sm:$0xf]
      %v1466 = vld [vmem:[%s1460 + $0x28] sm:$0xf]
      %v1467 = vld [vmem:[%s1460 + $0x30] sm:$0xf]
      %v1468 = vld [vmem:[%s1460 + $0x38] sm:$0xf]
      %s1469 = scalar_lea.vmem %s1, 384
      %v1470 = vld [vmem:[%s1469] sm:$0xf]
      %v1471 = vld [vmem:[%s1469 + $0x4] sm:$0xf]
      %v1472 = vld [vmem:[%s1469 + $0x8] sm:$0xf]
      %v1473 = vld [vmem:[%s1469 + $0xc] sm:$0xf]
      %v1474 = vld [vmem:[%s1469 + $0x10] sm:$0xf]
      %v1475 = vld [vmem:[%s1469 + $0x14] sm:$0xf]
      %v1476 = vld [vmem:[%s1469 + $0x18] sm:$0xf]
      %v1477 = vld [vmem:[%s1469 + $0x1c] sm:$0xf]
      %v1478 = vld [vmem:[%s1469 + $0x20] sm:$0xf]
      %v1479 = vld [vmem:[%s1469 + $0x24] sm:$0xf]
      %v1480 = vld [vmem:[%s1469 + $0x28] sm:$0xf]
      %v1481 = vld [vmem:[%s1469 + $0x2c] sm:$0xf]
      %v1482 = vld [vmem:[%s1469 + $0x30] sm:$0xf]
      %v1483 = vld [vmem:[%s1469 + $0x34] sm:$0xf]
      %v1484 = vld [vmem:[%s1469 + $0x38] sm:$0xf]
      %v1485 = vld [vmem:[%s1469 + $0x3c] sm:$0xf]
      %v1494 = vunpack.c.l.b16 %v1461
      %v1495 = vunpack.c.l.b16 %v1462
      %v1496 = vunpack.c.l.b16 %v1463
      %v1497 = vunpack.c.l.b16 %v1464
      %v1498 = vunpack.c.l.b16 %v1465
      %v1499 = vunpack.c.l.b16 %v1466
      %v1500 = vunpack.c.l.b16 %v1467
      %v1501 = vunpack.c.l.b16 %v1468
      %v1502 = vpack.c.b16 %v1495, %v1494
      %v1503 = vpack.c.b16 %v1497, %v1496
      %v1504 = vpack.c.b16 %v1499, %v1498
      %v1505 = vpack.c.b16 %v1501, %v1500
      %v1526 = vunpack.c.l.b16 %v1470
      %v1527 = vunpack.c.l.b16 %v1471
      %v1528 = vunpack.c.l.b16 %v1472
      %v1529 = vunpack.c.l.b16 %v1473
      %v1530 = vunpack.c.l.b16 %v1474
      %v1531 = vunpack.c.l.b16 %v1475
      %v1532 = vunpack.c.l.b16 %v1476
      %v1533 = vunpack.c.l.b16 %v1477
      %v1534 = vunpack.c.l.b16 %v1478
      %v1535 = vunpack.c.l.b16 %v1479
      %v1536 = vunpack.c.l.b16 %v1480
      %v1537 = vunpack.c.l.b16 %v1481
      %v1538 = vunpack.c.l.b16 %v1482
      %v1539 = vunpack.c.l.b16 %v1483
      %v1540 = vunpack.c.l.b16 %v1484
      %v1541 = vunpack.c.l.b16 %v1485
      %v1542 = vpack.c.b16 %v1527, %v1526
      %v1543 = vpack.c.b16 %v1529, %v1528
      %v1544 = vpack.c.b16 %v1531, %v1530
      %v1545 = vpack.c.b16 %v1533, %v1532
      %v1546 = vpack.c.b16 %v1535, %v1534
      %v1547 = vpack.c.b16 %v1537, %v1536
      %v1548 = vpack.c.b16 %v1539, %v1538
      %v1549 = vpack.c.b16 %v1541, %v1540
      %1558 = vmatprep.subr.bf16.mxu0 0
      %1559 = vmatpush1.bf16.msra.mxu0 %v1549
      %1560 = vmatprep.subr.bf16.mxu0 0
      %1561 = vmatpush1.bf16.msra.mxu0 %v1548
      %1562 = vmatprep.subr.bf16.mxu0 0
      %1563 = vmatpush1.bf16.msra.mxu0 %v1547
      %1564 = vmatprep.subr.bf16.mxu0 0
      %1565 = vmatpush1.bf16.msra.mxu0 %v1546
      %1566 = vmatprep.subr.bf16.mxu0 0
      %1567 = vmatpush1.bf16.msra.mxu0 %v1545
      %1568 = vmatprep.subr.bf16.mxu0 0
      %1569 = vmatpush1.bf16.msra.mxu0 %v1544
      %1570 = vmatprep.subr.bf16.mxu0 0
      %1571 = vmatpush1.bf16.msra.mxu0 %v1543
      %1572 = vmatprep.subr.bf16.mxu0 0
      %1573 = vmatpush1.bf16.msra.mxu0 %v1542
      %1574 = vmatprep.subr.bf16.mxu0 0
      %1575 = vmatpush2.bf16.msra.mxu0 0
      %1576 = vmatprep.subr.bf16.mxu0 0
      %1577 = vmatpush2.bf16.msra.mxu0 0
      %1578 = vmatprep.subr.bf16.mxu0 0
      %1579 = vmatpush2.bf16.msra.mxu0 0
      %1580 = vmatprep.subr.bf16.mxu0 0
      %1581 = vmatpush2.bf16.msra.mxu0 0
      %1582 = vmatprep.subr.bf16.mxu0 0
      %1583 = vmatpush2.bf16.msra.mxu0 0
      %1584 = vmatprep.subr.bf16.mxu0 0
      %1585 = vmatpush2.bf16.msra.mxu0 0
      %1586 = vmatprep.subr.bf16.mxu0 0
      %1587 = vmatpush2.bf16.msra.mxu0 0
      %1588 = vmatprep.subr.bf16.mxu0 0
      %1589 = vmatpush2.bf16.msra.mxu0 0
      %1590 = vmatprep.mubr.bf16.mxu0 0
      %1591 = vmatmul.mubr.bf16.gmra.mxu0 %v1502
      %v1592 = vpop.f32.mrf.mxu0
      %v1593 = vadd.f32 0.0, %v1592
      %v1594 = vpop.f32.mrf.mxu0
      %v1595 = vpop.f32.mrf.mxu0
      %v1596 = vadd.f32 0.0, %v1595
      %v1597 = vpop.f32.mrf.mxu0
      %1598 = vmatprep.mubr.bf16.mxu0 0
      %1599 = vmatmul.mubr.bf16.gmra.mxu0 %v1503
      %v1600 = vpop.f32.mrf.mxu0
      %v1601 = vadd.f32 0.0, %v1600
      %v1602 = vpop.f32.mrf.mxu0
      %v1603 = vpop.f32.mrf.mxu0
      %v1604 = vadd.f32 0.0, %v1603
      %v1605 = vpop.f32.mrf.mxu0
      %1606 = vmatprep.mubr.bf16.mxu0 0
      %1607 = vmatmul.mubr.bf16.gmra.mxu0 %v1504
      %v1608 = vpop.f32.mrf.mxu0
      %v1609 = vadd.f32 0.0, %v1608
      %v1610 = vpop.f32.mrf.mxu0
      %v1611 = vpop.f32.mrf.mxu0
      %v1612 = vadd.f32 0.0, %v1611
      %v1613 = vpop.f32.mrf.mxu0
      %1614 = vmatprep.mubr.bf16.mxu0 0
      %1615 = vmatmul.mubr.bf16.gmra.mxu0 %v1505
      %v1616 = vpop.f32.mrf.mxu0
      %v1617 = vadd.f32 0.0, %v1616
      %v1618 = vpop.f32.mrf.mxu0
      %v1619 = vpop.f32.mrf.mxu0
      %v1620 = vadd.f32 0.0, %v1619
      %v1621 = vpop.f32.mrf.mxu0
      %1622 = vdwg.mxu0
      %v1623 = vadd.f32 %v1449, %v1593
      %v1624 = vadd.f32 %v1450, %v1596
      %v1625 = vadd.f32 %v1451, %v1601
      %v1626 = vadd.f32 %v1452, %v1604
      %v1627 = vadd.f32 %v1453, %v1609
      %v1628 = vadd.f32 %v1454, %v1612
      %v1629 = vadd.f32 %v1455, %v1617
      %v1630 = vadd.f32 %v1456, %v1620
      %s1631 = sadd.s32 %s1458, 18
      %s1632 = smul.addr %s1631, 4
      %s1633 = scalar_lea.vmem %s195, %s1632
      %v1634 = vld [vmem:[%s1633] sm:$0xf]
      %v1635 = vld [vmem:[%s1633 + $0x8] sm:$0xf]
      %v1636 = vld [vmem:[%s1633 + $0x10] sm:$0xf]
      %v1637 = vld [vmem:[%s1633 + $0x18] sm:$0xf]
      %v1638 = vld [vmem:[%s1633 + $0x20] sm:$0xf]
      %v1639 = vld [vmem:[%s1633 + $0x28] sm:$0xf]
      %v1640 = vld [vmem:[%s1633 + $0x30] sm:$0xf]
      %v1641 = vld [vmem:[%s1633 + $0x38] sm:$0xf]
      %s1642 = scalar_lea.vmem %s1, 448
      %v1643 = vld [vmem:[%s1642] sm:$0xf]
      %v1644 = vld [vmem:[%s1642 + $0x4] sm:$0xf]
      %v1645 = vld [vmem:[%s1642 + $0x8] sm:$0xf]
      %v1646 = vld [vmem:[%s1642 + $0xc] sm:$0xf]
      %v1647 = vld [vmem:[%s1642 + $0x10] sm:$0xf]
      %v1648 = vld [vmem:[%s1642 + $0x14] sm:$0xf]
      %v1649 = vld [vmem:[%s1642 + $0x18] sm:$0xf]
      %v1650 = vld [vmem:[%s1642 + $0x1c] sm:$0xf]
      %v1651 = vld [vmem:[%s1642 + $0x20] sm:$0xf]
      %v1652 = vld [vmem:[%s1642 + $0x24] sm:$0xf]
      %v1653 = vld [vmem:[%s1642 + $0x28] sm:$0xf]
      %v1654 = vld [vmem:[%s1642 + $0x2c] sm:$0xf]
      %v1655 = vld [vmem:[%s1642 + $0x30] sm:$0xf]
      %v1656 = vld [vmem:[%s1642 + $0x34] sm:$0xf]
      %v1657 = vld [vmem:[%s1642 + $0x38] sm:$0xf]
      %v1658 = vld [vmem:[%s1642 + $0x3c] sm:$0xf]
      %v1667 = vunpack.c.l.b16 %v1634
      %v1668 = vunpack.c.l.b16 %v1635
      %v1669 = vunpack.c.l.b16 %v1636
      %v1670 = vunpack.c.l.b16 %v1637
      %v1671 = vunpack.c.l.b16 %v1638
      %v1672 = vunpack.c.l.b16 %v1639
      %v1673 = vunpack.c.l.b16 %v1640
      %v1674 = vunpack.c.l.b16 %v1641
      %v1675 = vpack.c.b16 %v1668, %v1667
      %v1676 = vpack.c.b16 %v1670, %v1669
      %v1677 = vpack.c.b16 %v1672, %v1671
      %v1678 = vpack.c.b16 %v1674, %v1673
      %v1699 = vunpack.c.l.b16 %v1643
      %v1700 = vunpack.c.l.b16 %v1644
      %v1701 = vunpack.c.l.b16 %v1645
      %v1702 = vunpack.c.l.b16 %v1646
      %v1703 = vunpack.c.l.b16 %v1647
      %v1704 = vunpack.c.l.b16 %v1648
      %v1705 = vunpack.c.l.b16 %v1649
      %v1706 = vunpack.c.l.b16 %v1650
      %v1707 = vunpack.c.l.b16 %v1651
      %v1708 = vunpack.c.l.b16 %v1652
      %v1709 = vunpack.c.l.b16 %v1653
      %v1710 = vunpack.c.l.b16 %v1654
      %v1711 = vunpack.c.l.b16 %v1655
      %v1712 = vunpack.c.l.b16 %v1656
      %v1713 = vunpack.c.l.b16 %v1657
      %v1714 = vunpack.c.l.b16 %v1658
      %v1715 = vpack.c.b16 %v1700, %v1699
      %v1716 = vpack.c.b16 %v1702, %v1701
      %v1717 = vpack.c.b16 %v1704, %v1703
      %v1718 = vpack.c.b16 %v1706, %v1705
      %v1719 = vpack.c.b16 %v1708, %v1707
      %v1720 = vpack.c.b16 %v1710, %v1709
      %v1721 = vpack.c.b16 %v1712, %v1711
      %v1722 = vpack.c.b16 %v1714, %v1713
      %1731 = vmatprep.subr.bf16.mxu0 0
      %1732 = vmatpush1.bf16.msra.mxu0 %v1722
      %1733 = vmatprep.subr.bf16.mxu0 0
      %1734 = vmatpush1.bf16.msra.mxu0 %v1721
      %1735 = vmatprep.subr.bf16.mxu0 0
      %1736 = vmatpush1.bf16.msra.mxu0 %v1720
      %1737 = vmatprep.subr.bf16.mxu0 0
      %1738 = vmatpush1.bf16.msra.mxu0 %v1719
      %1739 = vmatprep.subr.bf16.mxu0 0
      %1740 = vmatpush1.bf16.msra.mxu0 %v1718
      %1741 = vmatprep.subr.bf16.mxu0 0
      %1742 = vmatpush1.bf16.msra.mxu0 %v1717
      %1743 = vmatprep.subr.bf16.mxu0 0
      %1744 = vmatpush1.bf16.msra.mxu0 %v1716
      %1745 = vmatprep.subr.bf16.mxu0 0
      %1746 = vmatpush1.bf16.msra.mxu0 %v1715
      %1747 = vmatprep.subr.bf16.mxu0 0
      %1748 = vmatpush2.bf16.msra.mxu0 0
      %1749 = vmatprep.subr.bf16.mxu0 0
      %1750 = vmatpush2.bf16.msra.mxu0 0
      %1751 = vmatprep.subr.bf16.mxu0 0
      %1752 = vmatpush2.bf16.msra.mxu0 0
      %1753 = vmatprep.subr.bf16.mxu0 0
      %1754 = vmatpush2.bf16.msra.mxu0 0
      %1755 = vmatprep.subr.bf16.mxu0 0
      %1756 = vmatpush2.bf16.msra.mxu0 0
      %1757 = vmatprep.subr.bf16.mxu0 0
      %1758 = vmatpush2.bf16.msra.mxu0 0
      %1759 = vmatprep.subr.bf16.mxu0 0
      %1760 = vmatpush2.bf16.msra.mxu0 0
      %1761 = vmatprep.subr.bf16.mxu0 0
      %1762 = vmatpush2.bf16.msra.mxu0 0
      %1763 = vmatprep.mubr.bf16.mxu0 0
      %1764 = vmatmul.mubr.bf16.gmra.mxu0 %v1675
      %v1765 = vpop.f32.mrf.mxu0
      %v1766 = vadd.f32 0.0, %v1765
      %v1767 = vpop.f32.mrf.mxu0
      %v1768 = vpop.f32.mrf.mxu0
      %v1769 = vadd.f32 0.0, %v1768
      %v1770 = vpop.f32.mrf.mxu0
      %1771 = vmatprep.mubr.bf16.mxu0 0
      %1772 = vmatmul.mubr.bf16.gmra.mxu0 %v1676
      %v1773 = vpop.f32.mrf.mxu0
      %v1774 = vadd.f32 0.0, %v1773
      %v1775 = vpop.f32.mrf.mxu0
      %v1776 = vpop.f32.mrf.mxu0
      %v1777 = vadd.f32 0.0, %v1776
      %v1778 = vpop.f32.mrf.mxu0
      %1779 = vmatprep.mubr.bf16.mxu0 0
      %1780 = vmatmul.mubr.bf16.gmra.mxu0 %v1677
      %v1781 = vpop.f32.mrf.mxu0
      %v1782 = vadd.f32 0.0, %v1781
      %v1783 = vpop.f32.mrf.mxu0
      %v1784 = vpop.f32.mrf.mxu0
      %v1785 = vadd.f32 0.0, %v1784
      %v1786 = vpop.f32.mrf.mxu0
      %1787 = vmatprep.mubr.bf16.mxu0 0
      %1788 = vmatmul.mubr.bf16.gmra.mxu0 %v1678
      %v1789 = vpop.f32.mrf.mxu0
      %v1790 = vadd.f32 0.0, %v1789
      %v1791 = vpop.f32.mrf.mxu0
      %v1792 = vpop.f32.mrf.mxu0
      %v1793 = vadd.f32 0.0, %v1792
      %v1794 = vpop.f32.mrf.mxu0
      %1795 = vdwg.mxu0
      %v1796 = vadd.f32 %v1623, %v1766
      %v1797 = vadd.f32 %v1624, %v1769
      %v1798 = vadd.f32 %v1625, %v1774
      %v1799 = vadd.f32 %v1626, %v1777
      %v1800 = vadd.f32 %v1627, %v1782
      %v1801 = vadd.f32 %v1628, %v1785
      %v1802 = vadd.f32 %v1629, %v1790
      %v1803 = vadd.f32 %v1630, %v1793
      %v1804 = vld [vmem:[%s1460] sm:$0xf]
      %v1805 = vld [vmem:[%s1460 + $0x4] sm:$0x1]
      %v1806 = vld [vmem:[%s1460 + $0x8] sm:$0xf]
      %v1807 = vld [vmem:[%s1460 + $0xc] sm:$0x1]
      %v1808 = vld [vmem:[%s1460 + $0x10] sm:$0xf]
      %v1809 = vld [vmem:[%s1460 + $0x14] sm:$0x1]
      %v1810 = vld [vmem:[%s1460 + $0x18] sm:$0xf]
      %v1811 = vld [vmem:[%s1460 + $0x1c] sm:$0x1]
      %v1812 = vld [vmem:[%s1460 + $0x20] sm:$0xf]
      %v1813 = vld [vmem:[%s1460 + $0x24] sm:$0x1]
      %v1814 = vld [vmem:[%s1460 + $0x28] sm:$0xf]
      %v1815 = vld [vmem:[%s1460 + $0x2c] sm:$0x1]
      %v1816 = vld [vmem:[%s1460 + $0x30] sm:$0xf]
      %v1817 = vld [vmem:[%s1460 + $0x34] sm:$0x1]
      %v1818 = vld [vmem:[%s1460 + $0x38] sm:$0xf]
      %v1819 = vld [vmem:[%s1460 + $0x3c] sm:$0x1]
      %v1821 = vshrl.u32 %v1804, 16
      %v1823 = vrot.slane %v1821, 4
      %v1824 = vshll.u32 %v1804, 16
      %v1826 = vrot.slane %v1824, 5
      %v1827 = vor.u32 %v1823, %v1826
      %v1828 = vrot.slane %v1827, 4
      %v1830 = vshll.u32 %v1805, 16
      %v1832 = vrot.slane %v1830, 5
      %v1833 = vsel %vm562, %v1828, %v1832
      %v1835 = vshrl.u32 %v1806, 16
      %v1837 = vrot.slane %v1835, 4
      %v1838 = vshll.u32 %v1806, 16
      %v1840 = vrot.slane %v1838, 5
      %v1841 = vor.u32 %v1837, %v1840
      %v1842 = vrot.slane %v1841, 4
      %v1844 = vshll.u32 %v1807, 16
      %v1846 = vrot.slane %v1844, 5
      %v1847 = vsel %vm562, %v1842, %v1846
      %v1849 = vshrl.u32 %v1808, 16
      %v1851 = vrot.slane %v1849, 4
      %v1852 = vshll.u32 %v1808, 16
      %v1854 = vrot.slane %v1852, 5
      %v1855 = vor.u32 %v1851, %v1854
      %v1856 = vrot.slane %v1855, 4
      %v1858 = vshll.u32 %v1809, 16
      %v1860 = vrot.slane %v1858, 5
      %v1861 = vsel %vm562, %v1856, %v1860
      %v1863 = vshrl.u32 %v1810, 16
      %v1865 = vrot.slane %v1863, 4
      %v1866 = vshll.u32 %v1810, 16
      %v1868 = vrot.slane %v1866, 5
      %v1869 = vor.u32 %v1865, %v1868
      %v1870 = vrot.slane %v1869, 4
      %v1872 = vshll.u32 %v1811, 16
      %v1874 = vrot.slane %v1872, 5
      %v1875 = vsel %vm562, %v1870, %v1874
      %v1877 = vshrl.u32 %v1812, 16
      %v1879 = vrot.slane %v1877, 4
      %v1880 = vshll.u32 %v1812, 16
      %v1882 = vrot.slane %v1880, 5
      %v1883 = vor.u32 %v1879, %v1882
      %v1884 = vrot.slane %v1883, 4
      %v1886 = vshll.u32 %v1813, 16
      %v1888 = vrot.slane %v1886, 5
      %v1889 = vsel %vm562, %v1884, %v1888
      %v1891 = vshrl.u32 %v1814, 16
      %v1893 = vrot.slane %v1891, 4
      %v1894 = vshll.u32 %v1814, 16
      %v1896 = vrot.slane %v1894, 5
      %v1897 = vor.u32 %v1893, %v1896
      %v1898 = vrot.slane %v1897, 4
      %v1900 = vshll.u32 %v1815, 16
      %v1902 = vrot.slane %v1900, 5
      %v1903 = vsel %vm562, %v1898, %v1902
      %v1905 = vshrl.u32 %v1816, 16
      %v1907 = vrot.slane %v1905, 4
      %v1908 = vshll.u32 %v1816, 16
      %v1910 = vrot.slane %v1908, 5
      %v1911 = vor.u32 %v1907, %v1910
      %v1912 = vrot.slane %v1911, 4
      %v1914 = vshll.u32 %v1817, 16
      %v1916 = vrot.slane %v1914, 5
      %v1917 = vsel %vm562, %v1912, %v1916
      %v1919 = vshrl.u32 %v1818, 16
      %v1921 = vrot.slane %v1919, 4
      %v1922 = vshll.u32 %v1818, 16
      %v1924 = vrot.slane %v1922, 5
      %v1925 = vor.u32 %v1921, %v1924
      %v1926 = vrot.slane %v1925, 4
      %v1928 = vshll.u32 %v1819, 16
      %v1930 = vrot.slane %v1928, 5
      %v1931 = vsel %vm562, %v1926, %v1930
      %s1932 = scalar_lea.vmem %s1, 512
      %v1933 = vld [vmem:[%s1932] sm:$0xf]
      %v1934 = vld [vmem:[%s1932 + $0x4] sm:$0xf]
      %v1935 = vld [vmem:[%s1932 + $0x8] sm:$0xf]
      %v1936 = vld [vmem:[%s1932 + $0xc] sm:$0xf]
      %v1937 = vld [vmem:[%s1932 + $0x10] sm:$0xf]
      %v1938 = vld [vmem:[%s1932 + $0x14] sm:$0xf]
      %v1939 = vld [vmem:[%s1932 + $0x18] sm:$0xf]
      %v1940 = vld [vmem:[%s1932 + $0x1c] sm:$0xf]
      %v1941 = vld [vmem:[%s1932 + $0x20] sm:$0xf]
      %v1942 = vld [vmem:[%s1932 + $0x24] sm:$0xf]
      %v1943 = vld [vmem:[%s1932 + $0x28] sm:$0xf]
      %v1944 = vld [vmem:[%s1932 + $0x2c] sm:$0xf]
      %v1945 = vld [vmem:[%s1932 + $0x30] sm:$0xf]
      %v1946 = vld [vmem:[%s1932 + $0x34] sm:$0xf]
      %v1947 = vld [vmem:[%s1932 + $0x38] sm:$0xf]
      %v1948 = vld [vmem:[%s1932 + $0x3c] sm:$0xf]
      %v1949 = vunpack.c.l.b16 %v1833
      %v1950 = vunpack.c.l.b16 %v1847
      %v1951 = vunpack.c.l.b16 %v1861
      %v1952 = vunpack.c.l.b16 %v1875
      %v1953 = vunpack.c.l.b16 %v1889
      %v1954 = vunpack.c.l.b16 %v1903
      %v1955 = vunpack.c.l.b16 %v1917
      %v1956 = vunpack.c.l.b16 %v1931
      %v1957 = vpack.c.b16 %v1950, %v1949
      %v1958 = vpack.c.b16 %v1952, %v1951
      %v1959 = vpack.c.b16 %v1954, %v1953
      %v1960 = vpack.c.b16 %v1956, %v1955
      %v1981 = vunpack.c.l.b16 %v1933
      %v1982 = vunpack.c.l.b16 %v1934
      %v1983 = vunpack.c.l.b16 %v1935
      %v1984 = vunpack.c.l.b16 %v1936
      %v1985 = vunpack.c.l.b16 %v1937
      %v1986 = vunpack.c.l.b16 %v1938
      %v1987 = vunpack.c.l.b16 %v1939
      %v1988 = vunpack.c.l.b16 %v1940
      %v1989 = vunpack.c.l.b16 %v1941
      %v1990 = vunpack.c.l.b16 %v1942
      %v1991 = vunpack.c.l.b16 %v1943
      %v1992 = vunpack.c.l.b16 %v1944
      %v1993 = vunpack.c.l.b16 %v1945
      %v1994 = vunpack.c.l.b16 %v1946
      %v1995 = vunpack.c.l.b16 %v1947
      %v1996 = vunpack.c.l.b16 %v1948
      %v1997 = vpack.c.b16 %v1982, %v1981
      %v1998 = vpack.c.b16 %v1984, %v1983
      %v1999 = vpack.c.b16 %v1986, %v1985
      %v2000 = vpack.c.b16 %v1988, %v1987
      %v2001 = vpack.c.b16 %v1990, %v1989
      %v2002 = vpack.c.b16 %v1992, %v1991
      %v2003 = vpack.c.b16 %v1994, %v1993
      %v2004 = vpack.c.b16 %v1996, %v1995
      %2013 = vmatprep.subr.bf16.mxu0 0
      %2014 = vmatpush1.bf16.msra.mxu0 %v2004
      %2015 = vmatprep.subr.bf16.mxu0 0
      %2016 = vmatpush1.bf16.msra.mxu0 %v2003
      %2017 = vmatprep.subr.bf16.mxu0 0
      %2018 = vmatpush1.bf16.msra.mxu0 %v2002
      %2019 = vmatprep.subr.bf16.mxu0 0
      %2020 = vmatpush1.bf16.msra.mxu0 %v2001
      %2021 = vmatprep.subr.bf16.mxu0 0
      %2022 = vmatpush1.bf16.msra.mxu0 %v2000
      %2023 = vmatprep.subr.bf16.mxu0 0
      %2024 = vmatpush1.bf16.msra.mxu0 %v1999
      %2025 = vmatprep.subr.bf16.mxu0 0
      %2026 = vmatpush1.bf16.msra.mxu0 %v1998
      %2027 = vmatprep.subr.bf16.mxu0 0
      %2028 = vmatpush1.bf16.msra.mxu0 %v1997
      %2029 = vmatprep.subr.bf16.mxu0 0
      %2030 = vmatpush2.bf16.msra.mxu0 0
      %2031 = vmatprep.subr.bf16.mxu0 0
      %2032 = vmatpush2.bf16.msra.mxu0 0
      %2033 = vmatprep.subr.bf16.mxu0 0
      %2034 = vmatpush2.bf16.msra.mxu0 0
      %2035 = vmatprep.subr.bf16.mxu0 0
      %2036 = vmatpush2.bf16.msra.mxu0 0
      %2037 = vmatprep.subr.bf16.mxu0 0
      %2038 = vmatpush2.bf16.msra.mxu0 0
      %2039 = vmatprep.subr.bf16.mxu0 0
      %2040 = vmatpush2.bf16.msra.mxu0 0
      %2041 = vmatprep.subr.bf16.mxu0 0
      %2042 = vmatpush2.bf16.msra.mxu0 0
      %2043 = vmatprep.subr.bf16.mxu0 0
      %2044 = vmatpush2.bf16.msra.mxu0 0
      %2045 = vmatprep.mubr.bf16.mxu0 0
      %2046 = vmatmul.mubr.bf16.gmra.mxu0 %v1957
      %v2047 = vpop.f32.mrf.mxu0
      %v2048 = vadd.f32 0.0, %v2047
      %v2049 = vpop.f32.mrf.mxu0
      %v2050 = vpop.f32.mrf.mxu0
      %v2051 = vadd.f32 0.0, %v2050
      %v2052 = vpop.f32.mrf.mxu0
      %2053 = vmatprep.mubr.bf16.mxu0 0
      %2054 = vmatmul.mubr.bf16.gmra.mxu0 %v1958
      %v2055 = vpop.f32.mrf.mxu0
      %v2056 = vadd.f32 0.0, %v2055
      %v2057 = vpop.f32.mrf.mxu0
      %v2058 = vpop.f32.mrf.mxu0
      %v2059 = vadd.f32 0.0, %v2058
      %v2060 = vpop.f32.mrf.mxu0
      %2061 = vmatprep.mubr.bf16.mxu0 0
      %2062 = vmatmul.mubr.bf16.gmra.mxu0 %v1959
      %v2063 = vpop.f32.mrf.mxu0
      %v2064 = vadd.f32 0.0, %v2063
      %v2065 = vpop.f32.mrf.mxu0
      %v2066 = vpop.f32.mrf.mxu0
      %v2067 = vadd.f32 0.0, %v2066
      %v2068 = vpop.f32.mrf.mxu0
      %2069 = vmatprep.mubr.bf16.mxu0 0
      %2070 = vmatmul.mubr.bf16.gmra.mxu0 %v1960
      %v2071 = vpop.f32.mrf.mxu0
      %v2072 = vadd.f32 0.0, %v2071
      %v2073 = vpop.f32.mrf.mxu0
      %v2074 = vpop.f32.mrf.mxu0
      %v2075 = vadd.f32 0.0, %v2074
      %v2076 = vpop.f32.mrf.mxu0
      %2077 = vdwg.mxu0
      %v2078 = vadd.f32 %v1796, %v2048
      %v2079 = vadd.f32 %v1797, %v2051
      %v2080 = vadd.f32 %v1798, %v2056
      %v2081 = vadd.f32 %v1799, %v2059
      %v2082 = vadd.f32 %v1800, %v2064
      %v2083 = vadd.f32 %v1801, %v2067
      %v2084 = vadd.f32 %v1802, %v2072
      %v2085 = vadd.f32 %v1803, %v2075
      %v2086 = vpack.c.bf16 %v2078, %v2078
      %v2087 = vpack.c.bf16 %v2079, %v2079
      %v2088 = vpack.c.bf16 %v2080, %v2080
      %v2089 = vpack.c.bf16 %v2081, %v2081
      %v2090 = vpack.c.bf16 %v2082, %v2082
      %v2091 = vpack.c.bf16 %v2083, %v2083
      %v2092 = vpack.c.bf16 %v2084, %v2084
      %v2093 = vpack.c.bf16 %v2085, %v2085
      %2094 = vst [vmem:[%s204] sm:$0xf] %v2086
      %2095 = vst [vmem:[%s204 + $0x4] sm:$0xf] %v2087
      %2096 = vst [vmem:[%s204 + $0x8] sm:$0xf] %v2088
      %2097 = vst [vmem:[%s204 + $0xc] sm:$0xf] %v2089
      %2098 = vst [vmem:[%s204 + $0x10] sm:$0xf] %v2090
      %2099 = vst [vmem:[%s204 + $0x14] sm:$0xf] %v2091
      %2100 = vst [vmem:[%s204 + $0x18] sm:$0xf] %v2092
      %2101 = vst [vmem:[%s204 + $0x1c] sm:$0xf] %v2093
      %v2102 = vadd.f32 %v2078, %v2079
      %v2103 = vadd.f32 %v2102, %v2080
      %v2104 = vadd.f32 %v2103, %v2081
      %v2105 = vadd.f32 %v2104, %v2082
      %v2106 = vadd.f32 %v2105, %v2083
      %v2107 = vadd.f32 %v2106, %v2084
      %v2108 = vadd.f32 %v2107, %v2085
      %v2109 = vrot.slane %v2108, 4
      %v2110 = vadd.f32 %v2108, %v2109
      %v2111 = vrot.slane %v2110, 2
      %v2112 = vadd.f32 %v2110, %v2111
      %v2113 = vrot.slane %v2112, 1
      %v2114 = vadd.f32 %v2112, %v2113
      %v2115 = vmul.f32 %v2078, %v2078
      %v2116 = vmul.f32 %v2079, %v2079
      %v2117 = vmul.f32 %v2080, %v2080
      %v2118 = vmul.f32 %v2081, %v2081
      %v2119 = vmul.f32 %v2082, %v2082
      %v2120 = vmul.f32 %v2083, %v2083
      %v2121 = vmul.f32 %v2084, %v2084
      %v2122 = vmul.f32 %v2085, %v2085
      %v2123 = vadd.f32 %v2115, %v2116
      %v2124 = vadd.f32 %v2123, %v2117
      %v2125 = vadd.f32 %v2124, %v2118
      %v2126 = vadd.f32 %v2125, %v2119
      %v2127 = vadd.f32 %v2126, %v2120
      %v2128 = vadd.f32 %v2127, %v2121
      %v2129 = vadd.f32 %v2128, %v2122
      %v2130 = vrot.slane %v2129, 4
      %v2131 = vadd.f32 %v2129, %v2130
      %v2132 = vrot.slane %v2131, 2
      %v2133 = vadd.f32 %v2131, %v2132
      %v2134 = vrot.slane %v2133, 1
      %v2135 = vadd.f32 %v2133, %v2134
      %v2136 = vlaneseq
      %v2137 = vshrl.u32 %v2136, 7
      %vm2138 = vcmp.eq.s32.totalorder %v2137, 0
      %vm2139 = vcmp.eq.s32.totalorder %v2137, 1
      %v2140 = vsel %vm2139, %v2135, 0.0
      %v2141 = vsel %vm2138, %v2114, %v2140
      %2142 = vst [vmem:[%s212] sm:$0xff] %v2141
      %s2143 = smul.u32 8, %s20
      %p2144 = scmp.lt.s32.totalorder %s19, 1
      %s2145 = scalar_select %p2144, %s19, 1
      %p2146 = scmp.lt.s32.totalorder %s2143, 7
      %s2147 = scalar_select %p2146, %s2143, 7
      %s2148 = smul.addr %s2145, 8
      %s2149 = sadd.s32 %s2147, %s2148
      %s2150 = smul.addr %s2149, 4
      %s2151 = scalar_lea.vmem %s2, %s2150
      %p2152 = scmp.lt.s32.totalorder %s19, 1
      %s2153 = scalar_select %p2152, %s19, 1
      %p2154 = scmp.lt.s32.totalorder %s20, 0
      %s2155 = scalar_select %p2154, %s20, 0
      %s2156 = sadd.s32 %s2155, %s2153
      %s2157 = smul.addr %s2156, 8
      %s2158 = scalar_lea.vmem %s3, %s2157
      // Predicated region
      $region29: #{bottleneck_forward.8} parent=27 // pred_check
        %p2159 = pneg %p94
      $region30: #{bottleneck_forward.8} parent=27 // pred_check_branch
        %2161 = sbr.rel (%p2159) target = $region32
      $region31: #{bottleneck_forward.8} parent=27 // pred_region
        %s2162 = smul.u32 8, %s20
      $region32: #{bottleneck_forward.8} parent=27 // pred_fallthru
        _
      // Predicated region
      $region33: #{bottleneck_forward.8} parent=27 // pred_check
        %p2163 = pneg %p122
      $region34: #{bottleneck_forward.8} parent=27 // pred_check_branch
        %2165 = sbr.rel (%p2163) target = $region36
      $region35: #{bottleneck_forward.8} parent=27 // pred_region
        _
      $region36: #{bottleneck_forward.8} parent=27 // pred_fallthru
        _
    $region28: #{bottleneck_forward.8} parent=5 // pred_fallthru
      _
    %p2166 = scmp.le.s32.totalorder 2, %s10
    // Predicated region
    $region37: #{bottleneck_forward.8} parent=5 // pred_check
      %p2167 = pneg %p2166
    $region38: #{bottleneck_forward.8} parent=5 // pred_check_branch
      %2169 = sbr.rel (%p2167) target = $region40
    $region39: #{bottleneck_forward.8} parent=5 // pred_region
      %s2170 = ssub.s32 %s10, 2
      // Predicated region
      $region41: #{bottleneck_forward.8} parent=39 // pred_check
        %p2171 = pneg %p100
      $region42: #{bottleneck_forward.8} parent=39 // pred_check_branch
        %2173 = sbr.rel (%p2171) target = $region44
      $region43: #{bottleneck_forward.8} parent=39 // pred_region
        %s2174 = smul.u32 8, %s22
        %p2175 = scmp.lt.s32.totalorder %s21, 1
        %s2176 = scalar_select %p2175, %s21, 1
        %p2177 = scmp.lt.s32.totalorder %s2174, 7
        %s2178 = scalar_select %p2177, %s2174, 7
        %s2179 = smul.addr %s2176, 8
        %s2180 = sadd.s32 %s2178, %s2179
        %s2181 = smul.addr %s2180, 4
        %s2182 = scalar_lea.vmem %s2, %s2181
      $region44: #{bottleneck_forward.8} parent=39 // pred_fallthru
        _
      // Predicated region
      $region45: #{bottleneck_forward.8} parent=39 // pred_check
        %p2183 = pneg %p128
      $region46: #{bottleneck_forward.8} parent=39 // pred_check_branch
        %2185 = sbr.rel (%p2183) target = $region48
      $region47: #{bottleneck_forward.8} parent=39 // pred_region
        %p2186 = scmp.lt.s32.totalorder %s21, 1
        %s2187 = scalar_select %p2186, %s21, 1
        %p2188 = scmp.lt.s32.totalorder %s22, 0
        %s2189 = scalar_select %p2188, %s22, 0
        %s2190 = sadd.s32 %s2189, %s2187
        %s2191 = smul.addr %s2190, 8
        %s2192 = scalar_lea.vmem %s3, %s2191
      $region48: #{bottleneck_forward.8} parent=39 // pred_fallthru
        _
    $region40: #{bottleneck_forward.8} parent=5 // pred_fallthru
      _
  $region6: #{bottleneck_forward.8} parent=0 // loop_footer
    %s14 = sadd.s32 1, %s10
  $region7: #{bottleneck_forward.8} parent=0 // loop_footer_branch
    %9 = sbr.rel target = $region3
  $region8: #{bottleneck_forward.8} parent=0 // loop_exit
    _

// kernel: bottleneck_forward.10
$region0: #{bottleneck_forward.10}
  #allocation0 [shape = 'u32[]', space=smem, size = 0x4, offset = 0x4, fixed_abs, tag = 'smem constant byte address 0x4 - core index']
  #allocation1 [shape = 'u32[144,128]{1,0:T(1,128)}', space=vmem, size = 0x12000, scoped, tag = 'internal scratch']
  %s0 = inlined_call_operand.vmem [shape: bf16[128,128], index: 0, kind: input, shape index: {}]
  %s1 = inlined_call_operand.vmem [shape: bf16[128,128], index: 1, kind: input, shape index: {}]
  %s2 = inlined_call_operand.vmem [shape: bf16[128,128], index: 2, kind: output, shape index: {0}]
  %s3 = inlined_call_operand.vmem [shape: f32[1,8,128], index: 3, kind: output, shape index: {1}]
  %4 = xla_tuple %s2, %s3
  %s5 = sld [smem:[#allocation0]]
  $region26: #{bottleneck_forward.10} parent=0
    _
  %s7 = ssub.s32 1, %s5
  %s8 = scalar_select 0, %s7, %s5
  // Predicated region
  $region2: #{bottleneck_forward.10} parent=0 // pred_check
    _
  $region3: #{bottleneck_forward.10} parent=0 // pred_check_branch
    %10 = sbr.rel (0) target = $region5
  $region4: #{bottleneck_forward.10} parent=0 // pred_region
    _
  $region5: #{bottleneck_forward.10} parent=0 // pred_fallthru
    _
  // Predicated region
  $region6: #{bottleneck_forward.10} parent=0 // pred_check
    _
  $region7: #{bottleneck_forward.10} parent=0 // pred_check_branch
    %12 = sbr.rel (0) target = $region9
  $region8: #{bottleneck_forward.10} parent=0 // pred_region
    _
  $region9: #{bottleneck_forward.10} parent=0 // pred_fallthru
    _
  %v14 = vld [vmem:[%s0] sm:$0xf]
  %v15 = vld [vmem:[%s0 + $0x4] sm:$0xf]
  %v16 = vld [vmem:[%s0 + $0x8] sm:$0xf]
  %v17 = vld [vmem:[%s0 + $0xc] sm:$0xf]
  %v18 = vld [vmem:[%s0 + $0x10] sm:$0xf]
  %v19 = vld [vmem:[%s0 + $0x14] sm:$0xf]
  %v20 = vld [vmem:[%s0 + $0x18] sm:$0xf]
  %v21 = vld [vmem:[%s0 + $0x1c] sm:$0xf]
  %v22 = vld [vmem:[%s0 + $0x20] sm:$0xf]
  %v23 = vld [vmem:[%s0 + $0x24] sm:$0xf]
  %v24 = vld [vmem:[%s0 + $0x28] sm:$0xf]
  %v25 = vld [vmem:[%s0 + $0x2c] sm:$0xf]
  %v26 = vld [vmem:[%s0 + $0x30] sm:$0xf]
  %v27 = vld [vmem:[%s0 + $0x34] sm:$0xf]
  %v28 = vld [vmem:[%s0 + $0x38] sm:$0xf]
  %v29 = vld [vmem:[%s0 + $0x3c] sm:$0xf]
  %v30 = vld [vmem:[%s1] sm:$0xf]
  %v31 = vld [vmem:[%s1 + $0x4] sm:$0xf]
  %v32 = vld [vmem:[%s1 + $0x8] sm:$0xf]
  %v33 = vld [vmem:[%s1 + $0xc] sm:$0xf]
  %v34 = vld [vmem:[%s1 + $0x10] sm:$0xf]
  %v35 = vld [vmem:[%s1 + $0x14] sm:$0xf]
  %v36 = vld [vmem:[%s1 + $0x18] sm:$0xf]
  %v37 = vld [vmem:[%s1 + $0x1c] sm:$0xf]
  %v38 = vld [vmem:[%s1 + $0x20] sm:$0xf]
  %v39 = vld [vmem:[%s1 + $0x24] sm:$0xf]
  %v40 = vld [vmem:[%s1 + $0x28] sm:$0xf]
  %v41 = vld [vmem:[%s1 + $0x2c] sm:$0xf]
  %v42 = vld [vmem:[%s1 + $0x30] sm:$0xf]
  %v43 = vld [vmem:[%s1 + $0x34] sm:$0xf]
  %v44 = vld [vmem:[%s1 + $0x38] sm:$0xf]
  %v45 = vld [vmem:[%s1 + $0x3c] sm:$0xf]
  %v62 = vunpack.c.l.b16 %v14
  %v63 = vunpack.c.l.b16 %v15
  %v64 = vunpack.c.l.b16 %v16
  %v65 = vunpack.c.l.b16 %v17
  %v66 = vunpack.c.l.b16 %v18
  %v67 = vunpack.c.l.b16 %v19
  %v68 = vunpack.c.l.b16 %v20
  %v69 = vunpack.c.l.b16 %v21
  %v70 = vunpack.c.l.b16 %v22
  %v71 = vunpack.c.l.b16 %v23
  %v72 = vunpack.c.l.b16 %v24
  %v73 = vunpack.c.l.b16 %v25
  %v74 = vunpack.c.l.b16 %v26
  %v75 = vunpack.c.l.b16 %v27
  %v76 = vunpack.c.l.b16 %v28
  %v77 = vunpack.c.l.b16 %v29
  %v78 = vpack.c.b16 %v63, %v62
  %v79 = vpack.c.b16 %v65, %v64
  %v80 = vpack.c.b16 %v67, %v66
  %v81 = vpack.c.b16 %v69, %v68
  %v82 = vpack.c.b16 %v71, %v70
  %v83 = vpack.c.b16 %v73, %v72
  %v84 = vpack.c.b16 %v75, %v74
  %v85 = vpack.c.b16 %v77, %v76
  %v110 = vunpack.c.l.b16 %v30
  %v111 = vunpack.c.l.b16 %v31
  %v112 = vunpack.c.l.b16 %v32
  %v113 = vunpack.c.l.b16 %v33
  %v114 = vunpack.c.l.b16 %v34
  %v115 = vunpack.c.l.b16 %v35
  %v116 = vunpack.c.l.b16 %v36
  %v117 = vunpack.c.l.b16 %v37
  %v118 = vunpack.c.l.b16 %v38
  %v119 = vunpack.c.l.b16 %v39
  %v120 = vunpack.c.l.b16 %v40
  %v121 = vunpack.c.l.b16 %v41
  %v122 = vunpack.c.l.b16 %v42
  %v123 = vunpack.c.l.b16 %v43
  %v124 = vunpack.c.l.b16 %v44
  %v125 = vunpack.c.l.b16 %v45
  %v126 = vpack.c.b16 %v111, %v110
  %v127 = vpack.c.b16 %v113, %v112
  %v128 = vpack.c.b16 %v115, %v114
  %v129 = vpack.c.b16 %v117, %v116
  %v130 = vpack.c.b16 %v119, %v118
  %v131 = vpack.c.b16 %v121, %v120
  %v132 = vpack.c.b16 %v123, %v122
  %v133 = vpack.c.b16 %v125, %v124
  %142 = vmatprep.subr.bf16.mxu0 0
  %143 = vmatpush1.bf16.msra.mxu0 %v133
  %144 = vmatprep.subr.bf16.mxu0 0
  %145 = vmatpush1.bf16.msra.mxu0 %v132
  %146 = vmatprep.subr.bf16.mxu0 0
  %147 = vmatpush1.bf16.msra.mxu0 %v131
  %148 = vmatprep.subr.bf16.mxu0 0
  %149 = vmatpush1.bf16.msra.mxu0 %v130
  %150 = vmatprep.subr.bf16.mxu0 0
  %151 = vmatpush1.bf16.msra.mxu0 %v129
  %152 = vmatprep.subr.bf16.mxu0 0
  %153 = vmatpush1.bf16.msra.mxu0 %v128
  %154 = vmatprep.subr.bf16.mxu0 0
  %155 = vmatpush1.bf16.msra.mxu0 %v127
  %156 = vmatprep.subr.bf16.mxu0 0
  %157 = vmatpush1.bf16.msra.mxu0 %v126
  %158 = vmatprep.subr.bf16.mxu0 0
  %159 = vmatpush2.bf16.msra.mxu0 0
  %160 = vmatprep.subr.bf16.mxu0 0
  %161 = vmatpush2.bf16.msra.mxu0 0
  %162 = vmatprep.subr.bf16.mxu0 0
  %163 = vmatpush2.bf16.msra.mxu0 0
  %164 = vmatprep.subr.bf16.mxu0 0
  %165 = vmatpush2.bf16.msra.mxu0 0
  %166 = vmatprep.subr.bf16.mxu0 0
  %167 = vmatpush2.bf16.msra.mxu0 0
  %168 = vmatprep.subr.bf16.mxu0 0
  %169 = vmatpush2.bf16.msra.mxu0 0
  %170 = vmatprep.subr.bf16.mxu0 0
  %171 = vmatpush2.bf16.msra.mxu0 0
  %172 = vmatprep.subr.bf16.mxu0 0
  %173 = vmatpush2.bf16.msra.mxu0 0
  %174 = vmatprep.mubr.bf16.mxu0 0
  %175 = vmatmul.mubr.bf16.gmra.mxu0 %v78
  %v176 = vpop.f32.mrf.mxu0
  %v177 = vadd.f32 0.0, %v176
  %v178 = vpop.f32.mrf.mxu0
  %v179 = vpop.f32.mrf.mxu0
  %v180 = vadd.f32 0.0, %v179
  %v181 = vpop.f32.mrf.mxu0
  %182 = vmatprep.mubr.bf16.mxu0 0
  %183 = vmatmul.mubr.bf16.gmra.mxu0 %v79
  %v184 = vpop.f32.mrf.mxu0
  %v185 = vadd.f32 0.0, %v184
  %v186 = vpop.f32.mrf.mxu0
  %v187 = vpop.f32.mrf.mxu0
  %v188 = vadd.f32 0.0, %v187
  %v189 = vpop.f32.mrf.mxu0
  %190 = vmatprep.mubr.bf16.mxu0 0
  %191 = vmatmul.mubr.bf16.gmra.mxu0 %v80
  %v192 = vpop.f32.mrf.mxu0
  %v193 = vadd.f32 0.0, %v192
  %v194 = vpop.f32.mrf.mxu0
  %v195 = vpop.f32.mrf.mxu0
  %v196 = vadd.f32 0.0, %v195
  %v197 = vpop.f32.mrf.mxu0
  %198 = vmatprep.mubr.bf16.mxu0 0
  %199 = vmatmul.mubr.bf16.gmra.mxu0 %v81
  %v200 = vpop.f32.mrf.mxu0
  %v201 = vadd.f32 0.0, %v200
  %v202 = vpop.f32.mrf.mxu0
  %v203 = vpop.f32.mrf.mxu0
  %v204 = vadd.f32 0.0, %v203
  %v205 = vpop.f32.mrf.mxu0
  %206 = vmatprep.mubr.bf16.mxu0 0
  %207 = vmatmul.mubr.bf16.gmra.mxu0 %v82
  %v208 = vpop.f32.mrf.mxu0
  %v209 = vadd.f32 0.0, %v208
  %v210 = vpop.f32.mrf.mxu0
  %v211 = vpop.f32.mrf.mxu0
  %v212 = vadd.f32 0.0, %v211
  %v213 = vpop.f32.mrf.mxu0
  %214 = vmatprep.mubr.bf16.mxu0 0
  %215 = vmatmul.mubr.bf16.gmra.mxu0 %v83
  %v216 = vpop.f32.mrf.mxu0
  %v217 = vadd.f32 0.0, %v216
  %v218 = vpop.f32.mrf.mxu0
  %v219 = vpop.f32.mrf.mxu0
  %v220 = vadd.f32 0.0, %v219
  %v221 = vpop.f32.mrf.mxu0
  %222 = vmatprep.mubr.bf16.mxu0 0
  %223 = vmatmul.mubr.bf16.gmra.mxu0 %v84
  %v224 = vpop.f32.mrf.mxu0
  %v225 = vadd.f32 0.0, %v224
  %v226 = vpop.f32.mrf.mxu0
  %v227 = vpop.f32.mrf.mxu0
  %v228 = vadd.f32 0.0, %v227
  %v229 = vpop.f32.mrf.mxu0
  %230 = vmatprep.mubr.bf16.mxu0 0
  %231 = vmatmul.mubr.bf16.gmra.mxu0 %v85
  %v232 = vpop.f32.mrf.mxu0
  %v233 = vadd.f32 0.0, %v232
  %v234 = vpop.f32.mrf.mxu0
  %v235 = vpop.f32.mrf.mxu0
  %v236 = vadd.f32 0.0, %v235
  %v237 = vpop.f32.mrf.mxu0
  %238 = vdwg.mxu0
  %v239 = vpack.c.bf16 %v180, %v177
  %v240 = vpack.c.bf16 %v188, %v185
  %v241 = vpack.c.bf16 %v196, %v193
  %v242 = vpack.c.bf16 %v204, %v201
  %v243 = vpack.c.bf16 %v212, %v209
  %v244 = vpack.c.bf16 %v220, %v217
  %v245 = vpack.c.bf16 %v228, %v225
  %v246 = vpack.c.bf16 %v236, %v233
  %v255 = vunpack.c.l.b16 %v239
  %v256 = vunpack.c.h.b16 %v239
  %v257 = vunpack.c.l.b16 %v240
  %v258 = vunpack.c.h.b16 %v240
  %v259 = vunpack.c.l.b16 %v241
  %v260 = vunpack.c.h.b16 %v241
  %v261 = vunpack.c.l.b16 %v242
  %v262 = vunpack.c.h.b16 %v242
  %v263 = vunpack.c.l.b16 %v243
  %v264 = vunpack.c.h.b16 %v243
  %v265 = vunpack.c.l.b16 %v244
  %v266 = vunpack.c.h.b16 %v244
  %v267 = vunpack.c.l.b16 %v245
  %v268 = vunpack.c.h.b16 %v245
  %v269 = vunpack.c.l.b16 %v246
  %v270 = vunpack.c.h.b16 %v246
  %v271 = vpack.c.b16 %v255, %v255
  %v272 = vpack.c.b16 %v256, %v256
  %v273 = vpack.c.b16 %v257, %v257
  %v274 = vpack.c.b16 %v258, %v258
  %v275 = vpack.c.b16 %v259, %v259
  %v276 = vpack.c.b16 %v260, %v260
  %v277 = vpack.c.b16 %v261, %v261
  %v278 = vpack.c.b16 %v262, %v262
  %v279 = vpack.c.b16 %v263, %v263
  %v280 = vpack.c.b16 %v264, %v264
  %v281 = vpack.c.b16 %v265, %v265
  %v282 = vpack.c.b16 %v266, %v266
  %v283 = vpack.c.b16 %v267, %v267
  %v284 = vpack.c.b16 %v268, %v268
  %v285 = vpack.c.b16 %v269, %v269
  %v286 = vpack.c.b16 %v270, %v270
  %303 = vst [vmem:[%s2] sm:$0xf] %v271
  %304 = vst [vmem:[%s2 + $0x4] sm:$0xf] %v272
  %305 = vst [vmem:[%s2 + $0x8] sm:$0xf] %v273
  %306 = vst [vmem:[%s2 + $0xc] sm:$0xf] %v274
  %307 = vst [vmem:[%s2 + $0x10] sm:$0xf] %v275
  %308 = vst [vmem:[%s2 + $0x14] sm:$0xf] %v276
  %309 = vst [vmem:[%s2 + $0x18] sm:$0xf] %v277
  %310 = vst [vmem:[%s2 + $0x1c] sm:$0xf] %v278
  %311 = vst [vmem:[%s2 + $0x20] sm:$0xf] %v279
  %312 = vst [vmem:[%s2 + $0x24] sm:$0xf] %v280
  %313 = vst [vmem:[%s2 + $0x28] sm:$0xf] %v281
  %314 = vst [vmem:[%s2 + $0x2c] sm:$0xf] %v282
  %315 = vst [vmem:[%s2 + $0x30] sm:$0xf] %v283
  %316 = vst [vmem:[%s2 + $0x34] sm:$0xf] %v284
  %317 = vst [vmem:[%s2 + $0x38] sm:$0xf] %v285
  %318 = vst [vmem:[%s2 + $0x3c] sm:$0xf] %v286
  %v319 = vadd.f32 %v177, %v180
  %v320 = vadd.f32 %v319, %v185
  %v321 = vadd.f32 %v320, %v188
  %v322 = vadd.f32 %v321, %v193
  %v323 = vadd.f32 %v322, %v196
  %v324 = vadd.f32 %v323, %v201
  %v325 = vadd.f32 %v324, %v204
  %v326 = vadd.f32 %v325, %v209
  %v327 = vadd.f32 %v326, %v212
  %v328 = vadd.f32 %v327, %v217
  %v329 = vadd.f32 %v328, %v220
  %v330 = vadd.f32 %v329, %v225
  %v331 = vadd.f32 %v330, %v228
  %v332 = vadd.f32 %v331, %v233
  %v333 = vadd.f32 %v332, %v236
  %v334 = vrot.slane %v333, 4
  %v335 = vadd.f32 %v333, %v334
  %v336 = vrot.slane %v335, 2
  %v337 = vadd.f32 %v335, %v336
  %v338 = vrot.slane %v337, 1
  %v339 = vadd.f32 %v337, %v338
  %v340 = vmul.f32 %v177, %v177
  %v341 = vmul.f32 %v180, %v180
  %v342 = vmul.f32 %v185, %v185
  %v343 = vmul.f32 %v188, %v188
  %v344 = vmul.f32 %v193, %v193
  %v345 = vmul.f32 %v196, %v196
  %v346 = vmul.f32 %v201, %v201
  %v347 = vmul.f32 %v204, %v204
  %v348 = vmul.f32 %v209, %v209
  %v349 = vmul.f32 %v212, %v212
  %v350 = vmul.f32 %v217, %v217
  %v351 = vmul.f32 %v220, %v220
  %v352 = vmul.f32 %v225, %v225
  %v353 = vmul.f32 %v228, %v228
  %v354 = vmul.f32 %v233, %v233
  %v355 = vmul.f32 %v236, %v236
  %v356 = vadd.f32 %v340, %v341
  %v357 = vadd.f32 %v356, %v342
  %v358 = vadd.f32 %v357, %v343
  %v359 = vadd.f32 %v358, %v344
  %v360 = vadd.f32 %v359, %v345
  %v361 = vadd.f32 %v360, %v346
  %v362 = vadd.f32 %v361, %v347
  %v363 = vadd.f32 %v362, %v348
  %v364 = vadd.f32 %v363, %v349
  %v365 = vadd.f32 %v364, %v350
  %v366 = vadd.f32 %v365, %v351
  %v367 = vadd.f32 %v366, %v352
  %v368 = vadd.f32 %v367, %v353
  %v369 = vadd.f32 %v368, %v354
  %v370 = vadd.f32 %v369, %v355
  %v371 = vrot.slane %v370, 4
  %v372 = vadd.f32 %v370, %v371
  %v373 = vrot.slane %v372, 2
  %v374 = vadd.f32 %v372, %v373
  %v375 = vrot.slane %v374, 1
  %v376 = vadd.f32 %v374, %v375
  %v377 = vlaneseq
  %v378 = vshrl.u32 %v377, 7
  %vm379 = vcmp.eq.s32.totalorder %v378, 0
  %vm380 = vcmp.eq.s32.totalorder %v378, 1
  %v381 = vsel %vm380, %v376, 0.0
  %v382 = vsel %vm379, %v339, %v381
  %383 = vst [vmem:[%s3] sm:$0xff] %v382
  // Predicated region
  $region10: #{bottleneck_forward.10} parent=0 // pred_check
    _
  $region11: #{bottleneck_forward.10} parent=0 // pred_check_branch
    %385 = sbr.rel (0) target = $region13
  $region12: #{bottleneck_forward.10} parent=0 // pred_region
    _
  $region13: #{bottleneck_forward.10} parent=0 // pred_fallthru
    _
  // Predicated region
  $region14: #{bottleneck_forward.10} parent=0 // pred_check
    _
  $region15: #{bottleneck_forward.10} parent=0 // pred_check_branch
    %387 = sbr.rel (0) target = $region17
  $region16: #{bottleneck_forward.10} parent=0 // pred_region
    _
  $region17: #{bottleneck_forward.10} parent=0 // pred_fallthru
    _
  // Predicated region
  $region18: #{bottleneck_forward.10} parent=0 // pred_check
    _
  $region19: #{bottleneck_forward.10} parent=0 // pred_check_branch
    %389 = sbr.rel (0) target = $region21
  $region20: #{bottleneck_forward.10} parent=0 // pred_region
    _
  $region21: #{bottleneck_forward.10} parent=0 // pred_fallthru
    _
  // Predicated region
  $region22: #{bottleneck_forward.10} parent=0 // pred_check
    _
  $region23: #{bottleneck_forward.10} parent=0 // pred_check_branch
    %391 = sbr.rel (0) target = $region25
  $region24: #{bottleneck_forward.10} parent=0 // pred_region
    _
  $region25: #{bottleneck_forward.10} parent=0 // pred_fallthru
    _

// kernel: bottleneck_forward.11
$region0: #{bottleneck_forward.11}
  #allocation0 [shape = 'u32[]', space=smem, size = 0x4, offset = 0x4, fixed_abs, tag = 'smem constant byte address 0x4 - core index']
  #allocation1 [shape = 'u32[144,128]{1,0:T(1,128)}', space=vmem, size = 0x12000, scoped, tag = 'internal scratch']
  %s0 = inlined_call_operand.vmem [shape: bf16[128,128], index: 0, kind: input, shape index: {}]
  %s1 = inlined_call_operand.vmem [shape: f32[1,128], index: 1, kind: input, shape index: {}]
  %s2 = inlined_call_operand.vmem [shape: f32[1,128], index: 2, kind: input, shape index: {}]
  %s3 = inlined_call_operand.vmem [shape: bf16[128,128], index: 3, kind: input, shape index: {}]
  %s4 = inlined_call_operand.vmem [shape: f32[1,128], index: 4, kind: input, shape index: {}]
  %s5 = inlined_call_operand.vmem [shape: f32[1,128], index: 5, kind: input, shape index: {}]
  %s6 = inlined_call_operand.hbm [shape: f32[128,128], index: 6, kind: output, shape index: {}]
  %s7 = sld [smem:[#allocation0]]
  $region34: #{bottleneck_forward.11} parent=0
    _
  %s9 = ssub.s32 1, %s7
  %s10 = scalar_select 0, %s9, %s7
  $region1: #{bottleneck_forward.11} parent=0
    #allocation2 [shape = 'u8[65536]{0}', space=vmem, size = 0x10000, scoped, tag = 'output window, operand 0, single buffered']
    #allocation3 [shape = 's32[1]{0}', space=sflag, size = 0x4, scoped, tag = 'scoped memory for bottleneck_forward.11']
    %11 = vsyncpa [#allocation3], 0
    // Predicated region
    $region2: #{bottleneck_forward.11} parent=1 // pred_check
      _
    $region3: #{bottleneck_forward.11} parent=1 // pred_check_branch
      %13 = sbr.rel (0) target = $region5
    $region4: #{bottleneck_forward.11} parent=1 // pred_region
      _
    $region5: #{bottleneck_forward.11} parent=1 // pred_fallthru
      _
    // Predicated region
    $region6: #{bottleneck_forward.11} parent=1 // pred_check
      _
    $region7: #{bottleneck_forward.11} parent=1 // pred_check_branch
      %15 = sbr.rel (0) target = $region9
    $region8: #{bottleneck_forward.11} parent=1 // pred_region
      _
    $region9: #{bottleneck_forward.11} parent=1 // pred_fallthru
      _
    // Predicated region
    $region10: #{bottleneck_forward.11} parent=1 // pred_check
      _
    $region11: #{bottleneck_forward.11} parent=1 // pred_check_branch
      %17 = sbr.rel (0) target = $region13
    $region12: #{bottleneck_forward.11} parent=1 // pred_region
      _
    $region13: #{bottleneck_forward.11} parent=1 // pred_fallthru
      _
    // Predicated region
    $region14: #{bottleneck_forward.11} parent=1 // pred_check
      _
    $region15: #{bottleneck_forward.11} parent=1 // pred_check_branch
      %19 = sbr.rel (0) target = $region17
    $region16: #{bottleneck_forward.11} parent=1 // pred_region
      _
    $region17: #{bottleneck_forward.11} parent=1 // pred_fallthru
      _
    // Predicated region
    $region18: #{bottleneck_forward.11} parent=1 // pred_check
      _
    $region19: #{bottleneck_forward.11} parent=1 // pred_check_branch
      %21 = sbr.rel (0) target = $region21
    $region20: #{bottleneck_forward.11} parent=1 // pred_region
      _
    $region21: #{bottleneck_forward.11} parent=1 // pred_fallthru
      _
    // Predicated region
    $region22: #{bottleneck_forward.11} parent=1 // pred_check
      _
    $region23: #{bottleneck_forward.11} parent=1 // pred_check_branch
      %23 = sbr.rel (0) target = $region25
    $region24: #{bottleneck_forward.11} parent=1 // pred_region
      _
    $region25: #{bottleneck_forward.11} parent=1 // pred_fallthru
      _
    %v24 = vld [vmem:[%s0] sm:$0xf]
    %v25 = vld [vmem:[%s0 + $0x4] sm:$0xf]
    %v26 = vld [vmem:[%s0 + $0x8] sm:$0xf]
    %v27 = vld [vmem:[%s0 + $0xc] sm:$0xf]
    %v28 = vld [vmem:[%s0 + $0x10] sm:$0xf]
    %v29 = vld [vmem:[%s0 + $0x14] sm:$0xf]
    %v30 = vld [vmem:[%s0 + $0x18] sm:$0xf]
    %v31 = vld [vmem:[%s0 + $0x1c] sm:$0xf]
    %v32 = vld [vmem:[%s0 + $0x20] sm:$0xf]
    %v33 = vld [vmem:[%s0 + $0x24] sm:$0xf]
    %v34 = vld [vmem:[%s0 + $0x28] sm:$0xf]
    %v35 = vld [vmem:[%s0 + $0x2c] sm:$0xf]
    %v36 = vld [vmem:[%s0 + $0x30] sm:$0xf]
    %v37 = vld [vmem:[%s0 + $0x34] sm:$0xf]
    %v38 = vld [vmem:[%s0 + $0x38] sm:$0xf]
    %v39 = vld [vmem:[%s0 + $0x3c] sm:$0xf]
    %v40 = vunpack.c.l.bf16 %v24
    %v41 = vunpack.c.l.bf16 %v25
    %v42 = vunpack.c.l.bf16 %v26
    %v43 = vunpack.c.l.bf16 %v27
    %v44 = vunpack.c.l.bf16 %v28
    %v45 = vunpack.c.l.bf16 %v29
    %v46 = vunpack.c.l.bf16 %v30
    %v47 = vunpack.c.l.bf16 %v31
    %v48 = vunpack.c.l.bf16 %v32
    %v49 = vunpack.c.l.bf16 %v33
    %v50 = vunpack.c.l.bf16 %v34
    %v51 = vunpack.c.l.bf16 %v35
    %v52 = vunpack.c.l.bf16 %v36
    %v53 = vunpack.c.l.bf16 %v37
    %v54 = vunpack.c.l.bf16 %v38
    %v55 = vunpack.c.l.bf16 %v39
    %v56 = vld [vmem:[%s1] sm:$0x1]
    %v58 = vlaneseq
    %v59 = vshrl.u32 %v58, 7
    %v60 = vsub.s32 0, %v59
    %v61 = vrot.slane %v56, %v60
    %v63 = vmul.f32 %v40, %v61
    %v64 = vmul.f32 %v41, %v61
    %v65 = vmul.f32 %v42, %v61
    %v66 = vmul.f32 %v43, %v61
    %v67 = vmul.f32 %v44, %v61
    %v68 = vmul.f32 %v45, %v61
    %v69 = vmul.f32 %v46, %v61
    %v70 = vmul.f32 %v47, %v61
    %v71 = vmul.f32 %v48, %v61
    %v72 = vmul.f32 %v49, %v61
    %v73 = vmul.f32 %v50, %v61
    %v74 = vmul.f32 %v51, %v61
    %v75 = vmul.f32 %v52, %v61
    %v76 = vmul.f32 %v53, %v61
    %v77 = vmul.f32 %v54, %v61
    %v78 = vmul.f32 %v55, %v61
    %v79 = vld [vmem:[%s2] sm:$0x1]
    %v81 = vlaneseq
    %v82 = vshrl.u32 %v81, 7
    %v83 = vsub.s32 0, %v82
    %v84 = vrot.slane %v79, %v83
    %v86 = vadd.f32 %v63, %v84
    %v87 = vadd.f32 %v64, %v84
    %v88 = vadd.f32 %v65, %v84
    %v89 = vadd.f32 %v66, %v84
    %v90 = vadd.f32 %v67, %v84
    %v91 = vadd.f32 %v68, %v84
    %v92 = vadd.f32 %v69, %v84
    %v93 = vadd.f32 %v70, %v84
    %v94 = vadd.f32 %v71, %v84
    %v95 = vadd.f32 %v72, %v84
    %v96 = vadd.f32 %v73, %v84
    %v97 = vadd.f32 %v74, %v84
    %v98 = vadd.f32 %v75, %v84
    %v99 = vadd.f32 %v76, %v84
    %v100 = vadd.f32 %v77, %v84
    %v101 = vadd.f32 %v78, %v84
    %v102 = vld [vmem:[%s3] sm:$0xf]
    %v103 = vld [vmem:[%s3 + $0x4] sm:$0xf]
    %v104 = vld [vmem:[%s3 + $0x8] sm:$0xf]
    %v105 = vld [vmem:[%s3 + $0xc] sm:$0xf]
    %v106 = vld [vmem:[%s3 + $0x10] sm:$0xf]
    %v107 = vld [vmem:[%s3 + $0x14] sm:$0xf]
    %v108 = vld [vmem:[%s3 + $0x18] sm:$0xf]
    %v109 = vld [vmem:[%s3 + $0x1c] sm:$0xf]
    %v110 = vld [vmem:[%s3 + $0x20] sm:$0xf]
    %v111 = vld [vmem:[%s3 + $0x24] sm:$0xf]
    %v112 = vld [vmem:[%s3 + $0x28] sm:$0xf]
    %v113 = vld [vmem:[%s3 + $0x2c] sm:$0xf]
    %v114 = vld [vmem:[%s3 + $0x30] sm:$0xf]
    %v115 = vld [vmem:[%s3 + $0x34] sm:$0xf]
    %v116 = vld [vmem:[%s3 + $0x38] sm:$0xf]
    %v117 = vld [vmem:[%s3 + $0x3c] sm:$0xf]
    %v118 = vunpack.c.l.bf16 %v102
    %v119 = vunpack.c.l.bf16 %v103
    %v120 = vunpack.c.l.bf16 %v104
    %v121 = vunpack.c.l.bf16 %v105
    %v122 = vunpack.c.l.bf16 %v106
    %v123 = vunpack.c.l.bf16 %v107
    %v124 = vunpack.c.l.bf16 %v108
    %v125 = vunpack.c.l.bf16 %v109
    %v126 = vunpack.c.l.bf16 %v110
    %v127 = vunpack.c.l.bf16 %v111
    %v128 = vunpack.c.l.bf16 %v112
    %v129 = vunpack.c.l.bf16 %v113
    %v130 = vunpack.c.l.bf16 %v114
    %v131 = vunpack.c.l.bf16 %v115
    %v132 = vunpack.c.l.bf16 %v116
    %v133 = vunpack.c.l.bf16 %v117
    %v134 = vld [vmem:[%s4] sm:$0x1]
    %v136 = vlaneseq
    %v137 = vshrl.u32 %v136, 7
    %v138 = vsub.s32 0, %v137
    %v139 = vrot.slane %v134, %v138
    %v141 = vmul.f32 %v118, %v139
    %v142 = vmul.f32 %v119, %v139
    %v143 = vmul.f32 %v120, %v139
    %v144 = vmul.f32 %v121, %v139
    %v145 = vmul.f32 %v122, %v139
    %v146 = vmul.f32 %v123, %v139
    %v147 = vmul.f32 %v124, %v139
    %v148 = vmul.f32 %v125, %v139
    %v149 = vmul.f32 %v126, %v139
    %v150 = vmul.f32 %v127, %v139
    %v151 = vmul.f32 %v128, %v139
    %v152 = vmul.f32 %v129, %v139
    %v153 = vmul.f32 %v130, %v139
    %v154 = vmul.f32 %v131, %v139
    %v155 = vmul.f32 %v132, %v139
    %v156 = vmul.f32 %v133, %v139
    %v157 = vld [vmem:[%s5] sm:$0x1]
    %v159 = vlaneseq
    %v160 = vshrl.u32 %v159, 7
    %v161 = vsub.s32 0, %v160
    %v162 = vrot.slane %v157, %v161
    %v164 = vadd.f32 %v141, %v162
    %v165 = vadd.f32 %v142, %v162
    %v166 = vadd.f32 %v143, %v162
    %v167 = vadd.f32 %v144, %v162
    %v168 = vadd.f32 %v145, %v162
    %v169 = vadd.f32 %v146, %v162
    %v170 = vadd.f32 %v147, %v162
    %v171 = vadd.f32 %v148, %v162
    %v172 = vadd.f32 %v149, %v162
    %v173 = vadd.f32 %v150, %v162
    %v174 = vadd.f32 %v151, %v162
    %v175 = vadd.f32 %v152, %v162
    %v176 = vadd.f32 %v153, %v162
    %v177 = vadd.f32 %v154, %v162
    %v178 = vadd.f32 %v155, %v162
    %v179 = vadd.f32 %v156, %v162
    %v180 = vadd.f32 %v86, %v164
    %v181 = vadd.f32 %v87, %v165
    %v182 = vadd.f32 %v88, %v166
    %v183 = vadd.f32 %v89, %v167
    %v184 = vadd.f32 %v90, %v168
    %v185 = vadd.f32 %v91, %v169
    %v186 = vadd.f32 %v92, %v170
    %v187 = vadd.f32 %v93, %v171
    %v188 = vadd.f32 %v94, %v172
    %v189 = vadd.f32 %v95, %v173
    %v190 = vadd.f32 %v96, %v174
    %v191 = vadd.f32 %v97, %v175
    %v192 = vadd.f32 %v98, %v176
    %v193 = vadd.f32 %v99, %v177
    %v194 = vadd.f32 %v100, %v178
    %v195 = vadd.f32 %v101, %v179
    %v196 = vmax.f32 %v180, 0.0
    %v197 = vmax.f32 %v181, 0.0
    %v198 = vmax.f32 %v182, 0.0
    %v199 = vmax.f32 %v183, 0.0
    %v200 = vmax.f32 %v184, 0.0
    %v201 = vmax.f32 %v185, 0.0
    %v202 = vmax.f32 %v186, 0.0
    %v203 = vmax.f32 %v187, 0.0
    %v204 = vmax.f32 %v188, 0.0
    %v205 = vmax.f32 %v189, 0.0
    %v206 = vmax.f32 %v190, 0.0
    %v207 = vmax.f32 %v191, 0.0
    %v208 = vmax.f32 %v192, 0.0
    %v209 = vmax.f32 %v193, 0.0
    %v210 = vmax.f32 %v194, 0.0
    %v211 = vmax.f32 %v195, 0.0
    %212 = vst [vmem:[#allocation2] sm:$0xff] %v196
    %213 = vst [vmem:[#allocation2 + $0x8] sm:$0xff] %v197
    %214 = vst [vmem:[#allocation2 + $0x10] sm:$0xff] %v198
    %215 = vst [vmem:[#allocation2 + $0x18] sm:$0xff] %v199
    %216 = vst [vmem:[#allocation2 + $0x20] sm:$0xff] %v200
    %217 = vst [vmem:[#allocation2 + $0x28] sm:$0xff] %v201
    %218 = vst [vmem:[#allocation2 + $0x30] sm:$0xff] %v202
    %219 = vst [vmem:[#allocation2 + $0x38] sm:$0xff] %v203
    %220 = vst [vmem:[#allocation2 + $0x40] sm:$0xff] %v204
    %221 = vst [vmem:[#allocation2 + $0x48] sm:$0xff] %v205
    %222 = vst [vmem:[#allocation2 + $0x50] sm:$0xff] %v206
    %223 = vst [vmem:[#allocation2 + $0x58] sm:$0xff] %v207
    %224 = vst [vmem:[#allocation2 + $0x60] sm:$0xff] %v208
    %225 = vst [vmem:[#allocation2 + $0x68] sm:$0xff] %v209
    %226 = vst [vmem:[#allocation2 + $0x70] sm:$0xff] %v210
    %227 = vst [vmem:[#allocation2 + $0x78] sm:$0xff] %v211
    // Predicated region
    $region26: #{bottleneck_forward.11} parent=1 // pred_check
      _
    $region27: #{bottleneck_forward.11} parent=1 // pred_check_branch
      %229 = sbr.rel (0) target = $region29
    $region28: #{bottleneck_forward.11} parent=1 // pred_region
      %s231 = ssub.s32 2048, 2048
      %232 = vsyncadd [#allocation3], %s231
      %s233 = sshll.u32 [#allocation2], 4
      %s234 = int_to_ptr.vmem [resolvable:$true] %s233
      %239 = dma.vmem_to_hbm [thread:$0]  %s234, 2048, %s6, [#allocation3], 128, 128, 8
    $region29: #{bottleneck_forward.11} parent=1 // pred_fallthru
      _
    // Predicated region
    $region30: #{bottleneck_forward.11} parent=1 // pred_check
      _
    $region31: #{bottleneck_forward.11} parent=1 // pred_check_branch
      %241 = sbr.rel (0) target = $region33
    $region32: #{bottleneck_forward.11} parent=1 // pred_region
      %242 = dma.done [#allocation3], 2048
    $region33: #{bottleneck_forward.11} parent=1 // pred_fallthru
      _
    %243 = vsyncpa [#allocation3], 1

</llo_original>
